<compile_context>
chip_gen: v6e
topology: v6e:2x2x1
jax: 0.10.0
libtpu: 0.0.40
codegen_flags: <defaults>
</compile_context>

<pallas_src>
import math

import jax
import jax.numpy as jnp
from jax import lax
from jax.experimental import pallas as pl
from jax.experimental.pallas import tpu as pltpu


def _make_kernel(h, d_k, d_v, ln_eps=1e-5):

    def kernel(q_ref, k_ref, v_ref, box_ref,
               wq_ref, bq_ref, wk_ref, bk_ref, wv_ref, bv_ref,
               wo_ref, bo_ref, gamma_ref, beta_ref,
               out_ref, kp_ref, vp_ref):
        bf16, f32 = jnp.bfloat16, jnp.float32

        # K / V projections once per batch; keys/values and the kp/vp scratch stay
        # resident across the (sequential, "arbitrary") nq grid axis.
        @pl.when(pl.program_id(1) == 0)
        def _():
            kin = k_ref[0].astype(bf16)                                # (nk, d_model)
            vin = v_ref[0].astype(bf16)
            kp_ref[...] = (jnp.dot(kin, wk_ref[...], preferred_element_type=f32)
                           + bk_ref[...]).astype(bf16)                 # (nk, h*d_k)
            vp_ref[...] = (jnp.dot(vin, wv_ref[...], preferred_element_type=f32)
                           + bv_ref[...]).astype(bf16)                 # (nk, h*d_v)

        qin = q_ref[0]                                                 # (tq, d_model)
        # 1/sqrt(d_k) is folded into wq/bq host-side; cast to bf16 exactly once.
        qp = (jnp.dot(qin.astype(bf16), wq_ref[...], preferred_element_type=f32)
              + bq_ref[...]).astype(bf16)                              # (tq, h*d_k)
        kp = kp_ref[...]                                               # bf16
        vp = vp_ref[...]                                               # bf16

        # q @ k^T without materializing k^T (contract last dims of both operands).
        nt_dims = (((1,), (1,)), ((), ()))

        ctxs = []
        for hh in range(h):                          # static unroll, h is small
            q_h = qp[:, hh * d_k:(hh + 1) * d_k]                       # (tq, d_k) bf16
            k_h = kp[:, hh * d_k:(hh + 1) * d_k]                       # (nk, d_k) bf16
            v_h = vp[:, hh * d_v:(hh + 1) * d_v]                       # (nk, d_v) bf16

            att = lax.dot_general(q_h, k_h, nt_dims,
                                  preferred_element_type=f32)          # (tq, nk) f32
            # log(clamp(box, 1e-6)) computed in-kernel (EUP slot) on the raw box tile.
            logits = jnp.log(jnp.maximum(box_ref[0, hh].astype(f32), 1e-6)) + att

            # numerically stable softmax over nk, f32 math
            logits = logits - jnp.max(logits, axis=-1, keepdims=True)
            p = jnp.exp(logits)
            p = p * pl.reciprocal(jnp.sum(p, axis=-1, keepdims=True), approx=True)

            ctxs.append(jnp.dot(p.astype(bf16), v_h,
                                preferred_element_type=f32))            # (tq, d_v) f32

        # Lane-concat the head contexts (stays in VMEM / vregs), then ONE MXU matmul
        # with contraction depth K = h*d_v against Wo (h*d_v, d_model).
        ctx_all = jnp.concatenate(ctxs, axis=-1).astype(bf16)          # (tq, h*d_v)
        attn_out = (jnp.dot(ctx_all, wo_ref[...], preferred_element_type=f32)
                    + bo_ref[...])                                     # (tq, d_model)

        # residual + LayerNorm (dropout = identity in eval mode), f32 math
        x = qin.astype(f32) + attn_out
        mean = jnp.mean(x, axis=-1, keepdims=True)
        var = jnp.mean((x - mean) ** 2, axis=-1, keepdims=True)
        y = (x - mean) * jax.lax.rsqrt(var + ln_eps)
        y = y * gamma_ref[...] + beta_ref[...]

        # TODO(synk): when d_model < 128, pack several query rows per output block so
        # stores stay lane-dense (toy test shape only; production d_model >= 128).
        out_ref[0] = y.astype(out_ref.dtype)

    return kernel


def _chip_vmem_capacity_bytes():
    try:
        return int(pltpu.get_tpu_info().vmem_capacity_bytes)
    except Exception:
        return 64 * 1024 * 1024   # conservative default: v7x per-TensorCore VMEM


def _estimate_vmem_bytes(tq, nk, d_model, h, d_k, d_v, io_bytes, box_bytes):
    # Double-buffered streamed blocks.
    streamed = 2 * (tq * d_model * io_bytes            # q tile
                    + tq * d_model * io_bytes          # output tile
                    + h * tq * nk * box_bytes          # box tile (dominant stream)
                    + 2 * nk * d_model * io_bytes)     # k, v (resident per batch)
    # Single-buffered invariant weights (bf16) + biases / LN params (f32).
    weights = (2 * (2 * d_model * h * d_k + d_model * h * d_v + h * d_v * d_model)
               + 4 * (2 * h * d_k + h * d_v + 4 * d_model))
    # bf16 kp/vp scratch cache.
    scratch = 2 * nk * (h * d_k + h * d_v)
    # f32 in-kernel working set (projections, per-head scores/softmax, ctx, LN).
    interm = 4 * (tq * h * d_k + 3 * tq * nk + 2 * tq * h * d_v + 3 * tq * d_model)
    return streamed + weights + scratch + interm


def _pick_tq(nq, nk, d_model, h, d_k, d_v, io_bytes, box_bytes, vmem_budget):
    # Largest sublane-aligned nq tile whose working set fits the *per-chip* VMEM
    # budget: v5e/v6e (128 MiB) typically take 512, v7x (64 MiB) drops to 256/128.
    best = None
    for cand in (512, 256, 128, 64, 32, 16, 8):
        if nq % cand == 0:
            if _estimate_vmem_bytes(cand, nk, d_model, h, d_k, d_v,
                                    io_bytes, box_bytes) <= vmem_budget:
                return cand
            best = cand
    # Nothing fits / nq has no aligned divisor: smallest dividing candidate, else the
    # full nq (a block dim equal to the full array dim is always legal).
    return best if best is not None else nq


def multi_head_box_attention(queries, keys, values, box, params, *, h, d_k, d_v):
    b, nq, d_model = queries.shape
    nk = keys.shape[1]
    wq, bq, wk, bk, wv, bv, wo, bo, gamma, beta = params

    bf16 = jnp.bfloat16
    scale = 1.0 / math.sqrt(d_k)
    # bf16 MXU operands (f32 accumulation in-kernel); 1/sqrt(d_k) folded into Wq / bq.
    wq16 = (wq * scale).astype(bf16)
    bq_s = (bq * scale).astype(jnp.float32)
    wk16, wv16, wo16 = wk.astype(bf16), wv.astype(bf16), wo.astype(bf16)

    cap = _chip_vmem_capacity_bytes()
    io_bytes = queries.dtype.itemsize
    box_bytes = box.dtype.itemsize        # pass box in bf16 upstream to halve this stream
    tq = _pick_tq(nq, nk, d_model, h, d_k, d_v, io_bytes, box_bytes,
                  vmem_budget=int(0.70 * cap))
    grid = (b, nq // tq)

    est = _estimate_vmem_bytes(tq, nk, d_model, h, d_k, d_v, io_bytes, box_bytes)
    vmem_limit = min(int(0.85 * cap), max(32 * 1024 * 1024, int(1.5 * est)))

    kernel = _make_kernel(h, d_k, d_v)

    def build(single_buffer_invariants):
        inv_kw = ({"pipeline_mode": pl.Buffered(1)}
                  if single_buffer_invariants else {})
        in_specs = [
            pl.BlockSpec((1, tq, d_model), lambda i, j: (i, j, 0)),            # queries
            pl.BlockSpec((1, nk, d_model), lambda i, j: (i, 0, 0)),            # keys
            pl.BlockSpec((1, nk, d_model), lambda i, j: (i, 0, 0)),            # values
            pl.BlockSpec((1, h, tq, nk), lambda i, j: (i, 0, j, 0)),           # box
            pl.BlockSpec((d_model, h * d_k), lambda i, j: (0, 0), **inv_kw),   # Wq (bf16)
            pl.BlockSpec((1, h * d_k), lambda i, j: (0, 0), **inv_kw),         # bq
            pl.BlockSpec((d_model, h * d_k), lambda i, j: (0, 0), **inv_kw),   # Wk (bf16)
            pl.BlockSpec((1, h * d_k), lambda i, j: (0, 0), **inv_kw),         # bk
            pl.BlockSpec((d_model, h * d_v), lambda i, j: (0, 0), **inv_kw),   # Wv (bf16)
            pl.BlockSpec((1, h * d_v), lambda i, j: (0, 0), **inv_kw),         # bv
            pl.BlockSpec((h * d_v, d_model), lambda i, j: (0, 0), **inv_kw),   # Wo (bf16)
            pl.BlockSpec((1, d_model), lambda i, j: (0, 0), **inv_kw),         # bo
            pl.BlockSpec((1, d_model), lambda i, j: (0, 0), **inv_kw),         # LN gamma
            pl.BlockSpec((1, d_model), lambda i, j: (0, 0), **inv_kw),         # LN beta
        ]
        out_spec = pl.BlockSpec((1, tq, d_model), lambda i, j: (i, j, 0))
        return pl.pallas_call(
            kernel,
            out_shape=jax.ShapeDtypeStruct((b, nq, d_model), queries.dtype),
            grid_spec=pltpu.PrefetchScalarGridSpec(
                num_scalar_prefetch=0,
                grid=grid,
                in_specs=in_specs,
                out_specs=out_spec,
                scratch_shapes=[pltpu.VMEM((nk, h * d_k), bf16),    # projected K cache
                                pltpu.VMEM((nk, h * d_v), bf16)],   # projected V cache
            ),
            compiler_params=pltpu.CompilerParams(
                # nq axis carries the kp/vp scratch cache -> must be "arbitrary".
                dimension_semantics=("parallel", "arbitrary"),
                vmem_limit_bytes=vmem_limit),
        )

    args = (queries, keys, values, box,
            wq16, bq_s, wk16, bk, wv16, bv, wo16, bo, gamma, beta)
    try:
        return build(True)(*args)
    except Exception:
        # Fallback if this JAX build rejects pl.Buffered(1) single-buffering.
        return build(False)(*args)


def _xavier_uniform(key, fan_out, fan_in):
    # torch.nn.init.xavier_uniform_ on a (fan_out, fan_in) weight
    bound = math.sqrt(6.0 / (fan_in + fan_out))
    w = jax.random.uniform(key, (fan_out, fan_in), jnp.float32, -bound, bound)
    return w.T  # store transposed as (in, out) so the kernel does x @ W


def _reference(queries, keys, values, box, params, *, h, d_k, d_v):
    # pure-JAX f32 reference mirroring the PyTorch forward (eval mode)
    (wq, bq, wk, bk, wv, bv, wo, bo, gamma, beta) = params
    b, nq, d_model = queries.shape
    nk = keys.shape[1]
    q = (queries @ wq + bq).reshape(b, nq, h, d_k).transpose(0, 2, 1, 3)
    k = (keys @ wk + bk).reshape(b, nk, h, d_k).transpose(0, 2, 3, 1)
    v = (values @ wv + bv).reshape(b, nk, h, d_v).transpose(0, 2, 1, 3)
    att = jnp.matmul(q, k) / math.sqrt(d_k)
    w_mn = jnp.log(jnp.maximum(box, 1e-6)) + att
    w_mn = jax.nn.softmax(w_mn, axis=-1)
    out = jnp.matmul(w_mn, v).transpose(0, 2, 1, 3).reshape(b, nq, h * d_v)
    out = out @ wo + bo
    x = queries + out
    mean = jnp.mean(x, axis=-1, keepdims=True)
    var = jnp.mean((x - mean) ** 2, axis=-1, keepdims=True)
    return (x - mean) * jax.lax.rsqrt(var + 1e-5) * gamma + beta


if __name__ == "__main__":
    # small shapes: batch=2, nq=nk=8, d_model=32, h=4, d_k=d_v=8
    B, NQ, NK, D_MODEL, H, D_K, D_V = 2, 8, 8, 32, 4, 8, 8

    key = jax.random.PRNGKey(0)
    k_q, k_k, k_v, k_box, k_wq, k_wk, k_wv, k_wo = jax.random.split(key, 8)

    queries = jax.random.normal(k_q, (B, NQ, D_MODEL), jnp.float32)
    keys = jax.random.normal(k_k, (B, NK, D_MODEL), jnp.float32)
    values = jax.random.normal(k_v, (B, NK, D_MODEL), jnp.float32)
    # geometric / box relation embedding: non-negative weights
    box = jax.random.uniform(k_box, (B, H, NQ, NK), jnp.float32, 0.0, 1.0)

    # deterministic parameter init (matches module __init__ shapes; biases = 0)
    wq = _xavier_uniform(k_wq, H * D_K, D_MODEL)        # (d_model, h*d_k)
    wk = _xavier_uniform(k_wk, H * D_K, D_MODEL)
    wv = _xavier_uniform(k_wv, H * D_V, D_MODEL)
    wo = _xavier_uniform(k_wo, D_MODEL, H * D_V)        # (h*d_v, d_model)
    bq = jnp.zeros((1, H * D_K), jnp.float32)
    bk = jnp.zeros((1, H * D_K), jnp.float32)
    bv = jnp.zeros((1, H * D_V), jnp.float32)
    bo = jnp.zeros((1, D_MODEL), jnp.float32)
    gamma = jnp.ones((1, D_MODEL), jnp.float32)         # LayerNorm weight
    beta = jnp.zeros((1, D_MODEL), jnp.float32)         # LayerNorm bias

    params = (wq, bq, wk, bk, wv, bv, wo, bo, gamma, beta)

    out = multi_head_box_attention(queries, keys, values, box, params,
                                   h=H, d_k=D_K, d_v=D_V)
    out = jax.block_until_ready(out)

    ref = _reference(queries, keys, values, box, params, h=H, d_k=D_K, d_v=D_V)
    assert out.shape == (B, NQ, D_MODEL)
    # bf16 MXU operands + approximate softmax reciprocal vs. the f32 reference
    assert jnp.allclose(out, ref, atol=6e-2, rtol=6e-2), "mismatch vs JAX reference"

    print("KERNEL_OK")
</pallas_src>

<mosaic_0001>
module attributes {stable_mosaic.version = 11 : i64} {
  func.func @kernel(%arg0: i32, %arg1: i32, %arg2: memref<1x8x32xf32, #tpu.memory_space<vmem>>, %arg3: memref<1x8x32xf32, #tpu.memory_space<vmem>>, %arg4: memref<1x8x32xf32, #tpu.memory_space<vmem>>, %arg5: memref<1x4x8x8xf32, #tpu.memory_space<vmem>>, %arg6: memref<32x32xbf16, #tpu.memory_space<vmem>>, %arg7: memref<1x32xf32, #tpu.memory_space<vmem>>, %arg8: memref<32x32xbf16, #tpu.memory_space<vmem>>, %arg9: memref<1x32xf32, #tpu.memory_space<vmem>>, %arg10: memref<32x32xbf16, #tpu.memory_space<vmem>>, %arg11: memref<1x32xf32, #tpu.memory_space<vmem>>, %arg12: memref<32x32xbf16, #tpu.memory_space<vmem>>, %arg13: memref<1x32xf32, #tpu.memory_space<vmem>>, %arg14: memref<1x32xf32, #tpu.memory_space<vmem>>, %arg15: memref<1x32xf32, #tpu.memory_space<vmem>>, %arg16: memref<1x8x32xf32, #tpu.memory_space<vmem>>, %arg17: memref<8x32xbf16, #tpu.memory_space<vmem>>, %arg18: memref<8x32xbf16, #tpu.memory_space<vmem>>) attributes {dimension_semantics = [#tpu.dimension_semantics<parallel>, #tpu.dimension_semantics<arbitrary>], iteration_bounds = array<i64: 2, 1>, scalar_prefetch = 0 : i64, scratch_operands = 2 : i64, tpu.core_type = #tpu.core_type<tc>, window_params = [{transform_indices = @transform_0, window_bounds = array<i64: 1, 8, 32>}, {transform_indices = @transform_1, window_bounds = array<i64: 1, 8, 32>}, {transform_indices = @transform_2, window_bounds = array<i64: 1, 8, 32>}, {transform_indices = @transform_3, window_bounds = array<i64: 1, 4, 8, 8>}, {pipeline_mode = #tpu.pipeline_mode<synchronous>, transform_indices = @transform_4, window_bounds = array<i64: 32, 32>}, {pipeline_mode = #tpu.pipeline_mode<synchronous>, transform_indices = @transform_5, window_bounds = array<i64: 1, 32>}, {pipeline_mode = #tpu.pipeline_mode<synchronous>, transform_indices = @transform_6, window_bounds = array<i64: 32, 32>}, {pipeline_mode = #tpu.pipeline_mode<synchronous>, transform_indices = @transform_7, window_bounds = array<i64: 1, 32>}, {pipeline_mode = #tpu.pipeline_mode<synchronous>, transform_indices = @transform_8, window_bounds = array<i64: 32, 32>}, {pipeline_mode = #tpu.pipeline_mode<synchronous>, transform_indices = @transform_9, window_bounds = array<i64: 1, 32>}, {pipeline_mode = #tpu.pipeline_mode<synchronous>, transform_indices = @transform_10, window_bounds = array<i64: 32, 32>}, {pipeline_mode = #tpu.pipeline_mode<synchronous>, transform_indices = @transform_11, window_bounds = array<i64: 1, 32>}, {pipeline_mode = #tpu.pipeline_mode<synchronous>, transform_indices = @transform_12, window_bounds = array<i64: 1, 32>}, {pipeline_mode = #tpu.pipeline_mode<synchronous>, transform_indices = @transform_13, window_bounds = array<i64: 1, 32>}, {transform_indices = @transform_14, window_bounds = array<i64: 1, 8, 32>}]} {
    %c0_i32 = arith.constant 0 : i32
    %0 = arith.cmpi eq, %arg1, %c0_i32 : i32
    %1 = arith.extui %0 : i1 to i32
    %c0_i32_0 = arith.constant 0 : i32
    %2 = arith.cmpi ne, %1, %c0_i32_0 : i32
    scf.if %2 {
      %c0_61 = arith.constant 0 : index
      %c0_62 = arith.constant 0 : index
      %c0_63 = arith.constant 0 : index
      %137 = vector.load %arg3[%c0_61, %c0_62, %c0_63] : memref<1x8x32xf32, #tpu.memory_space<vmem>>, vector<1x8x32xf32>
      %138 = vector.shape_cast %137 : vector<1x8x32xf32> to vector<8x32xf32>
      %139 = arith.truncf %138 : vector<8x32xf32> to vector<8x32xbf16>
      %c0_64 = arith.constant 0 : index
      %c0_65 = arith.constant 0 : index
      %c0_66 = arith.constant 0 : index
      %140 = vector.load %arg4[%c0_64, %c0_65, %c0_66] : memref<1x8x32xf32, #tpu.memory_space<vmem>>, vector<1x8x32xf32>
      %141 = vector.shape_cast %140 : vector<1x8x32xf32> to vector<8x32xf32>
      %142 = arith.truncf %141 : vector<8x32xf32> to vector<8x32xbf16>
      %c0_67 = arith.constant 0 : index
      %c0_68 = arith.constant 0 : index
      %143 = vector.load %arg8[%c0_67, %c0_68] : memref<32x32xbf16, #tpu.memory_space<vmem>>, vector<32x32xbf16>
      %cst_69 = arith.constant dense<0.000000e+00> : vector<8x32xf32>
      %144 = tpu.matmul %139, %143, %cst_69 {dimension_numbers = #tpu.dot_dimension_numbers<[1], [0], [0], [1], [0, 0, 1, 1], [], []>} : vector<8x32xbf16>, vector<32x32xbf16>, vector<8x32xf32> -> vector<8x32xf32>
      %c0_70 = arith.constant 0 : index
      %c0_71 = arith.constant 0 : index
      %145 = vector.load %arg9[%c0_70, %c0_71] : memref<1x32xf32, #tpu.memory_space<vmem>>, vector<1x32xf32>
      %146 = vector.broadcast %145 : vector<1x32xf32> to vector<8x32xf32>
      %147 = arith.addf %144, %146 : vector<8x32xf32>
      %148 = arith.truncf %147 : vector<8x32xf32> to vector<8x32xbf16>
      %c0_72 = arith.constant 0 : index
      %c0_73 = arith.constant 0 : index
      %149 = vector.load %arg17[%c0_72, %c0_73] : memref<8x32xbf16, #tpu.memory_space<vmem>>, vector<8x32xbf16>
      tpu.vector_store %arg17[%c0_72, %c0_73], %148 {strides = array<i32>} : memref<8x32xbf16, #tpu.memory_space<vmem>>, vector<8x32xbf16>,
      %c0_74 = arith.constant 0 : index
      %c0_75 = arith.constant 0 : index
      %150 = vector.load %arg10[%c0_74, %c0_75] : memref<32x32xbf16, #tpu.memory_space<vmem>>, vector<32x32xbf16>
      %cst_76 = arith.constant dense<0.000000e+00> : vector<8x32xf32>
      %151 = tpu.matmul %142, %150, %cst_76 {dimension_numbers = #tpu.dot_dimension_numbers<[1], [0], [0], [1], [0, 0, 1, 1], [], []>} : vector<8x32xbf16>, vector<32x32xbf16>, vector<8x32xf32> -> vector<8x32xf32>
      %c0_77 = arith.constant 0 : index
      %c0_78 = arith.constant 0 : index
      %152 = vector.load %arg11[%c0_77, %c0_78] : memref<1x32xf32, #tpu.memory_space<vmem>>, vector<1x32xf32>
      %153 = vector.broadcast %152 : vector<1x32xf32> to vector<8x32xf32>
      %154 = arith.addf %151, %153 : vector<8x32xf32>
      %155 = arith.truncf %154 : vector<8x32xf32> to vector<8x32xbf16>
      %c0_79 = arith.constant 0 : index
      %c0_80 = arith.constant 0 : index
      %156 = vector.load %arg18[%c0_79, %c0_80] : memref<8x32xbf16, #tpu.memory_space<vmem>>, vector<8x32xbf16>
      tpu.vector_store %arg18[%c0_79, %c0_80], %155 {strides = array<i32>} : memref<8x32xbf16, #tpu.memory_space<vmem>>, vector<8x32xbf16>,
    } else {
    }
    %c0 = arith.constant 0 : index
    %c0_1 = arith.constant 0 : index
    %c0_2 = arith.constant 0 : index
    %3 = vector.load %arg2[%c0, %c0_1, %c0_2] : memref<1x8x32xf32, #tpu.memory_space<vmem>>, vector<1x8x32xf32>
    %4 = vector.shape_cast %3 : vector<1x8x32xf32> to vector<8x32xf32>
    %5 = arith.truncf %4 : vector<8x32xf32> to vector<8x32xbf16>
    %c0_3 = arith.constant 0 : index
    %c0_4 = arith.constant 0 : index
    %6 = vector.load %arg6[%c0_3, %c0_4] : memref<32x32xbf16, #tpu.memory_space<vmem>>, vector<32x32xbf16>
    %cst = arith.constant dense<0.000000e+00> : vector<8x32xf32>
    %7 = tpu.matmul %5, %6, %cst {dimension_numbers = #tpu.dot_dimension_numbers<[1], [0], [0], [1], [0, 0, 1, 1], [], []>} : vector<8x32xbf16>, vector<32x32xbf16>, vector<8x32xf32> -> vector<8x32xf32>
    %c0_5 = arith.constant 0 : index
    %c0_6 = arith.constant 0 : index
    %8 = vector.load %arg7[%c0_5, %c0_6] : memref<1x32xf32, #tpu.memory_space<vmem>>, vector<1x32xf32>
    %9 = vector.broadcast %8 : vector<1x32xf32> to vector<8x32xf32>
    %10 = arith.addf %7, %9 : vector<8x32xf32>
    %11 = arith.truncf %10 : vector<8x32xf32> to vector<8x32xbf16>
    %c0_7 = arith.constant 0 : index
    %c0_8 = arith.constant 0 : index
    %12 = vector.load %arg17[%c0_7, %c0_8] : memref<8x32xbf16, #tpu.memory_space<vmem>>, vector<8x32xbf16>
    %c0_9 = arith.constant 0 : index
    %c0_10 = arith.constant 0 : index
    %13 = vector.load %arg18[%c0_9, %c0_10] : memref<8x32xbf16, #tpu.memory_space<vmem>>, vector<8x32xbf16>
    %14 = vector.extract_strided_slice %11 {offsets = [0, 0], sizes = [8, 8], strides = [1, 1]} : vector<8x32xbf16> to vector<8x8xbf16>
    %15 = vector.extract_strided_slice %12 {offsets = [0, 0], sizes = [8, 8], strides = [1, 1]} : vector<8x32xbf16> to vector<8x8xbf16>
    %16 = vector.extract_strided_slice %13 {offsets = [0, 0], sizes = [8, 8], strides = [1, 1]} : vector<8x32xbf16> to vector<8x8xbf16>
    %cst_11 = arith.constant dense<0.000000e+00> : vector<8x8xf32>
    %17 = tpu.matmul %14, %15, %cst_11 {dimension_numbers = #tpu.dot_dimension_numbers<[1], [1], [0], [0], [0, 0, 1, 0], [], []>} : vector<8x8xbf16>, vector<8x8xbf16>, vector<8x8xf32> -> vector<8x8xf32>
    %c0_12 = arith.constant 0 : index
    %c0_13 = arith.constant 0 : index
    %c0_14 = arith.constant 0 : index
    %c0_15 = arith.constant 0 : index
    %18 = vector.load %arg5[%c0_12, %c0_13, %c0_14, %c0_15] : memref<1x4x8x8xf32, #tpu.memory_space<vmem>>, vector<1x1x8x8xf32>
    %19 = vector.shape_cast %18 : vector<1x1x8x8xf32> to vector<8x8xf32>
    %cst_16 = arith.constant 9.99999997E-7 : f32
    %20 = vector.broadcast %cst_16 : f32 to vector<8x8xf32>
    %21 = arith.maximumf %19, %20 : vector<8x8xf32>
    %22 = math.log %21 : vector<8x8xf32>
    %23 = arith.addf %22, %17 : vector<8x8xf32>
    %cst_17 = arith.constant dense<0xFF800000> : vector<8xf32>
    %24 = vector.multi_reduction <maximumf>, %23, %cst_17 [1] : vector<8x8xf32> to vector<8xf32>
    %25 = vector.shape_cast %24 : vector<8xf32> to vector<8x1xf32>
    %26 = vector.broadcast %25 : vector<8x1xf32> to vector<8x8xf32>
    %27 = arith.subf %23, %26 : vector<8x8xf32>
    %28 = math.exp %27 : vector<8x8xf32>
    %cst_18 = arith.constant dense<0.000000e+00> : vector<8xf32>
    %29 = vector.multi_reduction <add>, %28, %cst_18 [1] : vector<8x8xf32> to vector<8xf32>
    %30 = vector.shape_cast %29 : vector<8xf32> to vector<8x1xf32>
    %31 = tpu.reciprocal %30 {approx = true} : vector<8x1xf32> -> vector<8x1xf32>
    %32 = vector.broadcast %31 : vector<8x1xf32> to vector<8x8xf32>
    %33 = arith.mulf %28, %32 : vector<8x8xf32>
    %34 = arith.truncf %33 : vector<8x8xf32> to vector<8x8xbf16>
    %cst_19 = arith.constant dense<0.000000e+00> : vector<8x8xf32>
    %35 = tpu.matmul %34, %16, %cst_19 {dimension_numbers = #tpu.dot_dimension_numbers<[1], [0], [0], [1], [0, 0, 1, 1], [], []>} : vector<8x8xbf16>, vector<8x8xbf16>, vector<8x8xf32> -> vector<8x8xf32>
    %36 = vector.extract_strided_slice %11 {offsets = [0, 8], sizes = [8, 8], strides = [1, 1]} : vector<8x32xbf16> to vector<8x8xbf16>
    %37 = vector.extract_strided_slice %12 {offsets = [0, 8], sizes = [8, 8], strides = [1, 1]} : vector<8x32xbf16> to vector<8x8xbf16>
    %38 = vector.extract_strided_slice %13 {offsets = [0, 8], sizes = [8, 8], strides = [1, 1]} : vector<8x32xbf16> to vector<8x8xbf16>
    %cst_20 = arith.constant dense<0.000000e+00> : vector<8x8xf32>
    %39 = tpu.matmul %36, %37, %cst_20 {dimension_numbers = #tpu.dot_dimension_numbers<[1], [1], [0], [0], [0, 0, 1, 0], [], []>} : vector<8x8xbf16>, vector<8x8xbf16>, vector<8x8xf32> -> vector<8x8xf32>
    %c0_21 = arith.constant 0 : index
    %c1 = arith.constant 1 : index
    %c0_22 = arith.constant 0 : index
    %c0_23 = arith.constant 0 : index
    %40 = vector.load %arg5[%c0_21, %c1, %c0_22, %c0_23] : memref<1x4x8x8xf32, #tpu.memory_space<vmem>>, vector<1x1x8x8xf32>
    %41 = vector.shape_cast %40 : vector<1x1x8x8xf32> to vector<8x8xf32>
    %cst_24 = arith.constant 9.99999997E-7 : f32
    %42 = vector.broadcast %cst_24 : f32 to vector<8x8xf32>
    %43 = arith.maximumf %41, %42 : vector<8x8xf32>
    %44 = math.log %43 : vector<8x8xf32>
    %45 = arith.addf %44, %39 : vector<8x8xf32>
    %cst_25 = arith.constant dense<0xFF800000> : vector<8xf32>
    %46 = vector.multi_reduction <maximumf>, %45, %cst_25 [1] : vector<8x8xf32> to vector<8xf32>
    %47 = vector.shape_cast %46 : vector<8xf32> to vector<8x1xf32>
    %48 = vector.broadcast %47 : vector<8x1xf32> to vector<8x8xf32>
    %49 = arith.subf %45, %48 : vector<8x8xf32>
    %50 = math.exp %49 : vector<8x8xf32>
    %cst_26 = arith.constant dense<0.000000e+00> : vector<8xf32>
    %51 = vector.multi_reduction <add>, %50, %cst_26 [1] : vector<8x8xf32> to vector<8xf32>
    %52 = vector.shape_cast %51 : vector<8xf32> to vector<8x1xf32>
    %53 = tpu.reciprocal %52 {approx = true} : vector<8x1xf32> -> vector<8x1xf32>
    %54 = vector.broadcast %53 : vector<8x1xf32> to vector<8x8xf32>
    %55 = arith.mulf %50, %54 : vector<8x8xf32>
    %56 = arith.truncf %55 : vector<8x8xf32> to vector<8x8xbf16>
    %cst_27 = arith.constant dense<0.000000e+00> : vector<8x8xf32>
    %57 = tpu.matmul %56, %38, %cst_27 {dimension_numbers = #tpu.dot_dimension_numbers<[1], [0], [0], [1], [0, 0, 1, 1], [], []>} : vector<8x8xbf16>, vector<8x8xbf16>, vector<8x8xf32> -> vector<8x8xf32>
    %58 = vector.extract_strided_slice %11 {offsets = [0, 16], sizes = [8, 8], strides = [1, 1]} : vector<8x32xbf16> to vector<8x8xbf16>
    %59 = vector.extract_strided_slice %12 {offsets = [0, 16], sizes = [8, 8], strides = [1, 1]} : vector<8x32xbf16> to vector<8x8xbf16>
    %60 = vector.extract_strided_slice %13 {offsets = [0, 16], sizes = [8, 8], strides = [1, 1]} : vector<8x32xbf16> to vector<8x8xbf16>
    %cst_28 = arith.constant dense<0.000000e+00> : vector<8x8xf32>
    %61 = tpu.matmul %58, %59, %cst_28 {dimension_numbers = #tpu.dot_dimension_numbers<[1], [1], [0], [0], [0, 0, 1, 0], [], []>} : vector<8x8xbf16>, vector<8x8xbf16>, vector<8x8xf32> -> vector<8x8xf32>
    %c0_29 = arith.constant 0 : index
    %c2 = arith.constant 2 : index
    %c0_30 = arith.constant 0 : index
    %c0_31 = arith.constant 0 : index
    %62 = vector.load %arg5[%c0_29, %c2, %c0_30, %c0_31] : memref<1x4x8x8xf32, #tpu.memory_space<vmem>>, vector<1x1x8x8xf32>
    %63 = vector.shape_cast %62 : vector<1x1x8x8xf32> to vector<8x8xf32>
    %cst_32 = arith.constant 9.99999997E-7 : f32
    %64 = vector.broadcast %cst_32 : f32 to vector<8x8xf32>
    %65 = arith.maximumf %63, %64 : vector<8x8xf32>
    %66 = math.log %65 : vector<8x8xf32>
    %67 = arith.addf %66, %61 : vector<8x8xf32>
    %cst_33 = arith.constant dense<0xFF800000> : vector<8xf32>
    %68 = vector.multi_reduction <maximumf>, %67, %cst_33 [1] : vector<8x8xf32> to vector<8xf32>
    %69 = vector.shape_cast %68 : vector<8xf32> to vector<8x1xf32>
    %70 = vector.broadcast %69 : vector<8x1xf32> to vector<8x8xf32>
    %71 = arith.subf %67, %70 : vector<8x8xf32>
    %72 = math.exp %71 : vector<8x8xf32>
    %cst_34 = arith.constant dense<0.000000e+00> : vector<8xf32>
    %73 = vector.multi_reduction <add>, %72, %cst_34 [1] : vector<8x8xf32> to vector<8xf32>
    %74 = vector.shape_cast %73 : vector<8xf32> to vector<8x1xf32>
    %75 = tpu.reciprocal %74 {approx = true} : vector<8x1xf32> -> vector<8x1xf32>
    %76 = vector.broadcast %75 : vector<8x1xf32> to vector<8x8xf32>
    %77 = arith.mulf %72, %76 : vector<8x8xf32>
    %78 = arith.truncf %77 : vector<8x8xf32> to vector<8x8xbf16>
    %cst_35 = arith.constant dense<0.000000e+00> : vector<8x8xf32>
    %79 = tpu.matmul %78, %60, %cst_35 {dimension_numbers = #tpu.dot_dimension_numbers<[1], [0], [0], [1], [0, 0, 1, 1], [], []>} : vector<8x8xbf16>, vector<8x8xbf16>, vector<8x8xf32> -> vector<8x8xf32>
    %80 = vector.extract_strided_slice %11 {offsets = [0, 24], sizes = [8, 8], strides = [1, 1]} : vector<8x32xbf16> to vector<8x8xbf16>
    %81 = vector.extract_strided_slice %12 {offsets = [0, 24], sizes = [8, 8], strides = [1, 1]} : vector<8x32xbf16> to vector<8x8xbf16>
    %82 = vector.extract_strided_slice %13 {offsets = [0, 24], sizes = [8, 8], strides = [1, 1]} : vector<8x32xbf16> to vector<8x8xbf16>
    %cst_36 = arith.constant dense<0.000000e+00> : vector<8x8xf32>
    %83 = tpu.matmul %80, %81, %cst_36 {dimension_numbers = #tpu.dot_dimension_numbers<[1], [1], [0], [0], [0, 0, 1, 0], [], []>} : vector<8x8xbf16>, vector<8x8xbf16>, vector<8x8xf32> -> vector<8x8xf32>
    %c0_37 = arith.constant 0 : index
    %c3 = arith.constant 3 : index
    %c0_38 = arith.constant 0 : index
    %c0_39 = arith.constant 0 : index
    %84 = vector.load %arg5[%c0_37, %c3, %c0_38, %c0_39] : memref<1x4x8x8xf32, #tpu.memory_space<vmem>>, vector<1x1x8x8xf32>
    %85 = vector.shape_cast %84 : vector<1x1x8x8xf32> to vector<8x8xf32>
    %cst_40 = arith.constant 9.99999997E-7 : f32
    %86 = vector.broadcast %cst_40 : f32 to vector<8x8xf32>
    %87 = arith.maximumf %85, %86 : vector<8x8xf32>
    %88 = math.log %87 : vector<8x8xf32>
    %89 = arith.addf %88, %83 : vector<8x8xf32>
    %cst_41 = arith.constant dense<0xFF800000> : vector<8xf32>
    %90 = vector.multi_reduction <maximumf>, %89, %cst_41 [1] : vector<8x8xf32> to vector<8xf32>
    %91 = vector.shape_cast %90 : vector<8xf32> to vector<8x1xf32>
    %92 = vector.broadcast %91 : vector<8x1xf32> to vector<8x8xf32>
    %93 = arith.subf %89, %92 : vector<8x8xf32>
    %94 = math.exp %93 : vector<8x8xf32>
    %cst_42 = arith.constant dense<0.000000e+00> : vector<8xf32>
    %95 = vector.multi_reduction <add>, %94, %cst_42 [1] : vector<8x8xf32> to vector<8xf32>
    %96 = vector.shape_cast %95 : vector<8xf32> to vector<8x1xf32>
    %97 = tpu.reciprocal %96 {approx = true} : vector<8x1xf32> -> vector<8x1xf32>
    %98 = vector.broadcast %97 : vector<8x1xf32> to vector<8x8xf32>
    %99 = arith.mulf %94, %98 : vector<8x8xf32>
    %100 = arith.truncf %99 : vector<8x8xf32> to vector<8x8xbf16>
    %cst_43 = arith.constant dense<0.000000e+00> : vector<8x8xf32>
    %101 = tpu.matmul %100, %82, %cst_43 {dimension_numbers = #tpu.dot_dimension_numbers<[1], [0], [0], [1], [0, 0, 1, 1], [], []>} : vector<8x8xbf16>, vector<8x8xbf16>, vector<8x8xf32> -> vector<8x8xf32>
    %102 = tpu.concatenate %35, %57, %79, %101 in 1 : vector<8x8xf32>, vector<8x8xf32>, vector<8x8xf32>, vector<8x8xf32> -> vector<8x32xf32>
    %103 = arith.truncf %102 : vector<8x32xf32> to vector<8x32xbf16>
    %c0_44 = arith.constant 0 : index
    %c0_45 = arith.constant 0 : index
    %104 = vector.load %arg12[%c0_44, %c0_45] : memref<32x32xbf16, #tpu.memory_space<vmem>>, vector<32x32xbf16>
    %cst_46 = arith.constant dense<0.000000e+00> : vector<8x32xf32>
    %105 = tpu.matmul %103, %104, %cst_46 {dimension_numbers = #tpu.dot_dimension_numbers<[1], [0], [0], [1], [0, 0, 1, 1], [], []>} : vector<8x32xbf16>, vector<32x32xbf16>, vector<8x32xf32> -> vector<8x32xf32>
    %c0_47 = arith.constant 0 : index
    %c0_48 = arith.constant 0 : index
    %106 = vector.load %arg13[%c0_47, %c0_48] : memref<1x32xf32, #tpu.memory_space<vmem>>, vector<1x32xf32>
    %107 = vector.broadcast %106 : vector<1x32xf32> to vector<8x32xf32>
    %108 = arith.addf %105, %107 : vector<8x32xf32>
    %109 = arith.addf %4, %108 : vector<8x32xf32>
    %cst_49 = arith.constant dense<0.000000e+00> : vector<8xf32>
    %110 = vector.multi_reduction <add>, %109, %cst_49 [1] : vector<8x32xf32> to vector<8xf32>
    %111 = vector.shape_cast %110 : vector<8xf32> to vector<8x1xf32>
    %cst_50 = arith.constant 3.200000e+01 : f32
    %112 = vector.broadcast %cst_50 : f32 to vector<8x1xf32>
    %113 = arith.divf %111, %112 : vector<8x1xf32>
    %114 = vector.broadcast %113 : vector<8x1xf32> to vector<8x32xf32>
    %115 = arith.subf %109, %114 : vector<8x32xf32>
    %116 = arith.mulf %115, %115 : vector<8x32xf32>
    %cst_51 = arith.constant dense<0.000000e+00> : vector<8xf32>
    %117 = vector.multi_reduction <add>, %116, %cst_51 [1] : vector<8x32xf32> to vector<8xf32>
    %118 = vector.shape_cast %117 : vector<8xf32> to vector<8x1xf32>
    %cst_52 = arith.constant 3.200000e+01 : f32
    %119 = vector.broadcast %cst_52 : f32 to vector<8x1xf32>
    %120 = arith.divf %118, %119 : vector<8x1xf32>
    %121 = vector.broadcast %113 : vector<8x1xf32> to vector<8x32xf32>
    %122 = arith.subf %109, %121 : vector<8x32xf32>
    %cst_53 = arith.constant 9.99999974E-6 : f32
    %123 = vector.broadcast %cst_53 : f32 to vector<8x1xf32>
    %124 = arith.addf %120, %123 : vector<8x1xf32>
    %125 = math.rsqrt %124 : vector<8x1xf32>
    %126 = vector.broadcast %125 : vector<8x1xf32> to vector<8x32xf32>
    %127 = arith.mulf %122, %126 : vector<8x32xf32>
    %c0_54 = arith.constant 0 : index
    %c0_55 = arith.constant 0 : index
    %128 = vector.load %arg14[%c0_54, %c0_55] : memref<1x32xf32, #tpu.memory_space<vmem>>, vector<1x32xf32>
    %129 = vector.broadcast %128 : vector<1x32xf32> to vector<8x32xf32>
    %130 = arith.mulf %127, %129 : vector<8x32xf32>
    %c0_56 = arith.constant 0 : index
    %c0_57 = arith.constant 0 : index
    %131 = vector.load %arg15[%c0_56, %c0_57] : memref<1x32xf32, #tpu.memory_space<vmem>>, vector<1x32xf32>
    %132 = vector.broadcast %131 : vector<1x32xf32> to vector<8x32xf32>
    %133 = arith.addf %130, %132 : vector<8x32xf32>
    %c0_58 = arith.constant 0 : index
    %c0_59 = arith.constant 0 : index
    %c0_60 = arith.constant 0 : index
    %134 = vector.load %arg16[%c0_58, %c0_59, %c0_60] : memref<1x8x32xf32, #tpu.memory_space<vmem>>, vector<1x8x32xf32>
    %135 = vector.shape_cast %134 : vector<1x8x32xf32> to vector<8x32xf32>
    %136 = vector.shape_cast %133 : vector<8x32xf32> to vector<1x8x32xf32>
    tpu.vector_store %arg16[%c0_58, %c0_59, %c0_60], %136 {strides = array<i32>} : memref<1x8x32xf32, #tpu.memory_space<vmem>>, vector<1x8x32xf32>,
    return
  }
  func.func @transform_0(%arg0: i32, %arg1: i32) -> (i32, i32, i32) {
    %c0_i32 = arith.constant 0 : i32
    %c0_i32_0 = arith.constant 0 : i32
    return %arg0, %arg1, %c0_i32 : i32, i32, i32
  }
  func.func @transform_1(%arg0: i32, %arg1: i32) -> (i32, i32, i32) {
    %c0_i32 = arith.constant 0 : i32
    %c0_i32_0 = arith.constant 0 : i32
    %c0_i32_1 = arith.constant 0 : i32
    return %arg0, %c0_i32, %c0_i32_0 : i32, i32, i32
  }
  func.func @transform_2(%arg0: i32, %arg1: i32) -> (i32, i32, i32) {
    %c0_i32 = arith.constant 0 : i32
    %c0_i32_0 = arith.constant 0 : i32
    %c0_i32_1 = arith.constant 0 : i32
    return %arg0, %c0_i32, %c0_i32_0 : i32, i32, i32
  }
  func.func @transform_3(%arg0: i32, %arg1: i32) -> (i32, i32, i32, i32) {
    %c0_i32 = arith.constant 0 : i32
    %c0_i32_0 = arith.constant 0 : i32
    %c0_i32_1 = arith.constant 0 : i32
    return %arg0, %c0_i32, %arg1, %c0_i32_0 : i32, i32, i32, i32
  }
  func.func @transform_4(%arg0: i32, %arg1: i32) -> (i32, i32) {
    %c0_i32 = arith.constant 0 : i32
    %c0_i32_0 = arith.constant 0 : i32
    %c0_i32_1 = arith.constant 0 : i32
    return %c0_i32, %c0_i32_0 : i32, i32
  }
  func.func @transform_5(%arg0: i32, %arg1: i32) -> (i32, i32) {
    %c0_i32 = arith.constant 0 : i32
    %c0_i32_0 = arith.constant 0 : i32
    %c0_i32_1 = arith.constant 0 : i32
    return %c0_i32, %c0_i32_0 : i32, i32
  }
  func.func @transform_6(%arg0: i32, %arg1: i32) -> (i32, i32) {
    %c0_i32 = arith.constant 0 : i32
    %c0_i32_0 = arith.constant 0 : i32
    %c0_i32_1 = arith.constant 0 : i32
    return %c0_i32, %c0_i32_0 : i32, i32
  }
  func.func @transform_7(%arg0: i32, %arg1: i32) -> (i32, i32) {
    %c0_i32 = arith.constant 0 : i32
    %c0_i32_0 = arith.constant 0 : i32
    %c0_i32_1 = arith.constant 0 : i32
    return %c0_i32, %c0_i32_0 : i32, i32
  }
  func.func @transform_8(%arg0: i32, %arg1: i32) -> (i32, i32) {
    %c0_i32 = arith.constant 0 : i32
    %c0_i32_0 = arith.constant 0 : i32
    %c0_i32_1 = arith.constant 0 : i32
    return %c0_i32, %c0_i32_0 : i32, i32
  }
  func.func @transform_9(%arg0: i32, %arg1: i32) -> (i32, i32) {
    %c0_i32 = arith.constant 0 : i32
    %c0_i32_0 = arith.constant 0 : i32
    %c0_i32_1 = arith.constant 0 : i32
    return %c0_i32, %c0_i32_0 : i32, i32
  }
  func.func @transform_10(%arg0: i32, %arg1: i32) -> (i32, i32) {
    %c0_i32 = arith.constant 0 : i32
    %c0_i32_0 = arith.constant 0 : i32
    %c0_i32_1 = arith.constant 0 : i32
    return %c0_i32, %c0_i32_0 : i32, i32
  }
  func.func @transform_11(%arg0: i32, %arg1: i32) -> (i32, i32) {
    %c0_i32 = arith.constant 0 : i32
    %c0_i32_0 = arith.constant 0 : i32
    %c0_i32_1 = arith.constant 0 : i32
    return %c0_i32, %c0_i32_0 : i32, i32
  }
  func.func @transform_12(%arg0: i32, %arg1: i32) -> (i32, i32) {
    %c0_i32 = arith.constant 0 : i32
    %c0_i32_0 = arith.constant 0 : i32
    %c0_i32_1 = arith.constant 0 : i32
    return %c0_i32, %c0_i32_0 : i32, i32
  }
  func.func @transform_13(%arg0: i32, %arg1: i32) -> (i32, i32) {
    %c0_i32 = arith.constant 0 : i32
    %c0_i32_0 = arith.constant 0 : i32
    %c0_i32_1 = arith.constant 0 : i32
    return %c0_i32, %c0_i32_0 : i32, i32
  }
  func.func @transform_14(%arg0: i32, %arg1: i32) -> (i32, i32, i32) {
    %c0_i32 = arith.constant 0 : i32
    %c0_i32_0 = arith.constant 0 : i32
    return %arg0, %arg1, %c0_i32 : i32, i32, i32
  }
}

module attributes {stable_mosaic.version = 11 : i64} {
  func.func @kernel(%arg0: i32, %arg1: i32, %arg2: memref<1x8x32xf32, #tpu.memory_space<vmem>>, %arg3: memref<1x8x32xf32, #tpu.memory_space<vmem>>, %arg4: memref<1x8x32xf32, #tpu.memory_space<vmem>>, %arg5: memref<1x4x8x8xf32, #tpu.memory_space<vmem>>, %arg6: memref<32x32xbf16, #tpu.memory_space<vmem>>, %arg7: memref<1x32xf32, #tpu.memory_space<vmem>>, %arg8: memref<32x32xbf16, #tpu.memory_space<vmem>>, %arg9: memref<1x32xf32, #tpu.memory_space<vmem>>, %arg10: memref<32x32xbf16, #tpu.memory_space<vmem>>, %arg11: memref<1x32xf32, #tpu.memory_space<vmem>>, %arg12: memref<32x32xbf16, #tpu.memory_space<vmem>>, %arg13: memref<1x32xf32, #tpu.memory_space<vmem>>, %arg14: memref<1x32xf32, #tpu.memory_space<vmem>>, %arg15: memref<1x32xf32, #tpu.memory_space<vmem>>, %arg16: memref<1x8x32xf32, #tpu.memory_space<vmem>>, %arg17: memref<8x32xbf16, #tpu.memory_space<vmem>>, %arg18: memref<8x32xbf16, #tpu.memory_space<vmem>>) attributes {dimension_semantics = [#tpu.dimension_semantics<parallel>, #tpu.dimension_semantics<arbitrary>], iteration_bounds = array<i64: 2, 1>, scalar_prefetch = 0 : i64, scratch_operands = 2 : i64, tpu.core_type = #tpu.core_type<tc>, window_params = [{transform_indices = @transform_0, window_bounds = array<i64: 1, 8, 32>}, {transform_indices = @transform_1, window_bounds = array<i64: 1, 8, 32>}, {transform_indices = @transform_2, window_bounds = array<i64: 1, 8, 32>}, {transform_indices = @transform_3, window_bounds = array<i64: 1, 4, 8, 8>}, {pipeline_mode = #tpu.pipeline_mode<synchronous>, transform_indices = @transform_4, window_bounds = array<i64: 32, 32>}, {pipeline_mode = #tpu.pipeline_mode<synchronous>, transform_indices = @transform_5, window_bounds = array<i64: 1, 32>}, {pipeline_mode = #tpu.pipeline_mode<synchronous>, transform_indices = @transform_6, window_bounds = array<i64: 32, 32>}, {pipeline_mode = #tpu.pipeline_mode<synchronous>, transform_indices = @transform_7, window_bounds = array<i64: 1, 32>}, {pipeline_mode = #tpu.pipeline_mode<synchronous>, transform_indices = @transform_8, window_bounds = array<i64: 32, 32>}, {pipeline_mode = #tpu.pipeline_mode<synchronous>, transform_indices = @transform_9, window_bounds = array<i64: 1, 32>}, {pipeline_mode = #tpu.pipeline_mode<synchronous>, transform_indices = @transform_10, window_bounds = array<i64: 32, 32>}, {pipeline_mode = #tpu.pipeline_mode<synchronous>, transform_indices = @transform_11, window_bounds = array<i64: 1, 32>}, {pipeline_mode = #tpu.pipeline_mode<synchronous>, transform_indices = @transform_12, window_bounds = array<i64: 1, 32>}, {pipeline_mode = #tpu.pipeline_mode<synchronous>, transform_indices = @transform_13, window_bounds = array<i64: 1, 32>}, {transform_indices = @transform_14, window_bounds = array<i64: 1, 8, 32>}]} {
    %c0_i32 = arith.constant 0 : i32
    %0 = arith.cmpi eq, %arg1, %c0_i32 : i32
    %1 = arith.extui %0 : i1 to i32
    %c0_i32_0 = arith.constant 0 : i32
    %2 = arith.cmpi ne, %1, %c0_i32_0 : i32
    scf.if %2 {
      %c0_61 = arith.constant 0 : index
      %c0_62 = arith.constant 0 : index
      %c0_63 = arith.constant 0 : index
      %137 = vector.load %arg3[%c0_61, %c0_62, %c0_63] : memref<1x8x32xf32, #tpu.memory_space<vmem>>, vector<1x8x32xf32>
      %138 = vector.shape_cast %137 : vector<1x8x32xf32> to vector<8x32xf32>
      %139 = arith.truncf %138 : vector<8x32xf32> to vector<8x32xbf16>
      %c0_64 = arith.constant 0 : index
      %c0_65 = arith.constant 0 : index
      %c0_66 = arith.constant 0 : index
      %140 = vector.load %arg4[%c0_64, %c0_65, %c0_66] : memref<1x8x32xf32, #tpu.memory_space<vmem>>, vector<1x8x32xf32>
      %141 = vector.shape_cast %140 : vector<1x8x32xf32> to vector<8x32xf32>
      %142 = arith.truncf %141 : vector<8x32xf32> to vector<8x32xbf16>
      %c0_67 = arith.constant 0 : index
      %c0_68 = arith.constant 0 : index
      %143 = vector.load %arg8[%c0_67, %c0_68] : memref<32x32xbf16, #tpu.memory_space<vmem>>, vector<32x32xbf16>
      %cst_69 = arith.constant dense<0.000000e+00> : vector<8x32xf32>
      %144 = tpu.matmul %139, %143, %cst_69 {dimension_numbers = #tpu.dot_dimension_numbers<[1], [0], [0], [1], [0, 0, 1, 1], [], []>} : vector<8x32xbf16>, vector<32x32xbf16>, vector<8x32xf32> -> vector<8x32xf32>
      %c0_70 = arith.constant 0 : index
      %c0_71 = arith.constant 0 : index
      %145 = vector.load %arg9[%c0_70, %c0_71] : memref<1x32xf32, #tpu.memory_space<vmem>>, vector<1x32xf32>
      %146 = vector.broadcast %145 : vector<1x32xf32> to vector<8x32xf32>
      %147 = arith.addf %144, %146 : vector<8x32xf32>
      %148 = arith.truncf %147 : vector<8x32xf32> to vector<8x32xbf16>
      %c0_72 = arith.constant 0 : index
      %c0_73 = arith.constant 0 : index
      %149 = vector.load %arg17[%c0_72, %c0_73] : memref<8x32xbf16, #tpu.memory_space<vmem>>, vector<8x32xbf16>
      tpu.vector_store %arg17[%c0_72, %c0_73], %148 {strides = array<i32>} : memref<8x32xbf16, #tpu.memory_space<vmem>>, vector<8x32xbf16>,
      %c0_74 = arith.constant 0 : index
      %c0_75 = arith.constant 0 : index
      %150 = vector.load %arg10[%c0_74, %c0_75] : memref<32x32xbf16, #tpu.memory_space<vmem>>, vector<32x32xbf16>
      %cst_76 = arith.constant dense<0.000000e+00> : vector<8x32xf32>
      %151 = tpu.matmul %142, %150, %cst_76 {dimension_numbers = #tpu.dot_dimension_numbers<[1], [0], [0], [1], [0, 0, 1, 1], [], []>} : vector<8x32xbf16>, vector<32x32xbf16>, vector<8x32xf32> -> vector<8x32xf32>
      %c0_77 = arith.constant 0 : index
      %c0_78 = arith.constant 0 : index
      %152 = vector.load %arg11[%c0_77, %c0_78] : memref<1x32xf32, #tpu.memory_space<vmem>>, vector<1x32xf32>
      %153 = vector.broadcast %152 : vector<1x32xf32> to vector<8x32xf32>
      %154 = arith.addf %151, %153 : vector<8x32xf32>
      %155 = arith.truncf %154 : vector<8x32xf32> to vector<8x32xbf16>
      %c0_79 = arith.constant 0 : index
      %c0_80 = arith.constant 0 : index
      %156 = vector.load %arg18[%c0_79, %c0_80] : memref<8x32xbf16, #tpu.memory_space<vmem>>, vector<8x32xbf16>
      tpu.vector_store %arg18[%c0_79, %c0_80], %155 {strides = array<i32>} : memref<8x32xbf16, #tpu.memory_space<vmem>>, vector<8x32xbf16>,
    } else {
    }
    %c0 = arith.constant 0 : index
    %c0_1 = arith.constant 0 : index
    %c0_2 = arith.constant 0 : index
    %3 = vector.load %arg2[%c0, %c0_1, %c0_2] : memref<1x8x32xf32, #tpu.memory_space<vmem>>, vector<1x8x32xf32>
    %4 = vector.shape_cast %3 : vector<1x8x32xf32> to vector<8x32xf32>
    %5 = arith.truncf %4 : vector<8x32xf32> to vector<8x32xbf16>
    %c0_3 = arith.constant 0 : index
    %c0_4 = arith.constant 0 : index
    %6 = vector.load %arg6[%c0_3, %c0_4] : memref<32x32xbf16, #tpu.memory_space<vmem>>, vector<32x32xbf16>
    %cst = arith.constant dense<0.000000e+00> : vector<8x32xf32>
    %7 = tpu.matmul %5, %6, %cst {dimension_numbers = #tpu.dot_dimension_numbers<[1], [0], [0], [1], [0, 0, 1, 1], [], []>} : vector<8x32xbf16>, vector<32x32xbf16>, vector<8x32xf32> -> vector<8x32xf32>
    %c0_5 = arith.constant 0 : index
    %c0_6 = arith.constant 0 : index
    %8 = vector.load %arg7[%c0_5, %c0_6] : memref<1x32xf32, #tpu.memory_space<vmem>>, vector<1x32xf32>
    %9 = vector.broadcast %8 : vector<1x32xf32> to vector<8x32xf32>
    %10 = arith.addf %7, %9 : vector<8x32xf32>
    %11 = arith.truncf %10 : vector<8x32xf32> to vector<8x32xbf16>
    %c0_7 = arith.constant 0 : index
    %c0_8 = arith.constant 0 : index
    %12 = vector.load %arg17[%c0_7, %c0_8] : memref<8x32xbf16, #tpu.memory_space<vmem>>, vector<8x32xbf16>
    %c0_9 = arith.constant 0 : index
    %c0_10 = arith.constant 0 : index
    %13 = vector.load %arg18[%c0_9, %c0_10] : memref<8x32xbf16, #tpu.memory_space<vmem>>, vector<8x32xbf16>
    %14 = vector.extract_strided_slice %11 {offsets = [0, 0], sizes = [8, 8], strides = [1, 1]} : vector<8x32xbf16> to vector<8x8xbf16>
    %15 = vector.extract_strided_slice %12 {offsets = [0, 0], sizes = [8, 8], strides = [1, 1]} : vector<8x32xbf16> to vector<8x8xbf16>
    %16 = vector.extract_strided_slice %13 {offsets = [0, 0], sizes = [8, 8], strides = [1, 1]} : vector<8x32xbf16> to vector<8x8xbf16>
    %cst_11 = arith.constant dense<0.000000e+00> : vector<8x8xf32>
    %17 = tpu.matmul %14, %15, %cst_11 {dimension_numbers = #tpu.dot_dimension_numbers<[1], [1], [0], [0], [0, 0, 1, 0], [], []>} : vector<8x8xbf16>, vector<8x8xbf16>, vector<8x8xf32> -> vector<8x8xf32>
    %c0_12 = arith.constant 0 : index
    %c0_13 = arith.constant 0 : index
    %c0_14 = arith.constant 0 : index
    %c0_15 = arith.constant 0 : index
    %18 = vector.load %arg5[%c0_12, %c0_13, %c0_14, %c0_15] : memref<1x4x8x8xf32, #tpu.memory_space<vmem>>, vector<1x1x8x8xf32>
    %19 = vector.shape_cast %18 : vector<1x1x8x8xf32> to vector<8x8xf32>
    %cst_16 = arith.constant 9.99999997E-7 : f32
    %20 = vector.broadcast %cst_16 : f32 to vector<8x8xf32>
    %21 = arith.maximumf %19, %20 : vector<8x8xf32>
    %22 = math.log %21 : vector<8x8xf32>
    %23 = arith.addf %22, %17 : vector<8x8xf32>
    %cst_17 = arith.constant dense<0xFF800000> : vector<8xf32>
    %24 = vector.multi_reduction <maximumf>, %23, %cst_17 [1] : vector<8x8xf32> to vector<8xf32>
    %25 = vector.shape_cast %24 : vector<8xf32> to vector<8x1xf32>
    %26 = vector.broadcast %25 : vector<8x1xf32> to vector<8x8xf32>
    %27 = arith.subf %23, %26 : vector<8x8xf32>
    %28 = math.exp %27 : vector<8x8xf32>
    %cst_18 = arith.constant dense<0.000000e+00> : vector<8xf32>
    %29 = vector.multi_reduction <add>, %28, %cst_18 [1] : vector<8x8xf32> to vector<8xf32>
    %30 = vector.shape_cast %29 : vector<8xf32> to vector<8x1xf32>
    %31 = tpu.reciprocal %30 {approx = true} : vector<8x1xf32> -> vector<8x1xf32>
    %32 = vector.broadcast %31 : vector<8x1xf32> to vector<8x8xf32>
    %33 = arith.mulf %28, %32 : vector<8x8xf32>
    %34 = arith.truncf %33 : vector<8x8xf32> to vector<8x8xbf16>
    %cst_19 = arith.constant dense<0.000000e+00> : vector<8x8xf32>
    %35 = tpu.matmul %34, %16, %cst_19 {dimension_numbers = #tpu.dot_dimension_numbers<[1], [0], [0], [1], [0, 0, 1, 1], [], []>} : vector<8x8xbf16>, vector<8x8xbf16>, vector<8x8xf32> -> vector<8x8xf32>
    %36 = vector.extract_strided_slice %11 {offsets = [0, 8], sizes = [8, 8], strides = [1, 1]} : vector<8x32xbf16> to vector<8x8xbf16>
    %37 = vector.extract_strided_slice %12 {offsets = [0, 8], sizes = [8, 8], strides = [1, 1]} : vector<8x32xbf16> to vector<8x8xbf16>
    %38 = vector.extract_strided_slice %13 {offsets = [0, 8], sizes = [8, 8], strides = [1, 1]} : vector<8x32xbf16> to vector<8x8xbf16>
    %cst_20 = arith.constant dense<0.000000e+00> : vector<8x8xf32>
    %39 = tpu.matmul %36, %37, %cst_20 {dimension_numbers = #tpu.dot_dimension_numbers<[1], [1], [0], [0], [0, 0, 1, 0], [], []>} : vector<8x8xbf16>, vector<8x8xbf16>, vector<8x8xf32> -> vector<8x8xf32>
    %c0_21 = arith.constant 0 : index
    %c1 = arith.constant 1 : index
    %c0_22 = arith.constant 0 : index
    %c0_23 = arith.constant 0 : index
    %40 = vector.load %arg5[%c0_21, %c1, %c0_22, %c0_23] : memref<1x4x8x8xf32, #tpu.memory_space<vmem>>, vector<1x1x8x8xf32>
    %41 = vector.shape_cast %40 : vector<1x1x8x8xf32> to vector<8x8xf32>
    %cst_24 = arith.constant 9.99999997E-7 : f32
    %42 = vector.broadcast %cst_24 : f32 to vector<8x8xf32>
    %43 = arith.maximumf %41, %42 : vector<8x8xf32>
    %44 = math.log %43 : vector<8x8xf32>
    %45 = arith.addf %44, %39 : vector<8x8xf32>
    %cst_25 = arith.constant dense<0xFF800000> : vector<8xf32>
    %46 = vector.multi_reduction <maximumf>, %45, %cst_25 [1] : vector<8x8xf32> to vector<8xf32>
    %47 = vector.shape_cast %46 : vector<8xf32> to vector<8x1xf32>
    %48 = vector.broadcast %47 : vector<8x1xf32> to vector<8x8xf32>
    %49 = arith.subf %45, %48 : vector<8x8xf32>
    %50 = math.exp %49 : vector<8x8xf32>
    %cst_26 = arith.constant dense<0.000000e+00> : vector<8xf32>
    %51 = vector.multi_reduction <add>, %50, %cst_26 [1] : vector<8x8xf32> to vector<8xf32>
    %52 = vector.shape_cast %51 : vector<8xf32> to vector<8x1xf32>
    %53 = tpu.reciprocal %52 {approx = true} : vector<8x1xf32> -> vector<8x1xf32>
    %54 = vector.broadcast %53 : vector<8x1xf32> to vector<8x8xf32>
    %55 = arith.mulf %50, %54 : vector<8x8xf32>
    %56 = arith.truncf %55 : vector<8x8xf32> to vector<8x8xbf16>
    %cst_27 = arith.constant dense<0.000000e+00> : vector<8x8xf32>
    %57 = tpu.matmul %56, %38, %cst_27 {dimension_numbers = #tpu.dot_dimension_numbers<[1], [0], [0], [1], [0, 0, 1, 1], [], []>} : vector<8x8xbf16>, vector<8x8xbf16>, vector<8x8xf32> -> vector<8x8xf32>
    %58 = vector.extract_strided_slice %11 {offsets = [0, 16], sizes = [8, 8], strides = [1, 1]} : vector<8x32xbf16> to vector<8x8xbf16>
    %59 = vector.extract_strided_slice %12 {offsets = [0, 16], sizes = [8, 8], strides = [1, 1]} : vector<8x32xbf16> to vector<8x8xbf16>
    %60 = vector.extract_strided_slice %13 {offsets = [0, 16], sizes = [8, 8], strides = [1, 1]} : vector<8x32xbf16> to vector<8x8xbf16>
    %cst_28 = arith.constant dense<0.000000e+00> : vector<8x8xf32>
    %61 = tpu.matmul %58, %59, %cst_28 {dimension_numbers = #tpu.dot_dimension_numbers<[1], [1], [0], [0], [0, 0, 1, 0], [], []>} : vector<8x8xbf16>, vector<8x8xbf16>, vector<8x8xf32> -> vector<8x8xf32>
    %c0_29 = arith.constant 0 : index
    %c2 = arith.constant 2 : index
    %c0_30 = arith.constant 0 : index
    %c0_31 = arith.constant 0 : index
    %62 = vector.load %arg5[%c0_29, %c2, %c0_30, %c0_31] : memref<1x4x8x8xf32, #tpu.memory_space<vmem>>, vector<1x1x8x8xf32>
    %63 = vector.shape_cast %62 : vector<1x1x8x8xf32> to vector<8x8xf32>
    %cst_32 = arith.constant 9.99999997E-7 : f32
    %64 = vector.broadcast %cst_32 : f32 to vector<8x8xf32>
    %65 = arith.maximumf %63, %64 : vector<8x8xf32>
    %66 = math.log %65 : vector<8x8xf32>
    %67 = arith.addf %66, %61 : vector<8x8xf32>
    %cst_33 = arith.constant dense<0xFF800000> : vector<8xf32>
    %68 = vector.multi_reduction <maximumf>, %67, %cst_33 [1] : vector<8x8xf32> to vector<8xf32>
    %69 = vector.shape_cast %68 : vector<8xf32> to vector<8x1xf32>
    %70 = vector.broadcast %69 : vector<8x1xf32> to vector<8x8xf32>
    %71 = arith.subf %67, %70 : vector<8x8xf32>
    %72 = math.exp %71 : vector<8x8xf32>
    %cst_34 = arith.constant dense<0.000000e+00> : vector<8xf32>
    %73 = vector.multi_reduction <add>, %72, %cst_34 [1] : vector<8x8xf32> to vector<8xf32>
    %74 = vector.shape_cast %73 : vector<8xf32> to vector<8x1xf32>
    %75 = tpu.reciprocal %74 {approx = true} : vector<8x1xf32> -> vector<8x1xf32>
    %76 = vector.broadcast %75 : vector<8x1xf32> to vector<8x8xf32>
    %77 = arith.mulf %72, %76 : vector<8x8xf32>
    %78 = arith.truncf %77 : vector<8x8xf32> to vector<8x8xbf16>
    %cst_35 = arith.constant dense<0.000000e+00> : vector<8x8xf32>
    %79 = tpu.matmul %78, %60, %cst_35 {dimension_numbers = #tpu.dot_dimension_numbers<[1], [0], [0], [1], [0, 0, 1, 1], [], []>} : vector<8x8xbf16>, vector<8x8xbf16>, vector<8x8xf32> -> vector<8x8xf32>
    %80 = vector.extract_strided_slice %11 {offsets = [0, 24], sizes = [8, 8], strides = [1, 1]} : vector<8x32xbf16> to vector<8x8xbf16>
    %81 = vector.extract_strided_slice %12 {offsets = [0, 24], sizes = [8, 8], strides = [1, 1]} : vector<8x32xbf16> to vector<8x8xbf16>
    %82 = vector.extract_strided_slice %13 {offsets = [0, 24], sizes = [8, 8], strides = [1, 1]} : vector<8x32xbf16> to vector<8x8xbf16>
    %cst_36 = arith.constant dense<0.000000e+00> : vector<8x8xf32>
    %83 = tpu.matmul %80, %81, %cst_36 {dimension_numbers = #tpu.dot_dimension_numbers<[1], [1], [0], [0], [0, 0, 1, 0], [], []>} : vector<8x8xbf16>, vector<8x8xbf16>, vector<8x8xf32> -> vector<8x8xf32>
    %c0_37 = arith.constant 0 : index
    %c3 = arith.constant 3 : index
    %c0_38 = arith.constant 0 : index
    %c0_39 = arith.constant 0 : index
    %84 = vector.load %arg5[%c0_37, %c3, %c0_38, %c0_39] : memref<1x4x8x8xf32, #tpu.memory_space<vmem>>, vector<1x1x8x8xf32>
    %85 = vector.shape_cast %84 : vector<1x1x8x8xf32> to vector<8x8xf32>
    %cst_40 = arith.constant 9.99999997E-7 : f32
    %86 = vector.broadcast %cst_40 : f32 to vector<8x8xf32>
    %87 = arith.maximumf %85, %86 : vector<8x8xf32>
    %88 = math.log %87 : vector<8x8xf32>
    %89 = arith.addf %88, %83 : vector<8x8xf32>
    %cst_41 = arith.constant dense<0xFF800000> : vector<8xf32>
    %90 = vector.multi_reduction <maximumf>, %89, %cst_41 [1] : vector<8x8xf32> to vector<8xf32>
    %91 = vector.shape_cast %90 : vector<8xf32> to vector<8x1xf32>
    %92 = vector.broadcast %91 : vector<8x1xf32> to vector<8x8xf32>
    %93 = arith.subf %89, %92 : vector<8x8xf32>
    %94 = math.exp %93 : vector<8x8xf32>
    %cst_42 = arith.constant dense<0.000000e+00> : vector<8xf32>
    %95 = vector.multi_reduction <add>, %94, %cst_42 [1] : vector<8x8xf32> to vector<8xf32>
    %96 = vector.shape_cast %95 : vector<8xf32> to vector<8x1xf32>
    %97 = tpu.reciprocal %96 {approx = true} : vector<8x1xf32> -> vector<8x1xf32>
    %98 = vector.broadcast %97 : vector<8x1xf32> to vector<8x8xf32>
    %99 = arith.mulf %94, %98 : vector<8x8xf32>
    %100 = arith.truncf %99 : vector<8x8xf32> to vector<8x8xbf16>
    %cst_43 = arith.constant dense<0.000000e+00> : vector<8x8xf32>
    %101 = tpu.matmul %100, %82, %cst_43 {dimension_numbers = #tpu.dot_dimension_numbers<[1], [0], [0], [1], [0, 0, 1, 1], [], []>} : vector<8x8xbf16>, vector<8x8xbf16>, vector<8x8xf32> -> vector<8x8xf32>
    %102 = tpu.concatenate %35, %57, %79, %101 in 1 : vector<8x8xf32>, vector<8x8xf32>, vector<8x8xf32>, vector<8x8xf32> -> vector<8x32xf32>
    %103 = arith.truncf %102 : vector<8x32xf32> to vector<8x32xbf16>
    %c0_44 = arith.constant 0 : index
    %c0_45 = arith.constant 0 : index
    %104 = vector.load %arg12[%c0_44, %c0_45] : memref<32x32xbf16, #tpu.memory_space<vmem>>, vector<32x32xbf16>
    %cst_46 = arith.constant dense<0.000000e+00> : vector<8x32xf32>
    %105 = tpu.matmul %103, %104, %cst_46 {dimension_numbers = #tpu.dot_dimension_numbers<[1], [0], [0], [1], [0, 0, 1, 1], [], []>} : vector<8x32xbf16>, vector<32x32xbf16>, vector<8x32xf32> -> vector<8x32xf32>
    %c0_47 = arith.constant 0 : index
    %c0_48 = arith.constant 0 : index
    %106 = vector.load %arg13[%c0_47, %c0_48] : memref<1x32xf32, #tpu.memory_space<vmem>>, vector<1x32xf32>
    %107 = vector.broadcast %106 : vector<1x32xf32> to vector<8x32xf32>
    %108 = arith.addf %105, %107 : vector<8x32xf32>
    %109 = arith.addf %4, %108 : vector<8x32xf32>
    %cst_49 = arith.constant dense<0.000000e+00> : vector<8xf32>
    %110 = vector.multi_reduction <add>, %109, %cst_49 [1] : vector<8x32xf32> to vector<8xf32>
    %111 = vector.shape_cast %110 : vector<8xf32> to vector<8x1xf32>
    %cst_50 = arith.constant 3.200000e+01 : f32
    %112 = vector.broadcast %cst_50 : f32 to vector<8x1xf32>
    %113 = arith.divf %111, %112 : vector<8x1xf32>
    %114 = vector.broadcast %113 : vector<8x1xf32> to vector<8x32xf32>
    %115 = arith.subf %109, %114 : vector<8x32xf32>
    %116 = arith.mulf %115, %115 : vector<8x32xf32>
    %cst_51 = arith.constant dense<0.000000e+00> : vector<8xf32>
    %117 = vector.multi_reduction <add>, %116, %cst_51 [1] : vector<8x32xf32> to vector<8xf32>
    %118 = vector.shape_cast %117 : vector<8xf32> to vector<8x1xf32>
    %cst_52 = arith.constant 3.200000e+01 : f32
    %119 = vector.broadcast %cst_52 : f32 to vector<8x1xf32>
    %120 = arith.divf %118, %119 : vector<8x1xf32>
    %121 = vector.broadcast %113 : vector<8x1xf32> to vector<8x32xf32>
    %122 = arith.subf %109, %121 : vector<8x32xf32>
    %cst_53 = arith.constant 9.99999974E-6 : f32
    %123 = vector.broadcast %cst_53 : f32 to vector<8x1xf32>
    %124 = arith.addf %120, %123 : vector<8x1xf32>
    %125 = math.rsqrt %124 : vector<8x1xf32>
    %126 = vector.broadcast %125 : vector<8x1xf32> to vector<8x32xf32>
    %127 = arith.mulf %122, %126 : vector<8x32xf32>
    %c0_54 = arith.constant 0 : index
    %c0_55 = arith.constant 0 : index
    %128 = vector.load %arg14[%c0_54, %c0_55] : memref<1x32xf32, #tpu.memory_space<vmem>>, vector<1x32xf32>
    %129 = vector.broadcast %128 : vector<1x32xf32> to vector<8x32xf32>
    %130 = arith.mulf %127, %129 : vector<8x32xf32>
    %c0_56 = arith.constant 0 : index
    %c0_57 = arith.constant 0 : index
    %131 = vector.load %arg15[%c0_56, %c0_57] : memref<1x32xf32, #tpu.memory_space<vmem>>, vector<1x32xf32>
    %132 = vector.broadcast %131 : vector<1x32xf32> to vector<8x32xf32>
    %133 = arith.addf %130, %132 : vector<8x32xf32>
    %c0_58 = arith.constant 0 : index
    %c0_59 = arith.constant 0 : index
    %c0_60 = arith.constant 0 : index
    %134 = vector.load %arg16[%c0_58, %c0_59, %c0_60] : memref<1x8x32xf32, #tpu.memory_space<vmem>>, vector<1x8x32xf32>
    %135 = vector.shape_cast %134 : vector<1x8x32xf32> to vector<8x32xf32>
    %136 = vector.shape_cast %133 : vector<8x32xf32> to vector<1x8x32xf32>
    tpu.vector_store %arg16[%c0_58, %c0_59, %c0_60], %136 {strides = array<i32>} : memref<1x8x32xf32, #tpu.memory_space<vmem>>, vector<1x8x32xf32>,
    return
  }
  func.func @transform_0(%arg0: i32, %arg1: i32) -> (i32, i32, i32) {
    %c0_i32 = arith.constant 0 : i32
    %c0_i32_0 = arith.constant 0 : i32
    return %arg0, %arg1, %c0_i32 : i32, i32, i32
  }
  func.func @transform_1(%arg0: i32, %arg1: i32) -> (i32, i32, i32) {
    %c0_i32 = arith.constant 0 : i32
    %c0_i32_0 = arith.constant 0 : i32
    %c0_i32_1 = arith.constant 0 : i32
    return %arg0, %c0_i32, %c0_i32_0 : i32, i32, i32
  }
  func.func @transform_2(%arg0: i32, %arg1: i32) -> (i32, i32, i32) {
    %c0_i32 = arith.constant 0 : i32
    %c0_i32_0 = arith.constant 0 : i32
    %c0_i32_1 = arith.constant 0 : i32
    return %arg0, %c0_i32, %c0_i32_0 : i32, i32, i32
  }
  func.func @transform_3(%arg0: i32, %arg1: i32) -> (i32, i32, i32, i32) {
    %c0_i32 = arith.constant 0 : i32
    %c0_i32_0 = arith.constant 0 : i32
    %c0_i32_1 = arith.constant 0 : i32
    return %arg0, %c0_i32, %arg1, %c0_i32_0 : i32, i32, i32, i32
  }
  func.func @transform_4(%arg0: i32, %arg1: i32) -> (i32, i32) {
    %c0_i32 = arith.constant 0 : i32
    %c0_i32_0 = arith.constant 0 : i32
    %c0_i32_1 = arith.constant 0 : i32
    return %c0_i32, %c0_i32_0 : i32, i32
  }
  func.func @transform_5(%arg0: i32, %arg1: i32) -> (i32, i32) {
    %c0_i32 = arith.constant 0 : i32
    %c0_i32_0 = arith.constant 0 : i32
    %c0_i32_1 = arith.constant 0 : i32
    return %c0_i32, %c0_i32_0 : i32, i32
  }
  func.func @transform_6(%arg0: i32, %arg1: i32) -> (i32, i32) {
    %c0_i32 = arith.constant 0 : i32
    %c0_i32_0 = arith.constant 0 : i32
    %c0_i32_1 = arith.constant 0 : i32
    return %c0_i32, %c0_i32_0 : i32, i32
  }
  func.func @transform_7(%arg0: i32, %arg1: i32) -> (i32, i32) {
    %c0_i32 = arith.constant 0 : i32
    %c0_i32_0 = arith.constant 0 : i32
    %c0_i32_1 = arith.constant 0 : i32
    return %c0_i32, %c0_i32_0 : i32, i32
  }
  func.func @transform_8(%arg0: i32, %arg1: i32) -> (i32, i32) {
    %c0_i32 = arith.constant 0 : i32
    %c0_i32_0 = arith.constant 0 : i32
    %c0_i32_1 = arith.constant 0 : i32
    return %c0_i32, %c0_i32_0 : i32, i32
  }
  func.func @transform_9(%arg0: i32, %arg1: i32) -> (i32, i32) {
    %c0_i32 = arith.constant 0 : i32
    %c0_i32_0 = arith.constant 0 : i32
    %c0_i32_1 = arith.constant 0 : i32
    return %c0_i32, %c0_i32_0 : i32, i32
  }
  func.func @transform_10(%arg0: i32, %arg1: i32) -> (i32, i32) {
    %c0_i32 = arith.constant 0 : i32
    %c0_i32_0 = arith.constant 0 : i32
    %c0_i32_1 = arith.constant 0 : i32
    return %c0_i32, %c0_i32_0 : i32, i32
  }
  func.func @transform_11(%arg0: i32, %arg1: i32) -> (i32, i32) {
    %c0_i32 = arith.constant 0 : i32
    %c0_i32_0 = arith.constant 0 : i32
    %c0_i32_1 = arith.constant 0 : i32
    return %c0_i32, %c0_i32_0 : i32, i32
  }
  func.func @transform_12(%arg0: i32, %arg1: i32) -> (i32, i32) {
    %c0_i32 = arith.constant 0 : i32
    %c0_i32_0 = arith.constant 0 : i32
    %c0_i32_1 = arith.constant 0 : i32
    return %c0_i32, %c0_i32_0 : i32, i32
  }
  func.func @transform_13(%arg0: i32, %arg1: i32) -> (i32, i32) {
    %c0_i32 = arith.constant 0 : i32
    %c0_i32_0 = arith.constant 0 : i32
    %c0_i32_1 = arith.constant 0 : i32
    return %c0_i32, %c0_i32_0 : i32, i32
  }
  func.func @transform_14(%arg0: i32, %arg1: i32) -> (i32, i32, i32) {
    %c0_i32 = arith.constant 0 : i32
    %c0_i32_0 = arith.constant 0 : i32
    return %arg0, %arg1, %c0_i32 : i32, i32, i32
  }
}

</mosaic_0001>

<llo_original>
// kernel: tpu_custom_call.1
$region0: #{tpu_custom_call.1}
  #allocation0 [shape = 'u32[]', space=smem, size = 0x4, offset = 0x4, fixed_abs, tag = 'smem constant byte address 0x4 - core index']
  #allocation1 [shape = 'u32[144,128]{1,0:T(1,128)}', space=vmem, size = 0x12000, scoped, tag = 'internal scratch']
  #allocation2 [shape = 'bf16[8,32]{1,0:T(8,128)(2,1)}', space=vmem, size = 0x800, scoped, tag = 'scratch operand']
  #allocation3 [shape = 'bf16[8,32]{1,0:T(8,128)(2,1)}', space=vmem, size = 0x800, scoped, tag = 'scratch operand']
  %s0 = inlined_call_operand.hbm [shape: f32[2,8,32], index: 0, kind: input, shape index: {}]
  %s1 = inlined_call_operand.hbm [shape: f32[2,8,32], index: 1, kind: input, shape index: {}]
  %s2 = inlined_call_operand.hbm [shape: f32[2,8,32], index: 2, kind: input, shape index: {}]
  %s3 = inlined_call_operand.hbm [shape: f32[2,4,8,8], index: 3, kind: input, shape index: {}]
  %s4 = inlined_call_operand.hbm [shape: bf16[32,32], index: 4, kind: input, shape index: {}]
  %s5 = inlined_call_operand.vmem [shape: f32[1,32], index: 5, kind: input, shape index: {}]
  %s6 = inlined_call_operand.hbm [shape: bf16[32,32], index: 6, kind: input, shape index: {}]
  %s7 = inlined_call_operand.vmem [shape: f32[1,32], index: 7, kind: input, shape index: {}]
  %s8 = inlined_call_operand.hbm [shape: bf16[32,32], index: 8, kind: input, shape index: {}]
  %s9 = inlined_call_operand.hbm [shape: f32[1,32], index: 9, kind: input, shape index: {}]
  %s10 = inlined_call_operand.vmem [shape: bf16[32,32], index: 10, kind: input, shape index: {}]
  %s11 = inlined_call_operand.vmem [shape: f32[1,32], index: 11, kind: input, shape index: {}]
  %s12 = inlined_call_operand.vmem [shape: f32[1,32], index: 12, kind: input, shape index: {}]
  %s13 = inlined_call_operand.vmem [shape: f32[1,32], index: 13, kind: input, shape index: {}]
  %s14 = inlined_call_operand.hbm [shape: f32[2,8,32], index: 14, kind: output, shape index: {}]
  %s15 = sld [smem:[#allocation0]]
  $region125: #{tpu_custom_call.1} parent=0
    _
  %s17 = ssub.s32 1, %s15
  %s18 = scalar_select 0, %s17, %s15
  $region1: #{tpu_custom_call.1} parent=0
    #allocation4 [shape = 'u8[8192]{0}', space=vmem, size = 0x2000, scoped, tag = 'input window, operand 0']
    #allocation5 [shape = 's32[2]{0}', space=sflag, size = 0x8, scoped, tag = 'scoped memory for tpu_custom_call.1']
    #allocation6 [shape = 's32[2]{0}', space=sflag, size = 0x8, scoped, tag = 'scoped memory for tpu_custom_call.1']
    #allocation7 [shape = 'u8[8192]{0}', space=vmem, size = 0x2000, scoped, tag = 'input window, operand 1']
    #allocation8 [shape = 's32[2]{0}', space=sflag, size = 0x8, scoped, tag = 'scoped memory for tpu_custom_call.1']
    #allocation9 [shape = 'u8[8192]{0}', space=vmem, size = 0x2000, scoped, tag = 'input window, operand 2']
    #allocation10 [shape = 'u8[32768]{0}', space=vmem, size = 0x8000, scoped, tag = 'input window, operand 3']
    #allocation11 [shape = 's32[2]{0}', space=sflag, size = 0x8, scoped, tag = 'scoped memory for tpu_custom_call.1']
    #allocation12 [shape = 'u8[8192]{0}', space=vmem, size = 0x2000, scoped, tag = 'input window, operand 4, single buffered']
    #allocation13 [shape = 'u8[8192]{0}', space=vmem, size = 0x2000, scoped, tag = 'input window, operand 6, single buffered']
    #allocation14 [shape = 's32[1]{0}', space=sflag, size = 0x4, scoped, tag = 'scoped memory for tpu_custom_call.1']
    #allocation15 [shape = 'u8[8192]{0}', space=vmem, size = 0x2000, scoped, tag = 'input window, operand 8, single buffered']
    #allocation16 [shape = 'u8[512]{0}', space=vmem, size = 0x400, scoped, tag = 'input window, operand 9, single buffered']
    #allocation17 [shape = 's32[1]{0}', space=sflag, size = 0x4, scoped, tag = 'scoped memory for tpu_custom_call.1']
    #allocation18 [shape = 'u8[8192]{0}', space=vmem, size = 0x2000, scoped, tag = 'output window, operand 0']
    %19 = vsyncpa [#allocation5], 0
    %s20 = scalar_lea.sflag [#allocation5], 1
    %21 = vsyncpa %s20, 0
    %22 = vsyncpa [#allocation8], 0
    %s23 = scalar_lea.sflag [#allocation8], 1
    %24 = vsyncpa %s23, 0
    %25 = vsyncpa [#allocation11], 0
    %s26 = scalar_lea.sflag [#allocation11], 1
    %27 = vsyncpa %s26, 0
    %28 = vsyncpa [#allocation14], 0
    %29 = vsyncpa [#allocation17], 0
    %30 = vsyncpa [#allocation6], 0
    %s31 = scalar_lea.sflag [#allocation6], 1
    %32 = vsyncpa %s31, 0
    loop: start=0, step=1, limit=4
    $region2: #{tpu_custom_call.1} parent=1 // loop_pre_header
      _
    $region3: #{tpu_custom_call.1} parent=1 // loop_header
      %s34 = sphi 0, %s38
      %p35 = scmp.ge.s32.totalorder %s34, 4
      %s41 = sphi 0, %s53
      %s42 = sphi 0, %s49
      %s43 = sphi 0, %s41
      %s44 = sphi 0, %s42
      %s45 = sphi 0, %s43
      %s46 = sphi 0, %s44
      %s58 = sphi 0, %s60
      %s61 = sphi 0, %s58
      %s62 = sphi 0, %s61
      %s78 = sphi 0, %s62
      %s84 = sphi 0, %s86
      %s87 = sphi 0, %s84
      %s88 = sphi 0, %s87
      %s104 = sphi 0, %s88
      %s110 = sphi 0, %s112
      %s113 = sphi 0, %s110
      %s114 = sphi 0, %s113
      %s130 = sphi 0, %s114
      %s138 = sphi 0, %s140
      %s141 = sphi 0, %s138
      %s142 = sphi 0, %s141
      %s158 = sphi 0, %s142
      %s162 = sphi 0, %s162
      %s164 = sphi 0, %s162
      %s165 = sphi 0, %s164
      %s179 = sphi 0, %s165
      %s183 = sphi 0, %s183
      %s185 = sphi 0, %s183
      %s186 = sphi 0, %s185
      %s200 = sphi 0, %s186
      %s204 = sphi 0, %s204
      %s206 = sphi 0, %s204
      %s207 = sphi 0, %s206
      %s221 = sphi 0, %s207
      %s225 = sphi 0, %s225
      %s227 = sphi 0, %s225
      %s228 = sphi 0, %s227
      %s242 = sphi 0, %s228
      %s246 = sphi 0, %s246
      %s248 = sphi 0, %s246
      %s249 = sphi 0, %s248
      %s263 = sphi 0, %s249
      %s267 = sphi 0, %s267
      %s269 = sphi 0, %s267
      %s270 = sphi 0, %s269
      %s284 = sphi 0, %s270
      %s288 = sphi 0, %s288
      %s290 = sphi 0, %s288
      %s291 = sphi 0, %s290
      %s305 = sphi 0, %s291
      %s309 = sphi 0, %s309
      %s311 = sphi 0, %s309
      %s312 = sphi 0, %s311
      %s326 = sphi 0, %s312
      %s330 = sphi 0, %s330
      %s332 = sphi 0, %s330
      %s333 = sphi 0, %s332
      %s347 = sphi 0, %s333
      %s351 = sphi 0, %s351
      %s353 = sphi 0, %s351
      %s354 = sphi 0, %s353
      %s368 = sphi 0, %s354
      %s376 = sphi 0, %s378
      %s379 = sphi 0, %s376
      %s380 = sphi 0, %s379
      %s396 = sphi 0, %s380
    $region4: #{tpu_custom_call.1} parent=1 // loop_header_branch
      %37 = sbr.rel (%p35) target = $region8
    $region5: #{tpu_custom_call.1} parent=1 // loop_body
      %s39 = ssub.s32 %s34, 1
      %s40 = ssub.s32 %s34, 2
      %s47 = sadd.s32 1, %s42
      %p48 = scmp.ge.s32.totalorder %s47, 1
      %s49 = scalar_select %p48, 0, %s47
      %s50 = sadd.s32 1, %s41
      %s51 = scalar_select %p48, %s50, %s41
      %p52 = scmp.ge.s32.totalorder %s51, 2
      %s53 = scalar_select %p52, 0, %s51
      %s54 = ssub.s32 %s41, %s53
      %s55 = ssub.s32 %s42, %s49
      %s56 = sor.u32 %s54, %s55
      %p57 = scmp.eq.s32.totalorder %s56, 0
      %s59 = sadd.s32 %s58, 1
      %s60 = scalar_select %p57, %s58, %s59
      %p63 = pneg %p57
      %p64 = scmp.eq.s32.totalorder %s34, 1
      %p65 = por %p63, %p64
      %p66 = scmp.ne.s32.totalorder %s58, %s61
      %p67 = scmp.eq.s32.totalorder %s34, 0
      %p68 = por %p66, %p67
      %p69 = scmp.ne.s32.totalorder %s58, %s61
      %p70 = scmp.eq.s32.totalorder %s39, 1
      %p71 = por %p69, %p70
      %p72 = scmp.ne.s32.totalorder %s61, %s62
      %p73 = scmp.eq.s32.totalorder %s39, 0
      %p74 = por %p72, %p73
      %p75 = scmp.ne.s32.totalorder %s61, %s62
      %p76 = scmp.eq.s32.totalorder %s40, 1
      %p77 = por %p75, %p76
      %p79 = scmp.ne.s32.totalorder %s62, %s78
      %p80 = scmp.eq.s32.totalorder %s40, 0
      %p81 = por %p79, %p80
      %s82 = ssub.s32 %s41, %s53
      %p83 = scmp.eq.s32.totalorder %s82, 0
      %s85 = sadd.s32 %s84, 1
      %s86 = scalar_select %p83, %s84, %s85
      %p89 = pneg %p83
      %p90 = scmp.eq.s32.totalorder %s34, 1
      %p91 = por %p89, %p90
      %p92 = scmp.ne.s32.totalorder %s84, %s87
      %p93 = scmp.eq.s32.totalorder %s34, 0
      %p94 = por %p92, %p93
      %p95 = scmp.ne.s32.totalorder %s84, %s87
      %p96 = scmp.eq.s32.totalorder %s39, 1
      %p97 = por %p95, %p96
      %p98 = scmp.ne.s32.totalorder %s87, %s88
      %p99 = scmp.eq.s32.totalorder %s39, 0
      %p100 = por %p98, %p99
      %p101 = scmp.ne.s32.totalorder %s87, %s88
      %p102 = scmp.eq.s32.totalorder %s40, 1
      %p103 = por %p101, %p102
      %p105 = scmp.ne.s32.totalorder %s88, %s104
      %p106 = scmp.eq.s32.totalorder %s40, 0
      %p107 = por %p105, %p106
      %s108 = ssub.s32 %s41, %s53
      %p109 = scmp.eq.s32.totalorder %s108, 0
      %s111 = sadd.s32 %s110, 1
      %s112 = scalar_select %p109, %s110, %s111
      %p115 = pneg %p109
      %p116 = scmp.eq.s32.totalorder %s34, 1
      %p117 = por %p115, %p116
      %p118 = scmp.ne.s32.totalorder %s110, %s113
      %p119 = scmp.eq.s32.totalorder %s34, 0
      %p120 = por %p118, %p119
      %p121 = scmp.ne.s32.totalorder %s110, %s113
      %p122 = scmp.eq.s32.totalorder %s39, 1
      %p123 = por %p121, %p122
      %p124 = scmp.ne.s32.totalorder %s113, %s114
      %p125 = scmp.eq.s32.totalorder %s39, 0
      %p126 = por %p124, %p125
      %p127 = scmp.ne.s32.totalorder %s113, %s114
      %p128 = scmp.eq.s32.totalorder %s40, 1
      %p129 = por %p127, %p128
      %p131 = scmp.ne.s32.totalorder %s114, %s130
      %p132 = scmp.eq.s32.totalorder %s40, 0
      %p133 = por %p131, %p132
      %s134 = ssub.s32 %s41, %s53
      %s135 = ssub.s32 %s42, %s49
      %s136 = sor.u32 %s134, %s135
      %p137 = scmp.eq.s32.totalorder %s136, 0
      %s139 = sadd.s32 %s138, 1
      %s140 = scalar_select %p137, %s138, %s139
      %p143 = pneg %p137
      %p144 = scmp.eq.s32.totalorder %s34, 1
      %p145 = por %p143, %p144
      %p146 = scmp.ne.s32.totalorder %s138, %s141
      %p147 = scmp.eq.s32.totalorder %s34, 0
      %p148 = por %p146, %p147
      %p149 = scmp.ne.s32.totalorder %s138, %s141
      %p150 = scmp.eq.s32.totalorder %s39, 1
      %p151 = por %p149, %p150
      %p152 = scmp.ne.s32.totalorder %s141, %s142
      %p153 = scmp.eq.s32.totalorder %s39, 0
      %p154 = por %p152, %p153
      %p155 = scmp.ne.s32.totalorder %s141, %s142
      %p156 = scmp.eq.s32.totalorder %s40, 1
      %p157 = por %p155, %p156
      %p159 = scmp.ne.s32.totalorder %s142, %s158
      %p160 = scmp.eq.s32.totalorder %s40, 0
      %p161 = por %p159, %p160
      %s163 = sadd.s32 %s162, 1
      %p166 = scmp.eq.s32.totalorder %s34, 1
      %p167 = scmp.ne.s32.totalorder %s162, %s164
      %p168 = scmp.eq.s32.totalorder %s34, 0
      %p169 = por %p167, %p168
      %p170 = scmp.ne.s32.totalorder %s162, %s164
      %p171 = scmp.eq.s32.totalorder %s39, 1
      %p172 = por %p170, %p171
      %p173 = scmp.ne.s32.totalorder %s164, %s165
      %p174 = scmp.eq.s32.totalorder %s39, 0
      %p175 = por %p173, %p174
      %p176 = scmp.ne.s32.totalorder %s164, %s165
      %p177 = scmp.eq.s32.totalorder %s40, 1
      %p178 = por %p176, %p177
      %p180 = scmp.ne.s32.totalorder %s165, %s179
      %p181 = scmp.eq.s32.totalorder %s40, 0
      %p182 = por %p180, %p181
      %s184 = sadd.s32 %s183, 1
      %p187 = scmp.eq.s32.totalorder %s34, 1
      %p188 = scmp.ne.s32.totalorder %s183, %s185
      %p189 = scmp.eq.s32.totalorder %s34, 0
      %p190 = por %p188, %p189
      %p191 = scmp.ne.s32.totalorder %s183, %s185
      %p192 = scmp.eq.s32.totalorder %s39, 1
      %p193 = por %p191, %p192
      %p194 = scmp.ne.s32.totalorder %s185, %s186
      %p195 = scmp.eq.s32.totalorder %s39, 0
      %p196 = por %p194, %p195
      %p197 = scmp.ne.s32.totalorder %s185, %s186
      %p198 = scmp.eq.s32.totalorder %s40, 1
      %p199 = por %p197, %p198
      %p201 = scmp.ne.s32.totalorder %s186, %s200
      %p202 = scmp.eq.s32.totalorder %s40, 0
      %p203 = por %p201, %p202
      %s205 = sadd.s32 %s204, 1
      %p208 = scmp.eq.s32.totalorder %s34, 1
      %p209 = scmp.ne.s32.totalorder %s204, %s206
      %p210 = scmp.eq.s32.totalorder %s34, 0
      %p211 = por %p209, %p210
      %p212 = scmp.ne.s32.totalorder %s204, %s206
      %p213 = scmp.eq.s32.totalorder %s39, 1
      %p214 = por %p212, %p213
      %p215 = scmp.ne.s32.totalorder %s206, %s207
      %p216 = scmp.eq.s32.totalorder %s39, 0
      %p217 = por %p215, %p216
      %p218 = scmp.ne.s32.totalorder %s206, %s207
      %p219 = scmp.eq.s32.totalorder %s40, 1
      %p220 = por %p218, %p219
      %p222 = scmp.ne.s32.totalorder %s207, %s221
      %p223 = scmp.eq.s32.totalorder %s40, 0
      %p224 = por %p222, %p223
      %s226 = sadd.s32 %s225, 1
      %p229 = scmp.eq.s32.totalorder %s34, 1
      %p230 = scmp.ne.s32.totalorder %s225, %s227
      %p231 = scmp.eq.s32.totalorder %s34, 0
      %p232 = por %p230, %p231
      %p233 = scmp.ne.s32.totalorder %s225, %s227
      %p234 = scmp.eq.s32.totalorder %s39, 1
      %p235 = por %p233, %p234
      %p236 = scmp.ne.s32.totalorder %s227, %s228
      %p237 = scmp.eq.s32.totalorder %s39, 0
      %p238 = por %p236, %p237
      %p239 = scmp.ne.s32.totalorder %s227, %s228
      %p240 = scmp.eq.s32.totalorder %s40, 1
      %p241 = por %p239, %p240
      %p243 = scmp.ne.s32.totalorder %s228, %s242
      %p244 = scmp.eq.s32.totalorder %s40, 0
      %p245 = por %p243, %p244
      %s247 = sadd.s32 %s246, 1
      %p250 = scmp.eq.s32.totalorder %s34, 1
      %p251 = scmp.ne.s32.totalorder %s246, %s248
      %p252 = scmp.eq.s32.totalorder %s34, 0
      %p253 = por %p251, %p252
      %p254 = scmp.ne.s32.totalorder %s246, %s248
      %p255 = scmp.eq.s32.totalorder %s39, 1
      %p256 = por %p254, %p255
      %p257 = scmp.ne.s32.totalorder %s248, %s249
      %p258 = scmp.eq.s32.totalorder %s39, 0
      %p259 = por %p257, %p258
      %p260 = scmp.ne.s32.totalorder %s248, %s249
      %p261 = scmp.eq.s32.totalorder %s40, 1
      %p262 = por %p260, %p261
      %p264 = scmp.ne.s32.totalorder %s249, %s263
      %p265 = scmp.eq.s32.totalorder %s40, 0
      %p266 = por %p264, %p265
      %s268 = sadd.s32 %s267, 1
      %p271 = scmp.eq.s32.totalorder %s34, 1
      %p272 = scmp.ne.s32.totalorder %s267, %s269
      %p273 = scmp.eq.s32.totalorder %s34, 0
      %p274 = por %p272, %p273
      %p275 = scmp.ne.s32.totalorder %s267, %s269
      %p276 = scmp.eq.s32.totalorder %s39, 1
      %p277 = por %p275, %p276
      %p278 = scmp.ne.s32.totalorder %s269, %s270
      %p279 = scmp.eq.s32.totalorder %s39, 0
      %p280 = por %p278, %p279
      %p281 = scmp.ne.s32.totalorder %s269, %s270
      %p282 = scmp.eq.s32.totalorder %s40, 1
      %p283 = por %p281, %p282
      %p285 = scmp.ne.s32.totalorder %s270, %s284
      %p286 = scmp.eq.s32.totalorder %s40, 0
      %p287 = por %p285, %p286
      %s289 = sadd.s32 %s288, 1
      %p292 = scmp.eq.s32.totalorder %s34, 1
      %p293 = scmp.ne.s32.totalorder %s288, %s290
      %p294 = scmp.eq.s32.totalorder %s34, 0
      %p295 = por %p293, %p294
      %p296 = scmp.ne.s32.totalorder %s288, %s290
      %p297 = scmp.eq.s32.totalorder %s39, 1
      %p298 = por %p296, %p297
      %p299 = scmp.ne.s32.totalorder %s290, %s291
      %p300 = scmp.eq.s32.totalorder %s39, 0
      %p301 = por %p299, %p300
      %p302 = scmp.ne.s32.totalorder %s290, %s291
      %p303 = scmp.eq.s32.totalorder %s40, 1
      %p304 = por %p302, %p303
      %p306 = scmp.ne.s32.totalorder %s291, %s305
      %p307 = scmp.eq.s32.totalorder %s40, 0
      %p308 = por %p306, %p307
      %s310 = sadd.s32 %s309, 1
      %p313 = scmp.eq.s32.totalorder %s34, 1
      %p314 = scmp.ne.s32.totalorder %s309, %s311
      %p315 = scmp.eq.s32.totalorder %s34, 0
      %p316 = por %p314, %p315
      %p317 = scmp.ne.s32.totalorder %s309, %s311
      %p318 = scmp.eq.s32.totalorder %s39, 1
      %p319 = por %p317, %p318
      %p320 = scmp.ne.s32.totalorder %s311, %s312
      %p321 = scmp.eq.s32.totalorder %s39, 0
      %p322 = por %p320, %p321
      %p323 = scmp.ne.s32.totalorder %s311, %s312
      %p324 = scmp.eq.s32.totalorder %s40, 1
      %p325 = por %p323, %p324
      %p327 = scmp.ne.s32.totalorder %s312, %s326
      %p328 = scmp.eq.s32.totalorder %s40, 0
      %p329 = por %p327, %p328
      %s331 = sadd.s32 %s330, 1
      %p334 = scmp.eq.s32.totalorder %s34, 1
      %p335 = scmp.ne.s32.totalorder %s330, %s332
      %p336 = scmp.eq.s32.totalorder %s34, 0
      %p337 = por %p335, %p336
      %p338 = scmp.ne.s32.totalorder %s330, %s332
      %p339 = scmp.eq.s32.totalorder %s39, 1
      %p340 = por %p338, %p339
      %p341 = scmp.ne.s32.totalorder %s332, %s333
      %p342 = scmp.eq.s32.totalorder %s39, 0
      %p343 = por %p341, %p342
      %p344 = scmp.ne.s32.totalorder %s332, %s333
      %p345 = scmp.eq.s32.totalorder %s40, 1
      %p346 = por %p344, %p345
      %p348 = scmp.ne.s32.totalorder %s333, %s347
      %p349 = scmp.eq.s32.totalorder %s40, 0
      %p350 = por %p348, %p349
      %s352 = sadd.s32 %s351, 1
      %p355 = scmp.eq.s32.totalorder %s34, 1
      %p356 = scmp.ne.s32.totalorder %s351, %s353
      %p357 = scmp.eq.s32.totalorder %s34, 0
      %p358 = por %p356, %p357
      %p359 = scmp.ne.s32.totalorder %s351, %s353
      %p360 = scmp.eq.s32.totalorder %s39, 1
      %p361 = por %p359, %p360
      %p362 = scmp.ne.s32.totalorder %s353, %s354
      %p363 = scmp.eq.s32.totalorder %s39, 0
      %p364 = por %p362, %p363
      %p365 = scmp.ne.s32.totalorder %s353, %s354
      %p366 = scmp.eq.s32.totalorder %s40, 1
      %p367 = por %p365, %p366
      %p369 = scmp.ne.s32.totalorder %s354, %s368
      %p370 = scmp.eq.s32.totalorder %s40, 0
      %p371 = por %p369, %p370
      %s372 = ssub.s32 %s41, %s53
      %s373 = ssub.s32 %s42, %s49
      %s374 = sor.u32 %s372, %s373
      %p375 = scmp.eq.s32.totalorder %s374, 0
      %s377 = sadd.s32 %s376, 1
      %s378 = scalar_select %p375, %s376, %s377
      %p381 = pneg %p375
      %p382 = scmp.eq.s32.totalorder %s34, 1
      %p383 = por %p381, %p382
      %p384 = scmp.ne.s32.totalorder %s376, %s379
      %p385 = scmp.eq.s32.totalorder %s34, 0
      %p386 = por %p384, %p385
      %p387 = scmp.ne.s32.totalorder %s376, %s379
      %p388 = scmp.eq.s32.totalorder %s39, 1
      %p389 = por %p387, %p388
      %p390 = scmp.ne.s32.totalorder %s379, %s380
      %p391 = scmp.eq.s32.totalorder %s39, 0
      %p392 = por %p390, %p391
      %p393 = scmp.ne.s32.totalorder %s379, %s380
      %p394 = scmp.eq.s32.totalorder %s40, 1
      %p395 = por %p393, %p394
      %p397 = scmp.ne.s32.totalorder %s380, %s396
      %p398 = scmp.eq.s32.totalorder %s40, 0
      %p399 = por %p397, %p398
      %p400 = scmp.le.s32.totalorder 1, %s34
      %p401 = scmp.lt.s32.totalorder %s34, 3
      %p402 = pnand %p400, %p401
      %p403 = pneg %p402
      // Predicated region
      $region9: #{tpu_custom_call.1} parent=5 // pred_check
        _
      $region10: #{tpu_custom_call.1} parent=5 // pred_check_branch
        %405 = sbr.rel (%p402) target = $region12
      $region11: #{tpu_custom_call.1} parent=5 // pred_region
        %s406 = ssub.s32 %s34, 1
        // Predicated region
        $region13: #{tpu_custom_call.1} parent=11 // pred_check
          %p407 = pneg %p175
        $region14: #{tpu_custom_call.1} parent=11 // pred_check_branch
          %409 = sbr.rel (%p407) target = $region16
        $region15: #{tpu_custom_call.1} parent=11 // pred_region
          %s411 = ssub.s32 256, 256
          %412 = vsyncadd [#allocation11], %s411
          %s413 = sshll.u32 [#allocation12], 4
          %s414 = int_to_ptr.vmem [resolvable:$true] %s413
          %419 = dma.hbm_to_vmem [thread:$0]  %s4, 256, %s414, [#allocation11], 64, 64, 4
        $region16: #{tpu_custom_call.1} parent=11 // pred_fallthru
          _
        // Predicated region
        $region17: #{tpu_custom_call.1} parent=11 // pred_check
          %p420 = pneg %p196
        $region18: #{tpu_custom_call.1} parent=11 // pred_check_branch
          %422 = sbr.rel (%p420) target = $region20
        $region19: #{tpu_custom_call.1} parent=11 // pred_region
          _
        $region20: #{tpu_custom_call.1} parent=11 // pred_fallthru
          _
        // Predicated region
        $region21: #{tpu_custom_call.1} parent=11 // pred_check
          %p423 = pneg %p217
        $region22: #{tpu_custom_call.1} parent=11 // pred_check_branch
          %425 = sbr.rel (%p423) target = $region24
        $region23: #{tpu_custom_call.1} parent=11 // pred_region
          %s427 = ssub.s32 256, 256
          %428 = vsyncadd [#allocation14], %s427
          %s429 = sshll.u32 [#allocation13], 4
          %s430 = int_to_ptr.vmem [resolvable:$true] %s429
          %435 = dma.hbm_to_vmem [thread:$0]  %s6, 256, %s430, [#allocation14], 64, 64, 4
        $region24: #{tpu_custom_call.1} parent=11 // pred_fallthru
          _
        // Predicated region
        $region25: #{tpu_custom_call.1} parent=11 // pred_check
          %p436 = pneg %p238
        $region26: #{tpu_custom_call.1} parent=11 // pred_check_branch
          %438 = sbr.rel (%p436) target = $region28
        $region27: #{tpu_custom_call.1} parent=11 // pred_region
          _
        $region28: #{tpu_custom_call.1} parent=11 // pred_fallthru
          _
        // Predicated region
        $region29: #{tpu_custom_call.1} parent=11 // pred_check
          %p439 = pneg %p259
        $region30: #{tpu_custom_call.1} parent=11 // pred_check_branch
          %441 = sbr.rel (%p439) target = $region32
        $region31: #{tpu_custom_call.1} parent=11 // pred_region
          %s443 = ssub.s32 256, 256
          %444 = vsyncadd [#allocation14], %s443
          %s445 = sshll.u32 [#allocation15], 4
          %s446 = int_to_ptr.vmem [resolvable:$true] %s445
          %451 = dma.hbm_to_vmem [thread:$0]  %s8, 256, %s446, [#allocation14], 64, 64, 4
        $region32: #{tpu_custom_call.1} parent=11 // pred_fallthru
          _
        // Predicated region
        $region33: #{tpu_custom_call.1} parent=11 // pred_check
          %p452 = pneg %p280
        $region34: #{tpu_custom_call.1} parent=11 // pred_check_branch
          %454 = sbr.rel (%p452) target = $region36
        $region35: #{tpu_custom_call.1} parent=11 // pred_region
          %s456 = ssub.s32 16, 16
          %457 = vsyncadd [#allocation17], %s456
          %s459 = sshll.u32 [#allocation16], 4
          %s460 = int_to_ptr.vmem [resolvable:$true] %s459
          %462 = dma.hbm_to_vmem [thread:$0]  %s9, 16, %s460, [#allocation17]
        $region36: #{tpu_custom_call.1} parent=11 // pred_fallthru
          _
        // Predicated region
        $region37: #{tpu_custom_call.1} parent=11 // pred_check
          %p463 = pneg %p301
        $region38: #{tpu_custom_call.1} parent=11 // pred_check_branch
          %465 = sbr.rel (%p463) target = $region40
        $region39: #{tpu_custom_call.1} parent=11 // pred_region
          _
        $region40: #{tpu_custom_call.1} parent=11 // pred_fallthru
          _
        // Predicated region
        $region41: #{tpu_custom_call.1} parent=11 // pred_check
          %p466 = pneg %p322
        $region42: #{tpu_custom_call.1} parent=11 // pred_check_branch
          %468 = sbr.rel (%p466) target = $region44
        $region43: #{tpu_custom_call.1} parent=11 // pred_region
          _
        $region44: #{tpu_custom_call.1} parent=11 // pred_fallthru
          _
        // Predicated region
        $region45: #{tpu_custom_call.1} parent=11 // pred_check
          %p469 = pneg %p343
        $region46: #{tpu_custom_call.1} parent=11 // pred_check_branch
          %471 = sbr.rel (%p469) target = $region48
        $region47: #{tpu_custom_call.1} parent=11 // pred_region
          _
        $region48: #{tpu_custom_call.1} parent=11 // pred_fallthru
          _
        // Predicated region
        $region49: #{tpu_custom_call.1} parent=11 // pred_check
          %p472 = pneg %p364
        $region50: #{tpu_custom_call.1} parent=11 // pred_check_branch
          %474 = sbr.rel (%p472) target = $region52
        $region51: #{tpu_custom_call.1} parent=11 // pred_region
          _
        $region52: #{tpu_custom_call.1} parent=11 // pred_fallthru
          _
      $region12: #{tpu_custom_call.1} parent=5 // pred_fallthru
        _
      %p475 = scmp.lt.s32.totalorder %s34, 2
      // Predicated region
      $region53: #{tpu_custom_call.1} parent=5 // pred_check
        %p476 = pneg %p475
      $region54: #{tpu_custom_call.1} parent=5 // pred_check_branch
        %478 = sbr.rel (%p476) target = $region56
      $region55: #{tpu_custom_call.1} parent=5 // pred_region
        // Predicated region
        $region57: #{tpu_custom_call.1} parent=55 // pred_check
          %p479 = pneg %p68
        $region58: #{tpu_custom_call.1} parent=55 // pred_check_branch
          %481 = sbr.rel (%p479) target = $region60
        $region59: #{tpu_custom_call.1} parent=55 // pred_region
          %s482 = sand.u32 %s58, 1
          %s483 = scalar_lea.sflag [#allocation5], %s482
          %s484 = sand.u32 %s58, 1
          %s485 = smul.addr %s484, 8
          %s486 = scalar_lea.vmem [#allocation4], %s485
          %s488 = ssub.s32 128, 128
          %489 = vsyncadd %s483, %s488
          %s490 = sadd.s32 %s42, %s41
          %s491 = smul.addr %s490, 128
          %s492 = scalar_lea.hbm %s0, %s491
          %s494 = sshll.u32 %s486, 4
          %s495 = int_to_ptr.vmem [resolvable:$true] %s494
          %497 = dma.hbm_to_vmem [thread:$0]  %s492, 128, %s495, %s483
        $region60: #{tpu_custom_call.1} parent=55 // pred_fallthru
          _
        // Predicated region
        $region61: #{tpu_custom_call.1} parent=55 // pred_check
          %p498 = pneg %p94
        $region62: #{tpu_custom_call.1} parent=55 // pred_check_branch
          %500 = sbr.rel (%p498) target = $region64
        $region63: #{tpu_custom_call.1} parent=55 // pred_region
          %s501 = sand.u32 %s34, 1
          %s502 = scalar_lea.sflag [#allocation8], %s501
          %s503 = sand.u32 %s84, 1
          %s504 = smul.addr %s503, 8
          %s505 = scalar_lea.vmem [#allocation7], %s504
          %s507 = ssub.s32 128, 128
          %508 = vsyncadd %s502, %s507
          %s509 = smul.addr %s41, 128
          %s510 = scalar_lea.hbm %s1, %s509
          %s512 = sshll.u32 %s505, 4
          %s513 = int_to_ptr.vmem [resolvable:$true] %s512
          %515 = dma.hbm_to_vmem [thread:$0]  %s510, 128, %s513, %s502
        $region64: #{tpu_custom_call.1} parent=55 // pred_fallthru
          _
        // Predicated region
        $region65: #{tpu_custom_call.1} parent=55 // pred_check
          %p516 = pneg %p120
        $region66: #{tpu_custom_call.1} parent=55 // pred_check_branch
          %518 = sbr.rel (%p516) target = $region68
        $region67: #{tpu_custom_call.1} parent=55 // pred_region
          %s519 = sand.u32 %s34, 1
          %s520 = scalar_lea.sflag [#allocation8], %s519
          %s521 = sand.u32 %s110, 1
          %s522 = smul.addr %s521, 8
          %s523 = scalar_lea.vmem [#allocation9], %s522
          %s525 = ssub.s32 128, 128
          %526 = vsyncadd %s520, %s525
          %s527 = smul.addr %s41, 128
          %s528 = scalar_lea.hbm %s2, %s527
          %s530 = sshll.u32 %s523, 4
          %s531 = int_to_ptr.vmem [resolvable:$true] %s530
          %533 = dma.hbm_to_vmem [thread:$0]  %s528, 128, %s531, %s520
        $region68: #{tpu_custom_call.1} parent=55 // pred_fallthru
          _
        // Predicated region
        $region69: #{tpu_custom_call.1} parent=55 // pred_check
          %p534 = pneg %p148
        $region70: #{tpu_custom_call.1} parent=55 // pred_check_branch
          %536 = sbr.rel (%p534) target = $region72
        $region71: #{tpu_custom_call.1} parent=55 // pred_region
          %s537 = sand.u32 %s34, 1
          %s538 = scalar_lea.sflag [#allocation11], %s537
          %s539 = sand.u32 %s138, 1
          %s540 = smul.addr %s539, 32
          %s541 = scalar_lea.vmem [#allocation10], %s540
          %s543 = ssub.s32 512, 512
          %544 = vsyncadd %s538, %s543
          %s545 = smul.addr %s41, 4
          %s546 = sadd.s32 %s42, %s545
          %s547 = smul.addr %s546, 128
          %s548 = scalar_lea.hbm %s3, %s547
          %s549 = sshll.u32 %s541, 4
          %s550 = int_to_ptr.vmem [resolvable:$true] %s549
          %555 = dma.hbm_to_vmem [thread:$0]  %s548, 512, %s550, %s538, 128, 128, 8
        $region72: #{tpu_custom_call.1} parent=55 // pred_fallthru
          _
      $region56: #{tpu_custom_call.1} parent=5 // pred_fallthru
        _
      %p556 = scmp.le.s32.totalorder 1, %s34
      %p557 = scmp.lt.s32.totalorder %s34, 3
      %p558 = pnand %p556, %p557
      %p559 = pneg %p558
      // Predicated region
      $region73: #{tpu_custom_call.1} parent=5 // pred_check
        _
      $region74: #{tpu_custom_call.1} parent=5 // pred_check_branch
        %561 = sbr.rel (%p558) target = $region76
      $region75: #{tpu_custom_call.1} parent=5 // pred_region
        %s562 = ssub.s32 %s34, 1
        %s563 = sand.u32 %s61, 1
        %s564 = scalar_lea.sflag [#allocation5], %s563
        %s565 = sand.u32 %s61, 1
        %s566 = smul.addr %s565, 8
        %s567 = scalar_lea.vmem [#allocation4], %s566
        // Predicated region
        $region77: #{tpu_custom_call.1} parent=75 // pred_check
          %p568 = pneg %p74
        $region78: #{tpu_custom_call.1} parent=75 // pred_check_branch
          %570 = sbr.rel (%p568) target = $region80
        $region79: #{tpu_custom_call.1} parent=75 // pred_region
          %571 = dma.done %s564, 128
        $region80: #{tpu_custom_call.1} parent=75 // pred_fallthru
          _
        %s572 = sand.u32 %s39, 1
        %s573 = scalar_lea.sflag [#allocation8], %s572
        %s574 = sand.u32 %s87, 1
        %s575 = smul.addr %s574, 8
        %s576 = scalar_lea.vmem [#allocation7], %s575
        // Predicated region
        $region81: #{tpu_custom_call.1} parent=75 // pred_check
          %p577 = pneg %p100
        $region82: #{tpu_custom_call.1} parent=75 // pred_check_branch
          %579 = sbr.rel (%p577) target = $region84
        $region83: #{tpu_custom_call.1} parent=75 // pred_region
          %580 = dma.done %s573, 128
        $region84: #{tpu_custom_call.1} parent=75 // pred_fallthru
          _
        %s581 = sand.u32 %s39, 1
        %s582 = scalar_lea.sflag [#allocation8], %s581
        %s583 = sand.u32 %s113, 1
        %s584 = smul.addr %s583, 8
        %s585 = scalar_lea.vmem [#allocation9], %s584
        // Predicated region
        $region85: #{tpu_custom_call.1} parent=75 // pred_check
          %p586 = pneg %p126
        $region86: #{tpu_custom_call.1} parent=75 // pred_check_branch
          %588 = sbr.rel (%p586) target = $region88
        $region87: #{tpu_custom_call.1} parent=75 // pred_region
          %589 = dma.done %s582, 128
        $region88: #{tpu_custom_call.1} parent=75 // pred_fallthru
          _
        %s590 = sand.u32 %s39, 1
        %s591 = scalar_lea.sflag [#allocation11], %s590
        %s592 = sand.u32 %s141, 1
        %s593 = smul.addr %s592, 32
        %s594 = scalar_lea.vmem [#allocation10], %s593
        // Predicated region
        $region89: #{tpu_custom_call.1} parent=75 // pred_check
          %p595 = pneg %p154
        $region90: #{tpu_custom_call.1} parent=75 // pred_check_branch
          %597 = sbr.rel (%p595) target = $region92
        $region91: #{tpu_custom_call.1} parent=75 // pred_region
          %598 = dma.done %s591, 512
        $region92: #{tpu_custom_call.1} parent=75 // pred_fallthru
          _
        // Predicated region
        $region93: #{tpu_custom_call.1} parent=75 // pred_check
          %p599 = pneg %p175
        $region94: #{tpu_custom_call.1} parent=75 // pred_check_branch
          %601 = sbr.rel (%p599) target = $region96
        $region95: #{tpu_custom_call.1} parent=75 // pred_region
          %602 = dma.done [#allocation11], 256
        $region96: #{tpu_custom_call.1} parent=75 // pred_fallthru
          _
        // Predicated region
        $region97: #{tpu_custom_call.1} parent=75 // pred_check
          %p603 = pneg %p217
        $region98: #{tpu_custom_call.1} parent=75 // pred_check_branch
          %605 = sbr.rel (%p603) target = $region100
        $region99: #{tpu_custom_call.1} parent=75 // pred_region
          %606 = dma.done [#allocation14], 256
        $region100: #{tpu_custom_call.1} parent=75 // pred_fallthru
          _
        // Predicated region
        $region101: #{tpu_custom_call.1} parent=75 // pred_check
          %p607 = pneg %p259
        $region102: #{tpu_custom_call.1} parent=75 // pred_check_branch
          %609 = sbr.rel (%p607) target = $region104
        $region103: #{tpu_custom_call.1} parent=75 // pred_region
          %610 = dma.done [#allocation14], 256
        $region104: #{tpu_custom_call.1} parent=75 // pred_fallthru
          _
        // Predicated region
        $region105: #{tpu_custom_call.1} parent=75 // pred_check
          %p611 = pneg %p280
        $region106: #{tpu_custom_call.1} parent=75 // pred_check_branch
          %613 = sbr.rel (%p611) target = $region108
        $region107: #{tpu_custom_call.1} parent=75 // pred_region
          %614 = dma.done [#allocation17], 16
        $region108: #{tpu_custom_call.1} parent=75 // pred_fallthru
          _
        %s615 = sand.u32 %s61, 1
        %s616 = scalar_lea.sflag [#allocation5], %s615
        %s617 = sand.u32 %s61, 1
        %s618 = smul.addr %s617, 8
        %s619 = scalar_lea.vmem [#allocation4], %s618
        %p620 = pneg %p74
        %p621 = pneg %p71
        %s622 = sand.u32 %s39, 1
        %s623 = scalar_lea.sflag [#allocation8], %s622
        %s624 = sand.u32 %s87, 1
        %s625 = smul.addr %s624, 8
        %s626 = scalar_lea.vmem [#allocation7], %s625
        %p627 = pneg %p100
        %p628 = pneg %p97
        %s629 = sand.u32 %s39, 1
        %s630 = scalar_lea.sflag [#allocation8], %s629
        %s631 = sand.u32 %s113, 1
        %s632 = smul.addr %s631, 8
        %s633 = scalar_lea.vmem [#allocation9], %s632
        %p634 = pneg %p126
        %p635 = pneg %p123
        %s636 = sand.u32 %s39, 1
        %s637 = scalar_lea.sflag [#allocation11], %s636
        %s638 = sand.u32 %s141, 1
        %s639 = smul.addr %s638, 32
        %s640 = scalar_lea.vmem [#allocation10], %s639
        %p641 = pneg %p154
        %p642 = pneg %p151
        %p643 = pneg %p175
        %p644 = pneg %p172
        %p645 = pneg %p196
        %p646 = pneg %p193
        %p647 = pneg %p217
        %p648 = pneg %p214
        %p649 = pneg %p238
        %p650 = pneg %p235
        %p651 = pneg %p259
        %p652 = pneg %p256
        %p653 = pneg %p280
        %p654 = pneg %p277
        %p655 = pneg %p301
        %p656 = pneg %p298
        %p657 = pneg %p322
        %p658 = pneg %p319
        %p659 = pneg %p343
        %p660 = pneg %p340
        %p661 = pneg %p364
        %p662 = pneg %p361
        %p663 = pneg %p392
        %p664 = pneg %p389
        %s665 = sand.u32 %s379, 1
        %s666 = scalar_lea.sflag [#allocation6], %s665
        %s667 = sand.u32 %s379, 1
        %s668 = smul.addr %s667, 8
        %s669 = scalar_lea.vmem [#allocation18], %s668
        %p671 = scmp.eq.s32.totalorder %s44, 0
        // Predicated region
        $region109: #{tpu_custom_call.1} parent=75 // pred_check
          %p672 = pneg %p671
        $region110: #{tpu_custom_call.1} parent=75 // pred_check_branch
          %674 = sbr.rel (%p672) target = $region112
        $region111: #{tpu_custom_call.1} parent=75 // pred_region
          %v675 = vld [vmem:[%s576] sm:$0xff]
          %v676 = vpack.c.bf16 %v675, %v675
          %v677 = vld [vmem:[%s585] sm:$0xff]
          %v678 = vpack.c.bf16 %v677, %v677
          %v679 = vld [vmem:[#allocation13] sm:$0xf]
          %v680 = vld [vmem:[#allocation13 + $0x4] sm:$0xf]
          %v681 = vld [vmem:[#allocation13 + $0x8] sm:$0xf]
          %v682 = vld [vmem:[#allocation13 + $0xc] sm:$0xf]
          %v683 = vld [vmem:[%s7] sm:$0x1]
          %v685 = vlaneseq
          %v686 = vshrl.u32 %v685, 7
          %v687 = vsub.s32 0, %v686
          %v688 = vrot.slane %v683, %v687
          %v694 = vunpack.c.l.b16 %v679
          %v695 = vunpack.c.l.b16 %v680
          %v696 = vunpack.c.l.b16 %v681
          %v697 = vunpack.c.l.b16 %v682
          %v698 = vpack.c.b16 %v695, %v694
          %v699 = vpack.c.b16 %v697, %v696
          %vm702 = vcmask 261120
          %v704 = vsel %vm702, %v676, 0
          %706 = vmatprep.subr.bf16.mxu0 0
          %707 = vmatpush1.bf16.msra.mxu0 0
          %708 = vmatprep.subr.bf16.mxu0 0
          %709 = vmatpush1.bf16.msra.mxu0 0
          %710 = vmatprep.subr.bf16.mxu0 0
          %711 = vmatpush1.bf16.msra.mxu0 0
          %712 = vmatprep.subr.bf16.mxu0 0
          %713 = vmatpush1.bf16.msra.mxu0 0
          %714 = vmatprep.subr.bf16.mxu0 0
          %715 = vmatpush1.bf16.msra.mxu0 0
          %716 = vmatprep.subr.bf16.mxu0 0
          %717 = vmatpush1.bf16.msra.mxu0 0
          %718 = vmatprep.subr.bf16.mxu0 0
          %719 = vmatpush1.bf16.msra.mxu0 %v699
          %720 = vmatprep.subr.bf16.mxu0 0
          %721 = vmatpush1.bf16.msra.mxu0 %v698
          %722 = vmatprep.subr.bf16.mxu0 0
          %723 = vmatpush2.bf16.msra.mxu0 0
          %724 = vmatprep.subr.bf16.mxu0 0
          %725 = vmatpush2.bf16.msra.mxu0 0
          %726 = vmatprep.subr.bf16.mxu0 0
          %727 = vmatpush2.bf16.msra.mxu0 0
          %728 = vmatprep.subr.bf16.mxu0 0
          %729 = vmatpush2.bf16.msra.mxu0 0
          %730 = vmatprep.subr.bf16.mxu0 0
          %731 = vmatpush2.bf16.msra.mxu0 0
          %732 = vmatprep.subr.bf16.mxu0 0
          %733 = vmatpush2.bf16.msra.mxu0 0
          %734 = vmatprep.subr.bf16.mxu0 0
          %735 = vmatpush2.bf16.msra.mxu0 0
          %736 = vmatprep.subr.bf16.mxu0 0
          %737 = vmatpush2.bf16.msra.mxu0 0
          %738 = vmatprep.mubr.bf16.mxu0 0
          %739 = vmatmul.mubr.bf16.gmra.mxu0 %v704
          %v740 = vpop.f32.mrf.mxu0
          %v741 = vadd.f32 %v688, %v740
          %v742 = vpop.f32.mrf.mxu0
          %v743 = vpop.f32.mrf.mxu0
          %v744 = vpop.f32.mrf.mxu0
          %745 = vdwg.mxu0
          %v746 = vpack.c.bf16 %v741, %v741
          %vm747 = vcmask 257024
          %748 = vst.msk [vmem:[#allocation2] sm:$0xf] %vm747, %v746
          %v749 = vld [vmem:[#allocation15] sm:$0xf]
          %v750 = vld [vmem:[#allocation15 + $0x4] sm:$0xf]
          %v751 = vld [vmem:[#allocation15 + $0x8] sm:$0xf]
          %v752 = vld [vmem:[#allocation15 + $0xc] sm:$0xf]
          %v753 = vld [vmem:[#allocation16] sm:$0x1]
          %v755 = vlaneseq
          %v756 = vshrl.u32 %v755, 7
          %v757 = vsub.s32 0, %v756
          %v758 = vrot.slane %v753, %v757
          %v764 = vunpack.c.l.b16 %v749
          %v765 = vunpack.c.l.b16 %v750
          %v766 = vunpack.c.l.b16 %v751
          %v767 = vunpack.c.l.b16 %v752
          %v768 = vpack.c.b16 %v765, %v764
          %v769 = vpack.c.b16 %v767, %v766
          %v773 = vsel %vm702, %v678, 0
          %775 = vmatprep.subr.bf16.mxu0 0
          %776 = vmatpush1.bf16.msra.mxu0 0
          %777 = vmatprep.subr.bf16.mxu0 0
          %778 = vmatpush1.bf16.msra.mxu0 0
          %779 = vmatprep.subr.bf16.mxu0 0
          %780 = vmatpush1.bf16.msra.mxu0 0
          %781 = vmatprep.subr.bf16.mxu0 0
          %782 = vmatpush1.bf16.msra.mxu0 0
          %783 = vmatprep.subr.bf16.mxu0 0
          %784 = vmatpush1.bf16.msra.mxu0 0
          %785 = vmatprep.subr.bf16.mxu0 0
          %786 = vmatpush1.bf16.msra.mxu0 0
          %787 = vmatprep.subr.bf16.mxu0 0
          %788 = vmatpush1.bf16.msra.mxu0 %v769
          %789 = vmatprep.subr.bf16.mxu0 0
          %790 = vmatpush1.bf16.msra.mxu0 %v768
          %791 = vmatprep.subr.bf16.mxu0 0
          %792 = vmatpush2.bf16.msra.mxu0 0
          %793 = vmatprep.subr.bf16.mxu0 0
          %794 = vmatpush2.bf16.msra.mxu0 0
          %795 = vmatprep.subr.bf16.mxu0 0
          %796 = vmatpush2.bf16.msra.mxu0 0
          %797 = vmatprep.subr.bf16.mxu0 0
          %798 = vmatpush2.bf16.msra.mxu0 0
          %799 = vmatprep.subr.bf16.mxu0 0
          %800 = vmatpush2.bf16.msra.mxu0 0
          %801 = vmatprep.subr.bf16.mxu0 0
          %802 = vmatpush2.bf16.msra.mxu0 0
          %803 = vmatprep.subr.bf16.mxu0 0
          %804 = vmatpush2.bf16.msra.mxu0 0
          %805 = vmatprep.subr.bf16.mxu0 0
          %806 = vmatpush2.bf16.msra.mxu0 0
          %807 = vmatprep.mubr.bf16.mxu0 0
          %808 = vmatmul.mubr.bf16.gmra.mxu0 %v773
          %v809 = vpop.f32.mrf.mxu0
          %v810 = vadd.f32 %v758, %v809
          %v811 = vpop.f32.mrf.mxu0
          %v812 = vpop.f32.mrf.mxu0
          %v813 = vpop.f32.mrf.mxu0
          %814 = vdwg.mxu0
          %v815 = vpack.c.bf16 %v810, %v810
          %816 = vst.msk [vmem:[#allocation3] sm:$0xf] %vm747, %v815
        $region112: #{tpu_custom_call.1} parent=75 // pred_fallthru
          _
        %v817 = vld [vmem:[%s567] sm:$0xff]
        %v818 = vpack.c.bf16 %v817, %v817
        %v819 = vld [vmem:[#allocation12] sm:$0xf]
        %v820 = vld [vmem:[#allocation12 + $0x4] sm:$0xf]
        %v821 = vld [vmem:[#allocation12 + $0x8] sm:$0xf]
        %v822 = vld [vmem:[#allocation12 + $0xc] sm:$0xf]
        %v823 = vld [vmem:[%s5] sm:$0x1]
        %v825 = vlaneseq
        %v826 = vshrl.u32 %v825, 7
        %v827 = vsub.s32 0, %v826
        %v828 = vrot.slane %v823, %v827
        %v834 = vunpack.c.l.b16 %v819
        %v835 = vunpack.c.l.b16 %v820
        %v836 = vunpack.c.l.b16 %v821
        %v837 = vunpack.c.l.b16 %v822
        %v838 = vpack.c.b16 %v835, %v834
        %v839 = vpack.c.b16 %v837, %v836
        %vm842 = vcmask 261120
        %v844 = vsel %vm842, %v818, 0
        %846 = vmatprep.subr.bf16.mxu0 0
        %847 = vmatpush1.bf16.msra.mxu0 0
        %848 = vmatprep.subr.bf16.mxu0 0
        %849 = vmatpush1.bf16.msra.mxu0 0
        %850 = vmatprep.subr.bf16.mxu0 0
        %851 = vmatpush1.bf16.msra.mxu0 0
        %852 = vmatprep.subr.bf16.mxu0 0
        %853 = vmatpush1.bf16.msra.mxu0 0
        %854 = vmatprep.subr.bf16.mxu0 0
        %855 = vmatpush1.bf16.msra.mxu0 0
        %856 = vmatprep.subr.bf16.mxu0 0
        %857 = vmatpush1.bf16.msra.mxu0 0
        %858 = vmatprep.subr.bf16.mxu0 0
        %859 = vmatpush1.bf16.msra.mxu0 %v839
        %860 = vmatprep.subr.bf16.mxu0 0
        %861 = vmatpush1.bf16.msra.mxu0 %v838
        %862 = vmatprep.subr.bf16.mxu0 0
        %863 = vmatpush2.bf16.msra.mxu0 0
        %864 = vmatprep.subr.bf16.mxu0 0
        %865 = vmatpush2.bf16.msra.mxu0 0
        %866 = vmatprep.subr.bf16.mxu0 0
        %867 = vmatpush2.bf16.msra.mxu0 0
        %868 = vmatprep.subr.bf16.mxu0 0
        %869 = vmatpush2.bf16.msra.mxu0 0
        %870 = vmatprep.subr.bf16.mxu0 0
        %871 = vmatpush2.bf16.msra.mxu0 0
        %872 = vmatprep.subr.bf16.mxu0 0
        %873 = vmatpush2.bf16.msra.mxu0 0
        %874 = vmatprep.subr.bf16.mxu0 0
        %875 = vmatpush2.bf16.msra.mxu0 0
        %876 = vmatprep.subr.bf16.mxu0 0
        %877 = vmatpush2.bf16.msra.mxu0 0
        %878 = vmatprep.mubr.bf16.mxu0 0
        %879 = vmatmul.mubr.bf16.gmra.mxu0 %v844
        %v880 = vpop.f32.mrf.mxu0
        %v881 = vadd.f32 %v828, %v880
        %v882 = vpop.f32.mrf.mxu0
        %v883 = vpop.f32.mrf.mxu0
        %v884 = vpop.f32.mrf.mxu0
        %885 = vdwg.mxu0
        %v886 = vpack.c.bf16 %v881, %v881
        %v887 = vld [vmem:[#allocation2] sm:$0xf]
        %v888 = vld [vmem:[#allocation3] sm:$0xf]
        %vm889 = vcmask 64512
        %v891 = vsel %vm889, %v886, 0
        %v894 = vsel %vm889, %v887, 0
        %896 = vmatprep.subr.bf16.mxu0 0
        %897 = vmatpush1.bf16.xpose.msra.mxu0 0
        %898 = vmatprep.subr.bf16.mxu0 0
        %899 = vmatpush1.bf16.xpose.msra.mxu0 0
        %900 = vmatprep.subr.bf16.mxu0 0
        %901 = vmatpush1.bf16.xpose.msra.mxu0 0
        %902 = vmatprep.subr.bf16.mxu0 0
        %903 = vmatpush1.bf16.xpose.msra.mxu0 0
        %904 = vmatprep.subr.bf16.mxu0 0
        %905 = vmatpush1.bf16.xpose.msra.mxu0 0
        %906 = vmatprep.subr.bf16.mxu0 0
        %907 = vmatpush1.bf16.xpose.msra.mxu0 0
        %908 = vmatprep.subr.bf16.mxu0 0
        %909 = vmatpush1.bf16.xpose.msra.mxu0 0
        %910 = vmatprep.subr.bf16.mxu0 0
        %911 = vmatpush1.bf16.xpose.msra.mxu0 %v894
        %912 = vmatprep.subr.bf16.mxu0 0
        %913 = vmatpush2.bf16.xpose.msra.mxu0 0
        %914 = vmatprep.subr.bf16.mxu0 0
        %915 = vmatpush2.bf16.xpose.msra.mxu0 0
        %916 = vmatprep.subr.bf16.mxu0 0
        %917 = vmatpush2.bf16.xpose.msra.mxu0 0
        %918 = vmatprep.subr.bf16.mxu0 0
        %919 = vmatpush2.bf16.xpose.msra.mxu0 0
        %920 = vmatprep.subr.bf16.mxu0 0
        %921 = vmatpush2.bf16.xpose.msra.mxu0 0
        %922 = vmatprep.subr.bf16.mxu0 0
        %923 = vmatpush2.bf16.xpose.msra.mxu0 0
        %924 = vmatprep.subr.bf16.mxu0 0
        %925 = vmatpush2.bf16.xpose.msra.mxu0 0
        %926 = vmatprep.subr.bf16.mxu0 0
        %927 = vmatpush2.bf16.xpose.msra.mxu0 0
        %928 = vmatprep.mubr.bf16.mxu0 0
        %929 = vmatmul.mubr.bf16.gmra.mxu0 %v891
        %v930 = vpop.f32.mrf.mxu0
        %v931 = vadd.f32 0.0, %v930
        %v932 = vpop.f32.mrf.mxu0
        %v933 = vpop.f32.mrf.mxu0
        %v934 = vpop.f32.mrf.mxu0
        %935 = vdwg.mxu0
        %v936 = vld [vmem:[%s594] sm:$0xff]
        %v937 = vmax.f32 %v936, 1e-06
        %v938 = vlog2.pop %v937
        %v939 = vmul.f32 %v938, 0.6931472
        %v940 = vadd.f32 %v939, %v931
        %v941 = vsel %vm889, %v940, -inf
        %942 = vmax.xlane.f32.xlu0 %v941
        %v943 = vpop.xlane.xlu0 %942
        %v944 = vsub.f32 %v940, %v943
        %v945 = vmul.f32 %v944, 1.442695
        %v946 = vpow.pop %v945
        %v947 = vsel %vm889, %v946, 0.0
        %948 = vadd.xlane.f32.xlu0 %v947
        %v949 = vpop.xlane.xlu0 %948
        %v950 = vrcp.pop %v949
        %v951 = vmul.f32 %v946, %v950
        %v952 = vpack.c.bf16 %v951, %v951
        %v954 = vsel %vm889, %v952, 0
        %vm956 = vcmask 1043456
        %v958 = vsel %vm956, %v888, 0
        %960 = vmatprep.subr.bf16.mxu0 0
        %961 = vmatpush1.bf16.msra.mxu0 0
        %962 = vmatprep.subr.bf16.mxu0 0
        %963 = vmatpush1.bf16.msra.mxu0 0
        %964 = vmatprep.subr.bf16.mxu0 0
        %965 = vmatpush1.bf16.msra.mxu0 0
        %966 = vmatprep.subr.bf16.mxu0 0
        %967 = vmatpush1.bf16.msra.mxu0 0
        %968 = vmatprep.subr.bf16.mxu0 0
        %969 = vmatpush1.bf16.msra.mxu0 0
        %970 = vmatprep.subr.bf16.mxu0 0
        %971 = vmatpush1.bf16.msra.mxu0 0
        %972 = vmatprep.subr.bf16.mxu0 0
        %973 = vmatpush1.bf16.msra.mxu0 0
        %974 = vmatprep.subr.bf16.mxu0 0
        %975 = vmatpush1.bf16.msra.mxu0 %v958
        %976 = vmatprep.subr.bf16.mxu0 0
        %977 = vmatpush2.bf16.msra.mxu0 0
        %978 = vmatprep.subr.bf16.mxu0 0
        %979 = vmatpush2.bf16.msra.mxu0 0
        %980 = vmatprep.subr.bf16.mxu0 0
        %981 = vmatpush2.bf16.msra.mxu0 0
        %982 = vmatprep.subr.bf16.mxu0 0
        %983 = vmatpush2.bf16.msra.mxu0 0
        %984 = vmatprep.subr.bf16.mxu0 0
        %985 = vmatpush2.bf16.msra.mxu0 0
        %986 = vmatprep.subr.bf16.mxu0 0
        %987 = vmatpush2.bf16.msra.mxu0 0
        %988 = vmatprep.subr.bf16.mxu0 0
        %989 = vmatpush2.bf16.msra.mxu0 0
        %990 = vmatprep.subr.bf16.mxu0 0
        %991 = vmatpush2.bf16.msra.mxu0 0
        %992 = vmatprep.mubr.bf16.mxu0 0
        %993 = vmatmul.mubr.bf16.gmra.mxu0 %v954
        %v994 = vpop.f32.mrf.mxu0
        %v995 = vadd.f32 0.0, %v994
        %v996 = vpop.f32.mrf.mxu0
        %v997 = vpop.f32.mrf.mxu0
        %v998 = vpop.f32.mrf.mxu0
        %999 = vdwg.mxu0
        %1001 = vrot.lane.b32.xlu0 %v886, 120
        %v1002 = vpop.permute.xlu0 %1001
        %v1004 = vunpack.c.l.b16 %v887
        %v1005 = vpack.c.b16 %v1004, %v1004
        %1006 = vrot.lane.b32.xlu0 %v1005, 120
        %v1007 = vpop.permute.xlu0 %1006
        %v1009 = vsel %vm889, %v1002, 0
        %v1012 = vsel %vm889, %v1007, 0
        %1014 = vmatprep.subr.bf16.mxu0 0
        %1015 = vmatpush1.bf16.xpose.msra.mxu0 0
        %1016 = vmatprep.subr.bf16.mxu0 0
        %1017 = vmatpush1.bf16.xpose.msra.mxu0 0
        %1018 = vmatprep.subr.bf16.mxu0 0
        %1019 = vmatpush1.bf16.xpose.msra.mxu0 0
        %1020 = vmatprep.subr.bf16.mxu0 0
        %1021 = vmatpush1.bf16.xpose.msra.mxu0 0
        %1022 = vmatprep.subr.bf16.mxu0 0
        %1023 = vmatpush1.bf16.xpose.msra.mxu0 0
        %1024 = vmatprep.subr.bf16.mxu0 0
        %1025 = vmatpush1.bf16.xpose.msra.mxu0 0
        %1026 = vmatprep.subr.bf16.mxu0 0
        %1027 = vmatpush1.bf16.xpose.msra.mxu0 0
        %1028 = vmatprep.subr.bf16.mxu0 0
        %1029 = vmatpush1.bf16.xpose.msra.mxu0 %v1012
        %1030 = vmatprep.subr.bf16.mxu0 0
        %1031 = vmatpush2.bf16.xpose.msra.mxu0 0
        %1032 = vmatprep.subr.bf16.mxu0 0
        %1033 = vmatpush2.bf16.xpose.msra.mxu0 0
        %1034 = vmatprep.subr.bf16.mxu0 0
        %1035 = vmatpush2.bf16.xpose.msra.mxu0 0
        %1036 = vmatprep.subr.bf16.mxu0 0
        %1037 = vmatpush2.bf16.xpose.msra.mxu0 0
        %1038 = vmatprep.subr.bf16.mxu0 0
        %1039 = vmatpush2.bf16.xpose.msra.mxu0 0
        %1040 = vmatprep.subr.bf16.mxu0 0
        %1041 = vmatpush2.bf16.xpose.msra.mxu0 0
        %1042 = vmatprep.subr.bf16.mxu0 0
        %1043 = vmatpush2.bf16.xpose.msra.mxu0 0
        %1044 = vmatprep.subr.bf16.mxu0 0
        %1045 = vmatpush2.bf16.xpose.msra.mxu0 0
        %1046 = vmatprep.mubr.bf16.mxu0 0
        %1047 = vmatmul.mubr.bf16.gmra.mxu0 %v1009
        %v1048 = vpop.f32.mrf.mxu0
        %v1049 = vadd.f32 0.0, %v1048
        %v1050 = vpop.f32.mrf.mxu0
        %v1051 = vpop.f32.mrf.mxu0
        %v1052 = vpop.f32.mrf.mxu0
        %1053 = vdwg.mxu0
        %s1054 = scalar_lea.vmem %s594, 8 [#allocation10]
        %v1055 = vld [vmem:[%s1054] sm:$0xff]
        %v1056 = vmax.f32 %v1055, 1e-06
        %v1057 = vlog2.pop %v1056
        %v1058 = vmul.f32 %v1057, 0.6931472
        %v1059 = vadd.f32 %v1058, %v1049
        %v1060 = vsel %vm889, %v1059, -inf
        %1061 = vmax.xlane.f32.xlu0 %v1060
        %v1062 = vpop.xlane.xlu0 %1061
        %v1063 = vsub.f32 %v1059, %v1062
        %v1064 = vmul.f32 %v1063, 1.442695
        %v1065 = vpow.pop %v1064
        %v1066 = vsel %vm889, %v1065, 0.0
        %1067 = vadd.xlane.f32.xlu0 %v1066
        %v1068 = vpop.xlane.xlu0 %1067
        %v1069 = vrcp.pop %v1068
        %v1070 = vmul.f32 %v1065, %v1069
        %v1071 = vpack.c.bf16 %v1070, %v1070
        %v1073 = vunpack.c.l.b16 %v888
        %v1074 = vpack.c.b16 %v1073, %v1073
        %1075 = vrot.lane.b32.xlu0 %v1074, 120
        %v1076 = vpop.permute.xlu0 %1075
        %v1078 = vsel %vm889, %v1071, 0
        %v1081 = vsel %vm956, %v1076, 0
        %1083 = vmatprep.subr.bf16.mxu0 0
        %1084 = vmatpush1.bf16.msra.mxu0 0
        %1085 = vmatprep.subr.bf16.mxu0 0
        %1086 = vmatpush1.bf16.msra.mxu0 0
        %1087 = vmatprep.subr.bf16.mxu0 0
        %1088 = vmatpush1.bf16.msra.mxu0 0
        %1089 = vmatprep.subr.bf16.mxu0 0
        %1090 = vmatpush1.bf16.msra.mxu0 0
        %1091 = vmatprep.subr.bf16.mxu0 0
        %1092 = vmatpush1.bf16.msra.mxu0 0
        %1093 = vmatprep.subr.bf16.mxu0 0
        %1094 = vmatpush1.bf16.msra.mxu0 0
        %1095 = vmatprep.subr.bf16.mxu0 0
        %1096 = vmatpush1.bf16.msra.mxu0 0
        %1097 = vmatprep.subr.bf16.mxu0 0
        %1098 = vmatpush1.bf16.msra.mxu0 %v1081
        %1099 = vmatprep.subr.bf16.mxu0 0
        %1100 = vmatpush2.bf16.msra.mxu0 0
        %1101 = vmatprep.subr.bf16.mxu0 0
        %1102 = vmatpush2.bf16.msra.mxu0 0
        %1103 = vmatprep.subr.bf16.mxu0 0
        %1104 = vmatpush2.bf16.msra.mxu0 0
        %1105 = vmatprep.subr.bf16.mxu0 0
        %1106 = vmatpush2.bf16.msra.mxu0 0
        %1107 = vmatprep.subr.bf16.mxu0 0
        %1108 = vmatpush2.bf16.msra.mxu0 0
        %1109 = vmatprep.subr.bf16.mxu0 0
        %1110 = vmatpush2.bf16.msra.mxu0 0
        %1111 = vmatprep.subr.bf16.mxu0 0
        %1112 = vmatpush2.bf16.msra.mxu0 0
        %1113 = vmatprep.subr.bf16.mxu0 0
        %1114 = vmatpush2.bf16.msra.mxu0 0
        %1115 = vmatprep.mubr.bf16.mxu0 0
        %1116 = vmatmul.mubr.bf16.gmra.mxu0 %v1078
        %v1117 = vpop.f32.mrf.mxu0
        %v1118 = vadd.f32 0.0, %v1117
        %v1119 = vpop.f32.mrf.mxu0
        %v1120 = vpop.f32.mrf.mxu0
        %v1121 = vpop.f32.mrf.mxu0
        %1122 = vdwg.mxu0
        %1123 = vrot.lane.b32.xlu0 %v886, 112
        %v1124 = vpop.permute.xlu0 %1123
        %1125 = vrot.lane.b32.xlu0 %v1005, 112
        %v1126 = vpop.permute.xlu0 %1125
        %v1128 = vsel %vm889, %v1124, 0
        %v1131 = vsel %vm889, %v1126, 0
        %1133 = vmatprep.subr.bf16.mxu0 0
        %1134 = vmatpush1.bf16.xpose.msra.mxu0 0
        %1135 = vmatprep.subr.bf16.mxu0 0
        %1136 = vmatpush1.bf16.xpose.msra.mxu0 0
        %1137 = vmatprep.subr.bf16.mxu0 0
        %1138 = vmatpush1.bf16.xpose.msra.mxu0 0
        %1139 = vmatprep.subr.bf16.mxu0 0
        %1140 = vmatpush1.bf16.xpose.msra.mxu0 0
        %1141 = vmatprep.subr.bf16.mxu0 0
        %1142 = vmatpush1.bf16.xpose.msra.mxu0 0
        %1143 = vmatprep.subr.bf16.mxu0 0
        %1144 = vmatpush1.bf16.xpose.msra.mxu0 0
        %1145 = vmatprep.subr.bf16.mxu0 0
        %1146 = vmatpush1.bf16.xpose.msra.mxu0 0
        %1147 = vmatprep.subr.bf16.mxu0 0
        %1148 = vmatpush1.bf16.xpose.msra.mxu0 %v1131
        %1149 = vmatprep.subr.bf16.mxu0 0
        %1150 = vmatpush2.bf16.xpose.msra.mxu0 0
        %1151 = vmatprep.subr.bf16.mxu0 0
        %1152 = vmatpush2.bf16.xpose.msra.mxu0 0
        %1153 = vmatprep.subr.bf16.mxu0 0
        %1154 = vmatpush2.bf16.xpose.msra.mxu0 0
        %1155 = vmatprep.subr.bf16.mxu0 0
        %1156 = vmatpush2.bf16.xpose.msra.mxu0 0
        %1157 = vmatprep.subr.bf16.mxu0 0
        %1158 = vmatpush2.bf16.xpose.msra.mxu0 0
        %1159 = vmatprep.subr.bf16.mxu0 0
        %1160 = vmatpush2.bf16.xpose.msra.mxu0 0
        %1161 = vmatprep.subr.bf16.mxu0 0
        %1162 = vmatpush2.bf16.xpose.msra.mxu0 0
        %1163 = vmatprep.subr.bf16.mxu0 0
        %1164 = vmatpush2.bf16.xpose.msra.mxu0 0
        %1165 = vmatprep.mubr.bf16.mxu0 0
        %1166 = vmatmul.mubr.bf16.gmra.mxu0 %v1128
        %v1167 = vpop.f32.mrf.mxu0
        %v1168 = vadd.f32 0.0, %v1167
        %v1169 = vpop.f32.mrf.mxu0
        %v1170 = vpop.f32.mrf.mxu0
        %v1171 = vpop.f32.mrf.mxu0
        %1172 = vdwg.mxu0
        %s1173 = scalar_lea.vmem %s594, 16 [#allocation10]
        %v1174 = vld [vmem:[%s1173] sm:$0xff]
        %v1175 = vmax.f32 %v1174, 1e-06
        %v1176 = vlog2.pop %v1175
        %v1177 = vmul.f32 %v1176, 0.6931472
        %v1178 = vadd.f32 %v1177, %v1168
        %v1179 = vsel %vm889, %v1178, -inf
        %1180 = vmax.xlane.f32.xlu0 %v1179
        %v1181 = vpop.xlane.xlu0 %1180
        %v1182 = vsub.f32 %v1178, %v1181
        %v1183 = vmul.f32 %v1182, 1.442695
        %v1184 = vpow.pop %v1183
        %v1185 = vsel %vm889, %v1184, 0.0
        %1186 = vadd.xlane.f32.xlu0 %v1185
        %v1187 = vpop.xlane.xlu0 %1186
        %v1188 = vrcp.pop %v1187
        %v1189 = vmul.f32 %v1184, %v1188
        %v1190 = vpack.c.bf16 %v1189, %v1189
        %1191 = vrot.lane.b32.xlu0 %v1074, 112
        %v1192 = vpop.permute.xlu0 %1191
        %v1194 = vsel %vm889, %v1190, 0
        %v1197 = vsel %vm956, %v1192, 0
        %1199 = vmatprep.subr.bf16.mxu0 0
        %1200 = vmatpush1.bf16.msra.mxu0 0
        %1201 = vmatprep.subr.bf16.mxu0 0
        %1202 = vmatpush1.bf16.msra.mxu0 0
        %1203 = vmatprep.subr.bf16.mxu0 0
        %1204 = vmatpush1.bf16.msra.mxu0 0
        %1205 = vmatprep.subr.bf16.mxu0 0
        %1206 = vmatpush1.bf16.msra.mxu0 0
        %1207 = vmatprep.subr.bf16.mxu0 0
        %1208 = vmatpush1.bf16.msra.mxu0 0
        %1209 = vmatprep.subr.bf16.mxu0 0
        %1210 = vmatpush1.bf16.msra.mxu0 0
        %1211 = vmatprep.subr.bf16.mxu0 0
        %1212 = vmatpush1.bf16.msra.mxu0 0
        %1213 = vmatprep.subr.bf16.mxu0 0
        %1214 = vmatpush1.bf16.msra.mxu0 %v1197
        %1215 = vmatprep.subr.bf16.mxu0 0
        %1216 = vmatpush2.bf16.msra.mxu0 0
        %1217 = vmatprep.subr.bf16.mxu0 0
        %1218 = vmatpush2.bf16.msra.mxu0 0
        %1219 = vmatprep.subr.bf16.mxu0 0
        %1220 = vmatpush2.bf16.msra.mxu0 0
        %1221 = vmatprep.subr.bf16.mxu0 0
        %1222 = vmatpush2.bf16.msra.mxu0 0
        %1223 = vmatprep.subr.bf16.mxu0 0
        %1224 = vmatpush2.bf16.msra.mxu0 0
        %1225 = vmatprep.subr.bf16.mxu0 0
        %1226 = vmatpush2.bf16.msra.mxu0 0
        %1227 = vmatprep.subr.bf16.mxu0 0
        %1228 = vmatpush2.bf16.msra.mxu0 0
        %1229 = vmatprep.subr.bf16.mxu0 0
        %1230 = vmatpush2.bf16.msra.mxu0 0
        %1231 = vmatprep.mubr.bf16.mxu0 0
        %1232 = vmatmul.mubr.bf16.gmra.mxu0 %v1194
        %v1233 = vpop.f32.mrf.mxu0
        %v1234 = vadd.f32 0.0, %v1233
        %v1235 = vpop.f32.mrf.mxu0
        %v1236 = vpop.f32.mrf.mxu0
        %v1237 = vpop.f32.mrf.mxu0
        %1238 = vdwg.mxu0
        %1239 = vrot.lane.b32.xlu0 %v886, 104
        %v1240 = vpop.permute.xlu0 %1239
        %1241 = vrot.lane.b32.xlu0 %v1005, 104
        %v1242 = vpop.permute.xlu0 %1241
        %v1244 = vsel %vm889, %v1240, 0
        %v1247 = vsel %vm889, %v1242, 0
        %1249 = vmatprep.subr.bf16.mxu0 0
        %1250 = vmatpush1.bf16.xpose.msra.mxu0 0
        %1251 = vmatprep.subr.bf16.mxu0 0
        %1252 = vmatpush1.bf16.xpose.msra.mxu0 0
        %1253 = vmatprep.subr.bf16.mxu0 0
        %1254 = vmatpush1.bf16.xpose.msra.mxu0 0
        %1255 = vmatprep.subr.bf16.mxu0 0
        %1256 = vmatpush1.bf16.xpose.msra.mxu0 0
        %1257 = vmatprep.subr.bf16.mxu0 0
        %1258 = vmatpush1.bf16.xpose.msra.mxu0 0
        %1259 = vmatprep.subr.bf16.mxu0 0
        %1260 = vmatpush1.bf16.xpose.msra.mxu0 0
        %1261 = vmatprep.subr.bf16.mxu0 0
        %1262 = vmatpush1.bf16.xpose.msra.mxu0 0
        %1263 = vmatprep.subr.bf16.mxu0 0
        %1264 = vmatpush1.bf16.xpose.msra.mxu0 %v1247
        %1265 = vmatprep.subr.bf16.mxu0 0
        %1266 = vmatpush2.bf16.xpose.msra.mxu0 0
        %1267 = vmatprep.subr.bf16.mxu0 0
        %1268 = vmatpush2.bf16.xpose.msra.mxu0 0
        %1269 = vmatprep.subr.bf16.mxu0 0
        %1270 = vmatpush2.bf16.xpose.msra.mxu0 0
        %1271 = vmatprep.subr.bf16.mxu0 0
        %1272 = vmatpush2.bf16.xpose.msra.mxu0 0
        %1273 = vmatprep.subr.bf16.mxu0 0
        %1274 = vmatpush2.bf16.xpose.msra.mxu0 0
        %1275 = vmatprep.subr.bf16.mxu0 0
        %1276 = vmatpush2.bf16.xpose.msra.mxu0 0
        %1277 = vmatprep.subr.bf16.mxu0 0
        %1278 = vmatpush2.bf16.xpose.msra.mxu0 0
        %1279 = vmatprep.subr.bf16.mxu0 0
        %1280 = vmatpush2.bf16.xpose.msra.mxu0 0
        %1281 = vmatprep.mubr.bf16.mxu0 0
        %1282 = vmatmul.mubr.bf16.gmra.mxu0 %v1244
        %v1283 = vpop.f32.mrf.mxu0
        %v1284 = vadd.f32 0.0, %v1283
        %v1285 = vpop.f32.mrf.mxu0
        %v1286 = vpop.f32.mrf.mxu0
        %v1287 = vpop.f32.mrf.mxu0
        %1288 = vdwg.mxu0
        %s1289 = scalar_lea.vmem %s594, 24 [#allocation10]
        %v1290 = vld [vmem:[%s1289] sm:$0xff]
        %v1291 = vmax.f32 %v1290, 1e-06
        %v1292 = vlog2.pop %v1291
        %v1293 = vmul.f32 %v1292, 0.6931472
        %v1294 = vadd.f32 %v1293, %v1284
        %v1295 = vsel %vm889, %v1294, -inf
        %1296 = vmax.xlane.f32.xlu0 %v1295
        %v1297 = vpop.xlane.xlu0 %1296
        %v1298 = vsub.f32 %v1294, %v1297
        %v1299 = vmul.f32 %v1298, 1.442695
        %v1300 = vpow.pop %v1299
        %v1301 = vsel %vm889, %v1300, 0.0
        %1302 = vadd.xlane.f32.xlu0 %v1301
        %v1303 = vpop.xlane.xlu0 %1302
        %v1304 = vrcp.pop %v1303
        %v1305 = vmul.f32 %v1300, %v1304
        %v1306 = vpack.c.bf16 %v1305, %v1305
        %1307 = vrot.lane.b32.xlu0 %v1074, 104
        %v1308 = vpop.permute.xlu0 %1307
        %v1310 = vsel %vm889, %v1306, 0
        %v1313 = vsel %vm956, %v1308, 0
        %1315 = vmatprep.subr.bf16.mxu0 0
        %1316 = vmatpush1.bf16.msra.mxu0 0
        %1317 = vmatprep.subr.bf16.mxu0 0
        %1318 = vmatpush1.bf16.msra.mxu0 0
        %1319 = vmatprep.subr.bf16.mxu0 0
        %1320 = vmatpush1.bf16.msra.mxu0 0
        %1321 = vmatprep.subr.bf16.mxu0 0
        %1322 = vmatpush1.bf16.msra.mxu0 0
        %1323 = vmatprep.subr.bf16.mxu0 0
        %1324 = vmatpush1.bf16.msra.mxu0 0
        %1325 = vmatprep.subr.bf16.mxu0 0
        %1326 = vmatpush1.bf16.msra.mxu0 0
        %1327 = vmatprep.subr.bf16.mxu0 0
        %1328 = vmatpush1.bf16.msra.mxu0 0
        %1329 = vmatprep.subr.bf16.mxu0 0
        %1330 = vmatpush1.bf16.msra.mxu0 %v1313
        %1331 = vmatprep.subr.bf16.mxu0 0
        %1332 = vmatpush2.bf16.msra.mxu0 0
        %1333 = vmatprep.subr.bf16.mxu0 0
        %1334 = vmatpush2.bf16.msra.mxu0 0
        %1335 = vmatprep.subr.bf16.mxu0 0
        %1336 = vmatpush2.bf16.msra.mxu0 0
        %1337 = vmatprep.subr.bf16.mxu0 0
        %1338 = vmatpush2.bf16.msra.mxu0 0
        %1339 = vmatprep.subr.bf16.mxu0 0
        %1340 = vmatpush2.bf16.msra.mxu0 0
        %1341 = vmatprep.subr.bf16.mxu0 0
        %1342 = vmatpush2.bf16.msra.mxu0 0
        %1343 = vmatprep.subr.bf16.mxu0 0
        %1344 = vmatpush2.bf16.msra.mxu0 0
        %1345 = vmatprep.subr.bf16.mxu0 0
        %1346 = vmatpush2.bf16.msra.mxu0 0
        %1347 = vmatprep.mubr.bf16.mxu0 0
        %1348 = vmatmul.mubr.bf16.gmra.mxu0 %v1310
        %v1349 = vpop.f32.mrf.mxu0
        %v1350 = vadd.f32 0.0, %v1349
        %v1351 = vpop.f32.mrf.mxu0
        %v1352 = vpop.f32.mrf.mxu0
        %v1353 = vpop.f32.mrf.mxu0
        %1354 = vdwg.mxu0
        %1356 = vrot.lane.b32.xlu0 %v1118, 8
        %v1357 = vpop.permute.xlu0 %1356
        %1360 = vrot.lane.b32.xlu0 %v1234, 16
        %v1361 = vpop.permute.xlu0 %1360
        %1364 = vrot.lane.b32.xlu0 %v1350, 24
        %v1365 = vpop.permute.xlu0 %1364
        %v1367 = vsel %vm889, %v995, %v1357
        %vm1368 = vcmask 130048
        %v1369 = vsel %vm1368, %v1367, %v1361
        %vm1370 = vcmask 195584
        %v1371 = vsel %vm1370, %v1369, %v1365
        %v1372 = vpack.c.bf16 %v1371, %v1371
        %v1373 = vld [vmem:[%s10] sm:$0xf]
        %v1374 = vld [vmem:[%s10 + $0x4] sm:$0xf]
        %v1375 = vld [vmem:[%s10 + $0x8] sm:$0xf]
        %v1376 = vld [vmem:[%s10 + $0xc] sm:$0xf]
        %v1377 = vld [vmem:[%s11] sm:$0x1]
        %v1379 = vlaneseq
        %v1380 = vshrl.u32 %v1379, 7
        %v1381 = vsub.s32 0, %v1380
        %v1382 = vrot.slane %v1377, %v1381
        %v1388 = vunpack.c.l.b16 %v1373
        %v1389 = vunpack.c.l.b16 %v1374
        %v1390 = vunpack.c.l.b16 %v1375
        %v1391 = vunpack.c.l.b16 %v1376
        %v1392 = vpack.c.b16 %v1389, %v1388
        %v1393 = vpack.c.b16 %v1391, %v1390
        %v1397 = vsel %vm842, %v1372, 0
        %1399 = vmatprep.subr.bf16.mxu0 0
        %1400 = vmatpush1.bf16.msra.mxu0 0
        %1401 = vmatprep.subr.bf16.mxu0 0
        %1402 = vmatpush1.bf16.msra.mxu0 0
        %1403 = vmatprep.subr.bf16.mxu0 0
        %1404 = vmatpush1.bf16.msra.mxu0 0
        %1405 = vmatprep.subr.bf16.mxu0 0
        %1406 = vmatpush1.bf16.msra.mxu0 0
        %1407 = vmatprep.subr.bf16.mxu0 0
        %1408 = vmatpush1.bf16.msra.mxu0 0
        %1409 = vmatprep.subr.bf16.mxu0 0
        %1410 = vmatpush1.bf16.msra.mxu0 0
        %1411 = vmatprep.subr.bf16.mxu0 0
        %1412 = vmatpush1.bf16.msra.mxu0 %v1393
        %1413 = vmatprep.subr.bf16.mxu0 0
        %1414 = vmatpush1.bf16.msra.mxu0 %v1392
        %1415 = vmatprep.subr.bf16.mxu0 0
        %1416 = vmatpush2.bf16.msra.mxu0 0
        %1417 = vmatprep.subr.bf16.mxu0 0
        %1418 = vmatpush2.bf16.msra.mxu0 0
        %1419 = vmatprep.subr.bf16.mxu0 0
        %1420 = vmatpush2.bf16.msra.mxu0 0
        %1421 = vmatprep.subr.bf16.mxu0 0
        %1422 = vmatpush2.bf16.msra.mxu0 0
        %1423 = vmatprep.subr.bf16.mxu0 0
        %1424 = vmatpush2.bf16.msra.mxu0 0
        %1425 = vmatprep.subr.bf16.mxu0 0
        %1426 = vmatpush2.bf16.msra.mxu0 0
        %1427 = vmatprep.subr.bf16.mxu0 0
        %1428 = vmatpush2.bf16.msra.mxu0 0
        %1429 = vmatprep.subr.bf16.mxu0 0
        %1430 = vmatpush2.bf16.msra.mxu0 0
        %1431 = vmatprep.mubr.bf16.mxu0 0
        %1432 = vmatmul.mubr.bf16.gmra.mxu0 %v1397
        %v1433 = vpop.f32.mrf.mxu0
        %v1434 = vadd.f32 %v1382, %v1433
        %v1435 = vpop.f32.mrf.mxu0
        %v1436 = vpop.f32.mrf.mxu0
        %v1437 = vpop.f32.mrf.mxu0
        %1438 = vdwg.mxu0
        %v1439 = vadd.f32 %v817, %v1434
        %v1440 = vsel %vm842, %v1439, 0.0
        %1441 = vadd.xlane.f32.xlu0 %v1440
        %v1442 = vpop.xlane.xlu0 %1441
        %v1443 = vrcp.pop 32.0
        %v1444 = vmul.f32 %v1442, %v1443
        %v1445 = vsub.f32 %v1439, %v1444
        %v1446 = vmul.f32 %v1445, %v1445
        %v1447 = vsel %vm842, %v1446, 0.0
        %1448 = vadd.xlane.f32.xlu0 %v1447
        %v1449 = vpop.xlane.xlu0 %1448
        %v1450 = vmul.f32 %v1449, %v1443
        %v1451 = vadd.f32 %v1450, 1e-05
        %v1452 = vrsqrt.pop %v1451
        %v1453 = vmul.f32 %v1445, %v1452
        %v1454 = vld [vmem:[%s12] sm:$0x1]
        %v1456 = vlaneseq
        %v1457 = vshrl.u32 %v1456, 7
        %v1458 = vsub.s32 0, %v1457
        %v1459 = vrot.slane %v1454, %v1458
        %v1461 = vmul.f32 %v1453, %v1459
        %v1462 = vld [vmem:[%s13] sm:$0x1]
        %v1464 = vlaneseq
        %v1465 = vshrl.u32 %v1464, 7
        %v1466 = vsub.s32 0, %v1465
        %v1467 = vrot.slane %v1462, %v1466
        %v1469 = vadd.f32 %v1461, %v1467
        %1470 = vst.msk [vmem:[%s669] sm:$0xff] %vm842, %v1469
        %s1471 = sand.u32 %s379, 1
        %s1472 = scalar_lea.sflag [#allocation6], %s1471
        %s1473 = sand.u32 %s379, 1
        %s1474 = smul.addr %s1473, 8
        %s1475 = scalar_lea.vmem [#allocation18], %s1474
        // Predicated region
        $region113: #{tpu_custom_call.1} parent=75 // pred_check
          %p1476 = pneg %p389
        $region114: #{tpu_custom_call.1} parent=75 // pred_check_branch
          %1478 = sbr.rel (%p1476) target = $region116
        $region115: #{tpu_custom_call.1} parent=75 // pred_region
          %s1480 = ssub.s32 128, 128
          %1481 = vsyncadd %s1472, %s1480
          %s1482 = sadd.s32 %s44, %s43
          %s1483 = smul.addr %s1482, 128
          %s1484 = scalar_lea.hbm %s14, %s1483
          %s1486 = sshll.u32 %s1475, 4
          %s1487 = int_to_ptr.vmem [resolvable:$true] %s1486
          %1489 = dma.vmem_to_hbm [thread:$0]  %s1487, 128, %s1484, %s1472
        $region116: #{tpu_custom_call.1} parent=75 // pred_fallthru
          _
      $region76: #{tpu_custom_call.1} parent=5 // pred_fallthru
        _
      %p1490 = scmp.le.s32.totalorder 2, %s34
      // Predicated region
      $region117: #{tpu_custom_call.1} parent=5 // pred_check
        %p1491 = pneg %p1490
      $region118: #{tpu_custom_call.1} parent=5 // pred_check_branch
        %1493 = sbr.rel (%p1491) target = $region120
      $region119: #{tpu_custom_call.1} parent=5 // pred_region
        %s1494 = ssub.s32 %s34, 2
        // Predicated region
        $region121: #{tpu_custom_call.1} parent=119 // pred_check
          %p1495 = pneg %p395
        $region122: #{tpu_custom_call.1} parent=119 // pred_check_branch
          %1497 = sbr.rel (%p1495) target = $region124
        $region123: #{tpu_custom_call.1} parent=119 // pred_region
          %s1498 = sand.u32 %s380, 1
          %s1499 = scalar_lea.sflag [#allocation6], %s1498
          %s1500 = sand.u32 %s380, 1
          %s1501 = smul.addr %s1500, 8
          %s1502 = scalar_lea.vmem [#allocation18], %s1501
          %1503 = dma.done %s1499, 128
        $region124: #{tpu_custom_call.1} parent=119 // pred_fallthru
          _
      $region120: #{tpu_custom_call.1} parent=5 // pred_fallthru
        _
    $region6: #{tpu_custom_call.1} parent=1 // loop_footer
      %s38 = sadd.s32 1, %s34
    $region7: #{tpu_custom_call.1} parent=1 // loop_footer_branch
      %33 = sbr.rel target = $region3
    $region8: #{tpu_custom_call.1} parent=1 // loop_exit
      _
    %1504 = vsyncpa [#allocation5], 1
    %s1505 = scalar_lea.sflag [#allocation5], 1
    %1506 = vsyncpa %s1505, 1
    %1507 = vsyncpa [#allocation8], 1
    %s1508 = scalar_lea.sflag [#allocation8], 1
    %1509 = vsyncpa %s1508, 1
    %1510 = vsyncpa [#allocation11], 1
    %s1511 = scalar_lea.sflag [#allocation11], 1
    %1512 = vsyncpa %s1511, 1
    %1513 = vsyncpa [#allocation14], 1
    %1514 = vsyncpa [#allocation17], 1
    %1515 = vsyncpa [#allocation6], 1
    %s1516 = scalar_lea.sflag [#allocation6], 1
    %1517 = vsyncpa %s1516, 1

// kernel: tpu_custom_call.1
$region0: #{tpu_custom_call.1}
  #allocation0 [shape = 'u32[]', space=smem, size = 0x4, offset = 0x4, fixed_abs, tag = 'smem constant byte address 0x4 - core index']
  #allocation1 [shape = 'u32[144,128]{1,0:T(1,128)}', space=vmem, size = 0x12000, scoped, tag = 'internal scratch']
  #allocation2 [shape = 'bf16[8,32]{1,0:T(8,128)(2,1)}', space=vmem, size = 0x800, scoped, tag = 'scratch operand']
  #allocation3 [shape = 'bf16[8,32]{1,0:T(8,128)(2,1)}', space=vmem, size = 0x800, scoped, tag = 'scratch operand']
  %s0 = inlined_call_operand.hbm [shape: f32[2,8,32], index: 0, kind: input, shape index: {}]
  %s1 = inlined_call_operand.hbm [shape: f32[2,8,32], index: 1, kind: input, shape index: {}]
  %s2 = inlined_call_operand.hbm [shape: f32[2,8,32], index: 2, kind: input, shape index: {}]
  %s3 = inlined_call_operand.hbm [shape: f32[2,4,8,8], index: 3, kind: input, shape index: {}]
  %s4 = inlined_call_operand.hbm [shape: bf16[32,32], index: 4, kind: input, shape index: {}]
  %s5 = inlined_call_operand.vmem [shape: f32[1,32], index: 5, kind: input, shape index: {}]
  %s6 = inlined_call_operand.hbm [shape: bf16[32,32], index: 6, kind: input, shape index: {}]
  %s7 = inlined_call_operand.vmem [shape: f32[1,32], index: 7, kind: input, shape index: {}]
  %s8 = inlined_call_operand.hbm [shape: bf16[32,32], index: 8, kind: input, shape index: {}]
  %s9 = inlined_call_operand.hbm [shape: f32[1,32], index: 9, kind: input, shape index: {}]
  %s10 = inlined_call_operand.vmem [shape: bf16[32,32], index: 10, kind: input, shape index: {}]
  %s11 = inlined_call_operand.vmem [shape: f32[1,32], index: 11, kind: input, shape index: {}]
  %s12 = inlined_call_operand.vmem [shape: f32[1,32], index: 12, kind: input, shape index: {}]
  %s13 = inlined_call_operand.vmem [shape: f32[1,32], index: 13, kind: input, shape index: {}]
  %s14 = inlined_call_operand.hbm [shape: f32[2,8,32], index: 14, kind: output, shape index: {}]
  %s15 = sld [smem:[#allocation0]]
  $region125: #{tpu_custom_call.1} parent=0
    _
  %s17 = ssub.s32 1, %s15
  %s18 = scalar_select 0, %s17, %s15
  $region1: #{tpu_custom_call.1} parent=0
    #allocation4 [shape = 'u8[8192]{0}', space=vmem, size = 0x2000, scoped, tag = 'input window, operand 0']
    #allocation5 [shape = 's32[2]{0}', space=sflag, size = 0x8, scoped, tag = 'scoped memory for tpu_custom_call.1']
    #allocation6 [shape = 's32[2]{0}', space=sflag, size = 0x8, scoped, tag = 'scoped memory for tpu_custom_call.1']
    #allocation7 [shape = 'u8[8192]{0}', space=vmem, size = 0x2000, scoped, tag = 'input window, operand 1']
    #allocation8 [shape = 's32[2]{0}', space=sflag, size = 0x8, scoped, tag = 'scoped memory for tpu_custom_call.1']
    #allocation9 [shape = 'u8[8192]{0}', space=vmem, size = 0x2000, scoped, tag = 'input window, operand 2']
    #allocation10 [shape = 'u8[32768]{0}', space=vmem, size = 0x8000, scoped, tag = 'input window, operand 3']
    #allocation11 [shape = 's32[2]{0}', space=sflag, size = 0x8, scoped, tag = 'scoped memory for tpu_custom_call.1']
    #allocation12 [shape = 'u8[8192]{0}', space=vmem, size = 0x2000, scoped, tag = 'input window, operand 4, single buffered']
    #allocation13 [shape = 'u8[8192]{0}', space=vmem, size = 0x2000, scoped, tag = 'input window, operand 6, single buffered']
    #allocation14 [shape = 's32[1]{0}', space=sflag, size = 0x4, scoped, tag = 'scoped memory for tpu_custom_call.1']
    #allocation15 [shape = 'u8[8192]{0}', space=vmem, size = 0x2000, scoped, tag = 'input window, operand 8, single buffered']
    #allocation16 [shape = 'u8[512]{0}', space=vmem, size = 0x400, scoped, tag = 'input window, operand 9, single buffered']
    #allocation17 [shape = 's32[1]{0}', space=sflag, size = 0x4, scoped, tag = 'scoped memory for tpu_custom_call.1']
    #allocation18 [shape = 'u8[8192]{0}', space=vmem, size = 0x2000, scoped, tag = 'output window, operand 0']
    %19 = vsyncpa [#allocation5], 0
    %s20 = scalar_lea.sflag [#allocation5], 1
    %21 = vsyncpa %s20, 0
    %22 = vsyncpa [#allocation8], 0
    %s23 = scalar_lea.sflag [#allocation8], 1
    %24 = vsyncpa %s23, 0
    %25 = vsyncpa [#allocation11], 0
    %s26 = scalar_lea.sflag [#allocation11], 1
    %27 = vsyncpa %s26, 0
    %28 = vsyncpa [#allocation14], 0
    %29 = vsyncpa [#allocation17], 0
    %30 = vsyncpa [#allocation6], 0
    %s31 = scalar_lea.sflag [#allocation6], 1
    %32 = vsyncpa %s31, 0
    loop: start=0, step=1, limit=4
    $region2: #{tpu_custom_call.1} parent=1 // loop_pre_header
      _
    $region3: #{tpu_custom_call.1} parent=1 // loop_header
      %s34 = sphi 0, %s38
      %p35 = scmp.ge.s32.totalorder %s34, 4
      %s41 = sphi 0, %s53
      %s42 = sphi 0, %s49
      %s43 = sphi 0, %s41
      %s44 = sphi 0, %s42
      %s45 = sphi 0, %s43
      %s46 = sphi 0, %s44
      %s58 = sphi 0, %s60
      %s61 = sphi 0, %s58
      %s62 = sphi 0, %s61
      %s78 = sphi 0, %s62
      %s84 = sphi 0, %s86
      %s87 = sphi 0, %s84
      %s88 = sphi 0, %s87
      %s104 = sphi 0, %s88
      %s110 = sphi 0, %s112
      %s113 = sphi 0, %s110
      %s114 = sphi 0, %s113
      %s130 = sphi 0, %s114
      %s138 = sphi 0, %s140
      %s141 = sphi 0, %s138
      %s142 = sphi 0, %s141
      %s158 = sphi 0, %s142
      %s162 = sphi 0, %s162
      %s164 = sphi 0, %s162
      %s165 = sphi 0, %s164
      %s179 = sphi 0, %s165
      %s183 = sphi 0, %s183
      %s185 = sphi 0, %s183
      %s186 = sphi 0, %s185
      %s200 = sphi 0, %s186
      %s204 = sphi 0, %s204
      %s206 = sphi 0, %s204
      %s207 = sphi 0, %s206
      %s221 = sphi 0, %s207
      %s225 = sphi 0, %s225
      %s227 = sphi 0, %s225
      %s228 = sphi 0, %s227
      %s242 = sphi 0, %s228
      %s246 = sphi 0, %s246
      %s248 = sphi 0, %s246
      %s249 = sphi 0, %s248
      %s263 = sphi 0, %s249
      %s267 = sphi 0, %s267
      %s269 = sphi 0, %s267
      %s270 = sphi 0, %s269
      %s284 = sphi 0, %s270
      %s288 = sphi 0, %s288
      %s290 = sphi 0, %s288
      %s291 = sphi 0, %s290
      %s305 = sphi 0, %s291
      %s309 = sphi 0, %s309
      %s311 = sphi 0, %s309
      %s312 = sphi 0, %s311
      %s326 = sphi 0, %s312
      %s330 = sphi 0, %s330
      %s332 = sphi 0, %s330
      %s333 = sphi 0, %s332
      %s347 = sphi 0, %s333
      %s351 = sphi 0, %s351
      %s353 = sphi 0, %s351
      %s354 = sphi 0, %s353
      %s368 = sphi 0, %s354
      %s376 = sphi 0, %s378
      %s379 = sphi 0, %s376
      %s380 = sphi 0, %s379
      %s396 = sphi 0, %s380
    $region4: #{tpu_custom_call.1} parent=1 // loop_header_branch
      %37 = sbr.rel (%p35) target = $region8
    $region5: #{tpu_custom_call.1} parent=1 // loop_body
      %s39 = ssub.s32 %s34, 1
      %s40 = ssub.s32 %s34, 2
      %s47 = sadd.s32 1, %s42
      %p48 = scmp.ge.s32.totalorder %s47, 1
      %s49 = scalar_select %p48, 0, %s47
      %s50 = sadd.s32 1, %s41
      %s51 = scalar_select %p48, %s50, %s41
      %p52 = scmp.ge.s32.totalorder %s51, 2
      %s53 = scalar_select %p52, 0, %s51
      %s54 = ssub.s32 %s41, %s53
      %s55 = ssub.s32 %s42, %s49
      %s56 = sor.u32 %s54, %s55
      %p57 = scmp.eq.s32.totalorder %s56, 0
      %s59 = sadd.s32 %s58, 1
      %s60 = scalar_select %p57, %s58, %s59
      %p63 = pneg %p57
      %p64 = scmp.eq.s32.totalorder %s34, 1
      %p65 = por %p63, %p64
      %p66 = scmp.ne.s32.totalorder %s58, %s61
      %p67 = scmp.eq.s32.totalorder %s34, 0
      %p68 = por %p66, %p67
      %p69 = scmp.ne.s32.totalorder %s58, %s61
      %p70 = scmp.eq.s32.totalorder %s39, 1
      %p71 = por %p69, %p70
      %p72 = scmp.ne.s32.totalorder %s61, %s62
      %p73 = scmp.eq.s32.totalorder %s39, 0
      %p74 = por %p72, %p73
      %p75 = scmp.ne.s32.totalorder %s61, %s62
      %p76 = scmp.eq.s32.totalorder %s40, 1
      %p77 = por %p75, %p76
      %p79 = scmp.ne.s32.totalorder %s62, %s78
      %p80 = scmp.eq.s32.totalorder %s40, 0
      %p81 = por %p79, %p80
      %s82 = ssub.s32 %s41, %s53
      %p83 = scmp.eq.s32.totalorder %s82, 0
      %s85 = sadd.s32 %s84, 1
      %s86 = scalar_select %p83, %s84, %s85
      %p89 = pneg %p83
      %p90 = scmp.eq.s32.totalorder %s34, 1
      %p91 = por %p89, %p90
      %p92 = scmp.ne.s32.totalorder %s84, %s87
      %p93 = scmp.eq.s32.totalorder %s34, 0
      %p94 = por %p92, %p93
      %p95 = scmp.ne.s32.totalorder %s84, %s87
      %p96 = scmp.eq.s32.totalorder %s39, 1
      %p97 = por %p95, %p96
      %p98 = scmp.ne.s32.totalorder %s87, %s88
      %p99 = scmp.eq.s32.totalorder %s39, 0
      %p100 = por %p98, %p99
      %p101 = scmp.ne.s32.totalorder %s87, %s88
      %p102 = scmp.eq.s32.totalorder %s40, 1
      %p103 = por %p101, %p102
      %p105 = scmp.ne.s32.totalorder %s88, %s104
      %p106 = scmp.eq.s32.totalorder %s40, 0
      %p107 = por %p105, %p106
      %s108 = ssub.s32 %s41, %s53
      %p109 = scmp.eq.s32.totalorder %s108, 0
      %s111 = sadd.s32 %s110, 1
      %s112 = scalar_select %p109, %s110, %s111
      %p115 = pneg %p109
      %p116 = scmp.eq.s32.totalorder %s34, 1
      %p117 = por %p115, %p116
      %p118 = scmp.ne.s32.totalorder %s110, %s113
      %p119 = scmp.eq.s32.totalorder %s34, 0
      %p120 = por %p118, %p119
      %p121 = scmp.ne.s32.totalorder %s110, %s113
      %p122 = scmp.eq.s32.totalorder %s39, 1
      %p123 = por %p121, %p122
      %p124 = scmp.ne.s32.totalorder %s113, %s114
      %p125 = scmp.eq.s32.totalorder %s39, 0
      %p126 = por %p124, %p125
      %p127 = scmp.ne.s32.totalorder %s113, %s114
      %p128 = scmp.eq.s32.totalorder %s40, 1
      %p129 = por %p127, %p128
      %p131 = scmp.ne.s32.totalorder %s114, %s130
      %p132 = scmp.eq.s32.totalorder %s40, 0
      %p133 = por %p131, %p132
      %s134 = ssub.s32 %s41, %s53
      %s135 = ssub.s32 %s42, %s49
      %s136 = sor.u32 %s134, %s135
      %p137 = scmp.eq.s32.totalorder %s136, 0
      %s139 = sadd.s32 %s138, 1
      %s140 = scalar_select %p137, %s138, %s139
      %p143 = pneg %p137
      %p144 = scmp.eq.s32.totalorder %s34, 1
      %p145 = por %p143, %p144
      %p146 = scmp.ne.s32.totalorder %s138, %s141
      %p147 = scmp.eq.s32.totalorder %s34, 0
      %p148 = por %p146, %p147
      %p149 = scmp.ne.s32.totalorder %s138, %s141
      %p150 = scmp.eq.s32.totalorder %s39, 1
      %p151 = por %p149, %p150
      %p152 = scmp.ne.s32.totalorder %s141, %s142
      %p153 = scmp.eq.s32.totalorder %s39, 0
      %p154 = por %p152, %p153
      %p155 = scmp.ne.s32.totalorder %s141, %s142
      %p156 = scmp.eq.s32.totalorder %s40, 1
      %p157 = por %p155, %p156
      %p159 = scmp.ne.s32.totalorder %s142, %s158
      %p160 = scmp.eq.s32.totalorder %s40, 0
      %p161 = por %p159, %p160
      %s163 = sadd.s32 %s162, 1
      %p166 = scmp.eq.s32.totalorder %s34, 1
      %p167 = scmp.ne.s32.totalorder %s162, %s164
      %p168 = scmp.eq.s32.totalorder %s34, 0
      %p169 = por %p167, %p168
      %p170 = scmp.ne.s32.totalorder %s162, %s164
      %p171 = scmp.eq.s32.totalorder %s39, 1
      %p172 = por %p170, %p171
      %p173 = scmp.ne.s32.totalorder %s164, %s165
      %p174 = scmp.eq.s32.totalorder %s39, 0
      %p175 = por %p173, %p174
      %p176 = scmp.ne.s32.totalorder %s164, %s165
      %p177 = scmp.eq.s32.totalorder %s40, 1
      %p178 = por %p176, %p177
      %p180 = scmp.ne.s32.totalorder %s165, %s179
      %p181 = scmp.eq.s32.totalorder %s40, 0
      %p182 = por %p180, %p181
      %s184 = sadd.s32 %s183, 1
      %p187 = scmp.eq.s32.totalorder %s34, 1
      %p188 = scmp.ne.s32.totalorder %s183, %s185
      %p189 = scmp.eq.s32.totalorder %s34, 0
      %p190 = por %p188, %p189
      %p191 = scmp.ne.s32.totalorder %s183, %s185
      %p192 = scmp.eq.s32.totalorder %s39, 1
      %p193 = por %p191, %p192
      %p194 = scmp.ne.s32.totalorder %s185, %s186
      %p195 = scmp.eq.s32.totalorder %s39, 0
      %p196 = por %p194, %p195
      %p197 = scmp.ne.s32.totalorder %s185, %s186
      %p198 = scmp.eq.s32.totalorder %s40, 1
      %p199 = por %p197, %p198
      %p201 = scmp.ne.s32.totalorder %s186, %s200
      %p202 = scmp.eq.s32.totalorder %s40, 0
      %p203 = por %p201, %p202
      %s205 = sadd.s32 %s204, 1
      %p208 = scmp.eq.s32.totalorder %s34, 1
      %p209 = scmp.ne.s32.totalorder %s204, %s206
      %p210 = scmp.eq.s32.totalorder %s34, 0
      %p211 = por %p209, %p210
      %p212 = scmp.ne.s32.totalorder %s204, %s206
      %p213 = scmp.eq.s32.totalorder %s39, 1
      %p214 = por %p212, %p213
      %p215 = scmp.ne.s32.totalorder %s206, %s207
      %p216 = scmp.eq.s32.totalorder %s39, 0
      %p217 = por %p215, %p216
      %p218 = scmp.ne.s32.totalorder %s206, %s207
      %p219 = scmp.eq.s32.totalorder %s40, 1
      %p220 = por %p218, %p219
      %p222 = scmp.ne.s32.totalorder %s207, %s221
      %p223 = scmp.eq.s32.totalorder %s40, 0
      %p224 = por %p222, %p223
      %s226 = sadd.s32 %s225, 1
      %p229 = scmp.eq.s32.totalorder %s34, 1
      %p230 = scmp.ne.s32.totalorder %s225, %s227
      %p231 = scmp.eq.s32.totalorder %s34, 0
      %p232 = por %p230, %p231
      %p233 = scmp.ne.s32.totalorder %s225, %s227
      %p234 = scmp.eq.s32.totalorder %s39, 1
      %p235 = por %p233, %p234
      %p236 = scmp.ne.s32.totalorder %s227, %s228
      %p237 = scmp.eq.s32.totalorder %s39, 0
      %p238 = por %p236, %p237
      %p239 = scmp.ne.s32.totalorder %s227, %s228
      %p240 = scmp.eq.s32.totalorder %s40, 1
      %p241 = por %p239, %p240
      %p243 = scmp.ne.s32.totalorder %s228, %s242
      %p244 = scmp.eq.s32.totalorder %s40, 0
      %p245 = por %p243, %p244
      %s247 = sadd.s32 %s246, 1
      %p250 = scmp.eq.s32.totalorder %s34, 1
      %p251 = scmp.ne.s32.totalorder %s246, %s248
      %p252 = scmp.eq.s32.totalorder %s34, 0
      %p253 = por %p251, %p252
      %p254 = scmp.ne.s32.totalorder %s246, %s248
      %p255 = scmp.eq.s32.totalorder %s39, 1
      %p256 = por %p254, %p255
      %p257 = scmp.ne.s32.totalorder %s248, %s249
      %p258 = scmp.eq.s32.totalorder %s39, 0
      %p259 = por %p257, %p258
      %p260 = scmp.ne.s32.totalorder %s248, %s249
      %p261 = scmp.eq.s32.totalorder %s40, 1
      %p262 = por %p260, %p261
      %p264 = scmp.ne.s32.totalorder %s249, %s263
      %p265 = scmp.eq.s32.totalorder %s40, 0
      %p266 = por %p264, %p265
      %s268 = sadd.s32 %s267, 1
      %p271 = scmp.eq.s32.totalorder %s34, 1
      %p272 = scmp.ne.s32.totalorder %s267, %s269
      %p273 = scmp.eq.s32.totalorder %s34, 0
      %p274 = por %p272, %p273
      %p275 = scmp.ne.s32.totalorder %s267, %s269
      %p276 = scmp.eq.s32.totalorder %s39, 1
      %p277 = por %p275, %p276
      %p278 = scmp.ne.s32.totalorder %s269, %s270
      %p279 = scmp.eq.s32.totalorder %s39, 0
      %p280 = por %p278, %p279
      %p281 = scmp.ne.s32.totalorder %s269, %s270
      %p282 = scmp.eq.s32.totalorder %s40, 1
      %p283 = por %p281, %p282
      %p285 = scmp.ne.s32.totalorder %s270, %s284
      %p286 = scmp.eq.s32.totalorder %s40, 0
      %p287 = por %p285, %p286
      %s289 = sadd.s32 %s288, 1
      %p292 = scmp.eq.s32.totalorder %s34, 1
      %p293 = scmp.ne.s32.totalorder %s288, %s290
      %p294 = scmp.eq.s32.totalorder %s34, 0
      %p295 = por %p293, %p294
      %p296 = scmp.ne.s32.totalorder %s288, %s290
      %p297 = scmp.eq.s32.totalorder %s39, 1
      %p298 = por %p296, %p297
      %p299 = scmp.ne.s32.totalorder %s290, %s291
      %p300 = scmp.eq.s32.totalorder %s39, 0
      %p301 = por %p299, %p300
      %p302 = scmp.ne.s32.totalorder %s290, %s291
      %p303 = scmp.eq.s32.totalorder %s40, 1
      %p304 = por %p302, %p303
      %p306 = scmp.ne.s32.totalorder %s291, %s305
      %p307 = scmp.eq.s32.totalorder %s40, 0
      %p308 = por %p306, %p307
      %s310 = sadd.s32 %s309, 1
      %p313 = scmp.eq.s32.totalorder %s34, 1
      %p314 = scmp.ne.s32.totalorder %s309, %s311
      %p315 = scmp.eq.s32.totalorder %s34, 0
      %p316 = por %p314, %p315
      %p317 = scmp.ne.s32.totalorder %s309, %s311
      %p318 = scmp.eq.s32.totalorder %s39, 1
      %p319 = por %p317, %p318
      %p320 = scmp.ne.s32.totalorder %s311, %s312
      %p321 = scmp.eq.s32.totalorder %s39, 0
      %p322 = por %p320, %p321
      %p323 = scmp.ne.s32.totalorder %s311, %s312
      %p324 = scmp.eq.s32.totalorder %s40, 1
      %p325 = por %p323, %p324
      %p327 = scmp.ne.s32.totalorder %s312, %s326
      %p328 = scmp.eq.s32.totalorder %s40, 0
      %p329 = por %p327, %p328
      %s331 = sadd.s32 %s330, 1
      %p334 = scmp.eq.s32.totalorder %s34, 1
      %p335 = scmp.ne.s32.totalorder %s330, %s332
      %p336 = scmp.eq.s32.totalorder %s34, 0
      %p337 = por %p335, %p336
      %p338 = scmp.ne.s32.totalorder %s330, %s332
      %p339 = scmp.eq.s32.totalorder %s39, 1
      %p340 = por %p338, %p339
      %p341 = scmp.ne.s32.totalorder %s332, %s333
      %p342 = scmp.eq.s32.totalorder %s39, 0
      %p343 = por %p341, %p342
      %p344 = scmp.ne.s32.totalorder %s332, %s333
      %p345 = scmp.eq.s32.totalorder %s40, 1
      %p346 = por %p344, %p345
      %p348 = scmp.ne.s32.totalorder %s333, %s347
      %p349 = scmp.eq.s32.totalorder %s40, 0
      %p350 = por %p348, %p349
      %s352 = sadd.s32 %s351, 1
      %p355 = scmp.eq.s32.totalorder %s34, 1
      %p356 = scmp.ne.s32.totalorder %s351, %s353
      %p357 = scmp.eq.s32.totalorder %s34, 0
      %p358 = por %p356, %p357
      %p359 = scmp.ne.s32.totalorder %s351, %s353
      %p360 = scmp.eq.s32.totalorder %s39, 1
      %p361 = por %p359, %p360
      %p362 = scmp.ne.s32.totalorder %s353, %s354
      %p363 = scmp.eq.s32.totalorder %s39, 0
      %p364 = por %p362, %p363
      %p365 = scmp.ne.s32.totalorder %s353, %s354
      %p366 = scmp.eq.s32.totalorder %s40, 1
      %p367 = por %p365, %p366
      %p369 = scmp.ne.s32.totalorder %s354, %s368
      %p370 = scmp.eq.s32.totalorder %s40, 0
      %p371 = por %p369, %p370
      %s372 = ssub.s32 %s41, %s53
      %s373 = ssub.s32 %s42, %s49
      %s374 = sor.u32 %s372, %s373
      %p375 = scmp.eq.s32.totalorder %s374, 0
      %s377 = sadd.s32 %s376, 1
      %s378 = scalar_select %p375, %s376, %s377
      %p381 = pneg %p375
      %p382 = scmp.eq.s32.totalorder %s34, 1
      %p383 = por %p381, %p382
      %p384 = scmp.ne.s32.totalorder %s376, %s379
      %p385 = scmp.eq.s32.totalorder %s34, 0
      %p386 = por %p384, %p385
      %p387 = scmp.ne.s32.totalorder %s376, %s379
      %p388 = scmp.eq.s32.totalorder %s39, 1
      %p389 = por %p387, %p388
      %p390 = scmp.ne.s32.totalorder %s379, %s380
      %p391 = scmp.eq.s32.totalorder %s39, 0
      %p392 = por %p390, %p391
      %p393 = scmp.ne.s32.totalorder %s379, %s380
      %p394 = scmp.eq.s32.totalorder %s40, 1
      %p395 = por %p393, %p394
      %p397 = scmp.ne.s32.totalorder %s380, %s396
      %p398 = scmp.eq.s32.totalorder %s40, 0
      %p399 = por %p397, %p398
      %p400 = scmp.le.s32.totalorder 1, %s34
      %p401 = scmp.lt.s32.totalorder %s34, 3
      %p402 = pnand %p400, %p401
      %p403 = pneg %p402
      // Predicated region
      $region9: #{tpu_custom_call.1} parent=5 // pred_check
        _
      $region10: #{tpu_custom_call.1} parent=5 // pred_check_branch
        %405 = sbr.rel (%p402) target = $region12
      $region11: #{tpu_custom_call.1} parent=5 // pred_region
        %s406 = ssub.s32 %s34, 1
        // Predicated region
        $region13: #{tpu_custom_call.1} parent=11 // pred_check
          %p407 = pneg %p175
        $region14: #{tpu_custom_call.1} parent=11 // pred_check_branch
          %409 = sbr.rel (%p407) target = $region16
        $region15: #{tpu_custom_call.1} parent=11 // pred_region
          %s411 = ssub.s32 256, 256
          %412 = vsyncadd [#allocation11], %s411
          %s413 = sshll.u32 [#allocation12], 4
          %s414 = int_to_ptr.vmem [resolvable:$true] %s413
          %419 = dma.hbm_to_vmem [thread:$0]  %s4, 256, %s414, [#allocation11], 64, 64, 4
        $region16: #{tpu_custom_call.1} parent=11 // pred_fallthru
          _
        // Predicated region
        $region17: #{tpu_custom_call.1} parent=11 // pred_check
          %p420 = pneg %p196
        $region18: #{tpu_custom_call.1} parent=11 // pred_check_branch
          %422 = sbr.rel (%p420) target = $region20
        $region19: #{tpu_custom_call.1} parent=11 // pred_region
          _
        $region20: #{tpu_custom_call.1} parent=11 // pred_fallthru
          _
        // Predicated region
        $region21: #{tpu_custom_call.1} parent=11 // pred_check
          %p423 = pneg %p217
        $region22: #{tpu_custom_call.1} parent=11 // pred_check_branch
          %425 = sbr.rel (%p423) target = $region24
        $region23: #{tpu_custom_call.1} parent=11 // pred_region
          %s427 = ssub.s32 256, 256
          %428 = vsyncadd [#allocation14], %s427
          %s429 = sshll.u32 [#allocation13], 4
          %s430 = int_to_ptr.vmem [resolvable:$true] %s429
          %435 = dma.hbm_to_vmem [thread:$0]  %s6, 256, %s430, [#allocation14], 64, 64, 4
        $region24: #{tpu_custom_call.1} parent=11 // pred_fallthru
          _
        // Predicated region
        $region25: #{tpu_custom_call.1} parent=11 // pred_check
          %p436 = pneg %p238
        $region26: #{tpu_custom_call.1} parent=11 // pred_check_branch
          %438 = sbr.rel (%p436) target = $region28
        $region27: #{tpu_custom_call.1} parent=11 // pred_region
          _
        $region28: #{tpu_custom_call.1} parent=11 // pred_fallthru
          _
        // Predicated region
        $region29: #{tpu_custom_call.1} parent=11 // pred_check
          %p439 = pneg %p259
        $region30: #{tpu_custom_call.1} parent=11 // pred_check_branch
          %441 = sbr.rel (%p439) target = $region32
        $region31: #{tpu_custom_call.1} parent=11 // pred_region
          %s443 = ssub.s32 256, 256
          %444 = vsyncadd [#allocation14], %s443
          %s445 = sshll.u32 [#allocation15], 4
          %s446 = int_to_ptr.vmem [resolvable:$true] %s445
          %451 = dma.hbm_to_vmem [thread:$0]  %s8, 256, %s446, [#allocation14], 64, 64, 4
        $region32: #{tpu_custom_call.1} parent=11 // pred_fallthru
          _
        // Predicated region
        $region33: #{tpu_custom_call.1} parent=11 // pred_check
          %p452 = pneg %p280
        $region34: #{tpu_custom_call.1} parent=11 // pred_check_branch
          %454 = sbr.rel (%p452) target = $region36
        $region35: #{tpu_custom_call.1} parent=11 // pred_region
          %s456 = ssub.s32 16, 16
          %457 = vsyncadd [#allocation17], %s456
          %s459 = sshll.u32 [#allocation16], 4
          %s460 = int_to_ptr.vmem [resolvable:$true] %s459
          %462 = dma.hbm_to_vmem [thread:$0]  %s9, 16, %s460, [#allocation17]
        $region36: #{tpu_custom_call.1} parent=11 // pred_fallthru
          _
        // Predicated region
        $region37: #{tpu_custom_call.1} parent=11 // pred_check
          %p463 = pneg %p301
        $region38: #{tpu_custom_call.1} parent=11 // pred_check_branch
          %465 = sbr.rel (%p463) target = $region40
        $region39: #{tpu_custom_call.1} parent=11 // pred_region
          _
        $region40: #{tpu_custom_call.1} parent=11 // pred_fallthru
          _
        // Predicated region
        $region41: #{tpu_custom_call.1} parent=11 // pred_check
          %p466 = pneg %p322
        $region42: #{tpu_custom_call.1} parent=11 // pred_check_branch
          %468 = sbr.rel (%p466) target = $region44
        $region43: #{tpu_custom_call.1} parent=11 // pred_region
          _
        $region44: #{tpu_custom_call.1} parent=11 // pred_fallthru
          _
        // Predicated region
        $region45: #{tpu_custom_call.1} parent=11 // pred_check
          %p469 = pneg %p343
        $region46: #{tpu_custom_call.1} parent=11 // pred_check_branch
          %471 = sbr.rel (%p469) target = $region48
        $region47: #{tpu_custom_call.1} parent=11 // pred_region
          _
        $region48: #{tpu_custom_call.1} parent=11 // pred_fallthru
          _
        // Predicated region
        $region49: #{tpu_custom_call.1} parent=11 // pred_check
          %p472 = pneg %p364
        $region50: #{tpu_custom_call.1} parent=11 // pred_check_branch
          %474 = sbr.rel (%p472) target = $region52
        $region51: #{tpu_custom_call.1} parent=11 // pred_region
          _
        $region52: #{tpu_custom_call.1} parent=11 // pred_fallthru
          _
      $region12: #{tpu_custom_call.1} parent=5 // pred_fallthru
        _
      %p475 = scmp.lt.s32.totalorder %s34, 2
      // Predicated region
      $region53: #{tpu_custom_call.1} parent=5 // pred_check
        %p476 = pneg %p475
      $region54: #{tpu_custom_call.1} parent=5 // pred_check_branch
        %478 = sbr.rel (%p476) target = $region56
      $region55: #{tpu_custom_call.1} parent=5 // pred_region
        // Predicated region
        $region57: #{tpu_custom_call.1} parent=55 // pred_check
          %p479 = pneg %p68
        $region58: #{tpu_custom_call.1} parent=55 // pred_check_branch
          %481 = sbr.rel (%p479) target = $region60
        $region59: #{tpu_custom_call.1} parent=55 // pred_region
          %s482 = sand.u32 %s58, 1
          %s483 = scalar_lea.sflag [#allocation5], %s482
          %s484 = sand.u32 %s58, 1
          %s485 = smul.addr %s484, 8
          %s486 = scalar_lea.vmem [#allocation4], %s485
          %s488 = ssub.s32 128, 128
          %489 = vsyncadd %s483, %s488
          %s490 = sadd.s32 %s42, %s41
          %s491 = smul.addr %s490, 128
          %s492 = scalar_lea.hbm %s0, %s491
          %s494 = sshll.u32 %s486, 4
          %s495 = int_to_ptr.vmem [resolvable:$true] %s494
          %497 = dma.hbm_to_vmem [thread:$0]  %s492, 128, %s495, %s483
        $region60: #{tpu_custom_call.1} parent=55 // pred_fallthru
          _
        // Predicated region
        $region61: #{tpu_custom_call.1} parent=55 // pred_check
          %p498 = pneg %p94
        $region62: #{tpu_custom_call.1} parent=55 // pred_check_branch
          %500 = sbr.rel (%p498) target = $region64
        $region63: #{tpu_custom_call.1} parent=55 // pred_region
          %s501 = sand.u32 %s34, 1
          %s502 = scalar_lea.sflag [#allocation8], %s501
          %s503 = sand.u32 %s84, 1
          %s504 = smul.addr %s503, 8
          %s505 = scalar_lea.vmem [#allocation7], %s504
          %s507 = ssub.s32 128, 128
          %508 = vsyncadd %s502, %s507
          %s509 = smul.addr %s41, 128
          %s510 = scalar_lea.hbm %s1, %s509
          %s512 = sshll.u32 %s505, 4
          %s513 = int_to_ptr.vmem [resolvable:$true] %s512
          %515 = dma.hbm_to_vmem [thread:$0]  %s510, 128, %s513, %s502
        $region64: #{tpu_custom_call.1} parent=55 // pred_fallthru
          _
        // Predicated region
        $region65: #{tpu_custom_call.1} parent=55 // pred_check
          %p516 = pneg %p120
        $region66: #{tpu_custom_call.1} parent=55 // pred_check_branch
          %518 = sbr.rel (%p516) target = $region68
        $region67: #{tpu_custom_call.1} parent=55 // pred_region
          %s519 = sand.u32 %s34, 1
          %s520 = scalar_lea.sflag [#allocation8], %s519
          %s521 = sand.u32 %s110, 1
          %s522 = smul.addr %s521, 8
          %s523 = scalar_lea.vmem [#allocation9], %s522
          %s525 = ssub.s32 128, 128
          %526 = vsyncadd %s520, %s525
          %s527 = smul.addr %s41, 128
          %s528 = scalar_lea.hbm %s2, %s527
          %s530 = sshll.u32 %s523, 4
          %s531 = int_to_ptr.vmem [resolvable:$true] %s530
          %533 = dma.hbm_to_vmem [thread:$0]  %s528, 128, %s531, %s520
        $region68: #{tpu_custom_call.1} parent=55 // pred_fallthru
          _
        // Predicated region
        $region69: #{tpu_custom_call.1} parent=55 // pred_check
          %p534 = pneg %p148
        $region70: #{tpu_custom_call.1} parent=55 // pred_check_branch
          %536 = sbr.rel (%p534) target = $region72
        $region71: #{tpu_custom_call.1} parent=55 // pred_region
          %s537 = sand.u32 %s34, 1
          %s538 = scalar_lea.sflag [#allocation11], %s537
          %s539 = sand.u32 %s138, 1
          %s540 = smul.addr %s539, 32
          %s541 = scalar_lea.vmem [#allocation10], %s540
          %s543 = ssub.s32 512, 512
          %544 = vsyncadd %s538, %s543
          %s545 = smul.addr %s41, 4
          %s546 = sadd.s32 %s42, %s545
          %s547 = smul.addr %s546, 128
          %s548 = scalar_lea.hbm %s3, %s547
          %s549 = sshll.u32 %s541, 4
          %s550 = int_to_ptr.vmem [resolvable:$true] %s549
          %555 = dma.hbm_to_vmem [thread:$0]  %s548, 512, %s550, %s538, 128, 128, 8
        $region72: #{tpu_custom_call.1} parent=55 // pred_fallthru
          _
      $region56: #{tpu_custom_call.1} parent=5 // pred_fallthru
        _
      %p556 = scmp.le.s32.totalorder 1, %s34
      %p557 = scmp.lt.s32.totalorder %s34, 3
      %p558 = pnand %p556, %p557
      %p559 = pneg %p558
      // Predicated region
      $region73: #{tpu_custom_call.1} parent=5 // pred_check
        _
      $region74: #{tpu_custom_call.1} parent=5 // pred_check_branch
        %561 = sbr.rel (%p558) target = $region76
      $region75: #{tpu_custom_call.1} parent=5 // pred_region
        %s562 = ssub.s32 %s34, 1
        %s563 = sand.u32 %s61, 1
        %s564 = scalar_lea.sflag [#allocation5], %s563
        %s565 = sand.u32 %s61, 1
        %s566 = smul.addr %s565, 8
        %s567 = scalar_lea.vmem [#allocation4], %s566
        // Predicated region
        $region77: #{tpu_custom_call.1} parent=75 // pred_check
          %p568 = pneg %p74
        $region78: #{tpu_custom_call.1} parent=75 // pred_check_branch
          %570 = sbr.rel (%p568) target = $region80
        $region79: #{tpu_custom_call.1} parent=75 // pred_region
          %571 = dma.done %s564, 128
        $region80: #{tpu_custom_call.1} parent=75 // pred_fallthru
          _
        %s572 = sand.u32 %s39, 1
        %s573 = scalar_lea.sflag [#allocation8], %s572
        %s574 = sand.u32 %s87, 1
        %s575 = smul.addr %s574, 8
        %s576 = scalar_lea.vmem [#allocation7], %s575
        // Predicated region
        $region81: #{tpu_custom_call.1} parent=75 // pred_check
          %p577 = pneg %p100
        $region82: #{tpu_custom_call.1} parent=75 // pred_check_branch
          %579 = sbr.rel (%p577) target = $region84
        $region83: #{tpu_custom_call.1} parent=75 // pred_region
          %580 = dma.done %s573, 128
        $region84: #{tpu_custom_call.1} parent=75 // pred_fallthru
          _
        %s581 = sand.u32 %s39, 1
        %s582 = scalar_lea.sflag [#allocation8], %s581
        %s583 = sand.u32 %s113, 1
        %s584 = smul.addr %s583, 8
        %s585 = scalar_lea.vmem [#allocation9], %s584
        // Predicated region
        $region85: #{tpu_custom_call.1} parent=75 // pred_check
          %p586 = pneg %p126
        $region86: #{tpu_custom_call.1} parent=75 // pred_check_branch
          %588 = sbr.rel (%p586) target = $region88
        $region87: #{tpu_custom_call.1} parent=75 // pred_region
          %589 = dma.done %s582, 128
        $region88: #{tpu_custom_call.1} parent=75 // pred_fallthru
          _
        %s590 = sand.u32 %s39, 1
        %s591 = scalar_lea.sflag [#allocation11], %s590
        %s592 = sand.u32 %s141, 1
        %s593 = smul.addr %s592, 32
        %s594 = scalar_lea.vmem [#allocation10], %s593
        // Predicated region
        $region89: #{tpu_custom_call.1} parent=75 // pred_check
          %p595 = pneg %p154
        $region90: #{tpu_custom_call.1} parent=75 // pred_check_branch
          %597 = sbr.rel (%p595) target = $region92
        $region91: #{tpu_custom_call.1} parent=75 // pred_region
          %598 = dma.done %s591, 512
        $region92: #{tpu_custom_call.1} parent=75 // pred_fallthru
          _
        // Predicated region
        $region93: #{tpu_custom_call.1} parent=75 // pred_check
          %p599 = pneg %p175
        $region94: #{tpu_custom_call.1} parent=75 // pred_check_branch
          %601 = sbr.rel (%p599) target = $region96
        $region95: #{tpu_custom_call.1} parent=75 // pred_region
          %602 = dma.done [#allocation11], 256
        $region96: #{tpu_custom_call.1} parent=75 // pred_fallthru
          _
        // Predicated region
        $region97: #{tpu_custom_call.1} parent=75 // pred_check
          %p603 = pneg %p217
        $region98: #{tpu_custom_call.1} parent=75 // pred_check_branch
          %605 = sbr.rel (%p603) target = $region100
        $region99: #{tpu_custom_call.1} parent=75 // pred_region
          %606 = dma.done [#allocation14], 256
        $region100: #{tpu_custom_call.1} parent=75 // pred_fallthru
          _
        // Predicated region
        $region101: #{tpu_custom_call.1} parent=75 // pred_check
          %p607 = pneg %p259
        $region102: #{tpu_custom_call.1} parent=75 // pred_check_branch
          %609 = sbr.rel (%p607) target = $region104
        $region103: #{tpu_custom_call.1} parent=75 // pred_region
          %610 = dma.done [#allocation14], 256
        $region104: #{tpu_custom_call.1} parent=75 // pred_fallthru
          _
        // Predicated region
        $region105: #{tpu_custom_call.1} parent=75 // pred_check
          %p611 = pneg %p280
        $region106: #{tpu_custom_call.1} parent=75 // pred_check_branch
          %613 = sbr.rel (%p611) target = $region108
        $region107: #{tpu_custom_call.1} parent=75 // pred_region
          %614 = dma.done [#allocation17], 16
        $region108: #{tpu_custom_call.1} parent=75 // pred_fallthru
          _
        %s615 = sand.u32 %s61, 1
        %s616 = scalar_lea.sflag [#allocation5], %s615
        %s617 = sand.u32 %s61, 1
        %s618 = smul.addr %s617, 8
        %s619 = scalar_lea.vmem [#allocation4], %s618
        %p620 = pneg %p74
        %p621 = pneg %p71
        %s622 = sand.u32 %s39, 1
        %s623 = scalar_lea.sflag [#allocation8], %s622
        %s624 = sand.u32 %s87, 1
        %s625 = smul.addr %s624, 8
        %s626 = scalar_lea.vmem [#allocation7], %s625
        %p627 = pneg %p100
        %p628 = pneg %p97
        %s629 = sand.u32 %s39, 1
        %s630 = scalar_lea.sflag [#allocation8], %s629
        %s631 = sand.u32 %s113, 1
        %s632 = smul.addr %s631, 8
        %s633 = scalar_lea.vmem [#allocation9], %s632
        %p634 = pneg %p126
        %p635 = pneg %p123
        %s636 = sand.u32 %s39, 1
        %s637 = scalar_lea.sflag [#allocation11], %s636
        %s638 = sand.u32 %s141, 1
        %s639 = smul.addr %s638, 32
        %s640 = scalar_lea.vmem [#allocation10], %s639
        %p641 = pneg %p154
        %p642 = pneg %p151
        %p643 = pneg %p175
        %p644 = pneg %p172
        %p645 = pneg %p196
        %p646 = pneg %p193
        %p647 = pneg %p217
        %p648 = pneg %p214
        %p649 = pneg %p238
        %p650 = pneg %p235
        %p651 = pneg %p259
        %p652 = pneg %p256
        %p653 = pneg %p280
        %p654 = pneg %p277
        %p655 = pneg %p301
        %p656 = pneg %p298
        %p657 = pneg %p322
        %p658 = pneg %p319
        %p659 = pneg %p343
        %p660 = pneg %p340
        %p661 = pneg %p364
        %p662 = pneg %p361
        %p663 = pneg %p392
        %p664 = pneg %p389
        %s665 = sand.u32 %s379, 1
        %s666 = scalar_lea.sflag [#allocation6], %s665
        %s667 = sand.u32 %s379, 1
        %s668 = smul.addr %s667, 8
        %s669 = scalar_lea.vmem [#allocation18], %s668
        %p671 = scmp.eq.s32.totalorder %s44, 0
        // Predicated region
        $region109: #{tpu_custom_call.1} parent=75 // pred_check
          %p672 = pneg %p671
        $region110: #{tpu_custom_call.1} parent=75 // pred_check_branch
          %674 = sbr.rel (%p672) target = $region112
        $region111: #{tpu_custom_call.1} parent=75 // pred_region
          %v675 = vld [vmem:[%s576] sm:$0xff]
          %v676 = vpack.c.bf16 %v675, %v675
          %v677 = vld [vmem:[%s585] sm:$0xff]
          %v678 = vpack.c.bf16 %v677, %v677
          %v679 = vld [vmem:[#allocation13] sm:$0xf]
          %v680 = vld [vmem:[#allocation13 + $0x4] sm:$0xf]
          %v681 = vld [vmem:[#allocation13 + $0x8] sm:$0xf]
          %v682 = vld [vmem:[#allocation13 + $0xc] sm:$0xf]
          %v683 = vld [vmem:[%s7] sm:$0x1]
          %v685 = vlaneseq
          %v686 = vshrl.u32 %v685, 7
          %v687 = vsub.s32 0, %v686
          %v688 = vrot.slane %v683, %v687
          %v694 = vunpack.c.l.b16 %v679
          %v695 = vunpack.c.l.b16 %v680
          %v696 = vunpack.c.l.b16 %v681
          %v697 = vunpack.c.l.b16 %v682
          %v698 = vpack.c.b16 %v695, %v694
          %v699 = vpack.c.b16 %v697, %v696
          %vm702 = vcmask 261120
          %v704 = vsel %vm702, %v676, 0
          %706 = vmatprep.subr.bf16.mxu0 0
          %707 = vmatpush1.bf16.msra.mxu0 0
          %708 = vmatprep.subr.bf16.mxu0 0
          %709 = vmatpush1.bf16.msra.mxu0 0
          %710 = vmatprep.subr.bf16.mxu0 0
          %711 = vmatpush1.bf16.msra.mxu0 0
          %712 = vmatprep.subr.bf16.mxu0 0
          %713 = vmatpush1.bf16.msra.mxu0 0
          %714 = vmatprep.subr.bf16.mxu0 0
          %715 = vmatpush1.bf16.msra.mxu0 0
          %716 = vmatprep.subr.bf16.mxu0 0
          %717 = vmatpush1.bf16.msra.mxu0 0
          %718 = vmatprep.subr.bf16.mxu0 0
          %719 = vmatpush1.bf16.msra.mxu0 %v699
          %720 = vmatprep.subr.bf16.mxu0 0
          %721 = vmatpush1.bf16.msra.mxu0 %v698
          %722 = vmatprep.subr.bf16.mxu0 0
          %723 = vmatpush2.bf16.msra.mxu0 0
          %724 = vmatprep.subr.bf16.mxu0 0
          %725 = vmatpush2.bf16.msra.mxu0 0
          %726 = vmatprep.subr.bf16.mxu0 0
          %727 = vmatpush2.bf16.msra.mxu0 0
          %728 = vmatprep.subr.bf16.mxu0 0
          %729 = vmatpush2.bf16.msra.mxu0 0
          %730 = vmatprep.subr.bf16.mxu0 0
          %731 = vmatpush2.bf16.msra.mxu0 0
          %732 = vmatprep.subr.bf16.mxu0 0
          %733 = vmatpush2.bf16.msra.mxu0 0
          %734 = vmatprep.subr.bf16.mxu0 0
          %735 = vmatpush2.bf16.msra.mxu0 0
          %736 = vmatprep.subr.bf16.mxu0 0
          %737 = vmatpush2.bf16.msra.mxu0 0
          %738 = vmatprep.mubr.bf16.mxu0 0
          %739 = vmatmul.mubr.bf16.gmra.mxu0 %v704
          %v740 = vpop.f32.mrf.mxu0
          %v741 = vadd.f32 %v688, %v740
          %v742 = vpop.f32.mrf.mxu0
          %v743 = vpop.f32.mrf.mxu0
          %v744 = vpop.f32.mrf.mxu0
          %745 = vdwg.mxu0
          %v746 = vpack.c.bf16 %v741, %v741
          %vm747 = vcmask 257024
          %748 = vst.msk [vmem:[#allocation2] sm:$0xf] %vm747, %v746
          %v749 = vld [vmem:[#allocation15] sm:$0xf]
          %v750 = vld [vmem:[#allocation15 + $0x4] sm:$0xf]
          %v751 = vld [vmem:[#allocation15 + $0x8] sm:$0xf]
          %v752 = vld [vmem:[#allocation15 + $0xc] sm:$0xf]
          %v753 = vld [vmem:[#allocation16] sm:$0x1]
          %v755 = vlaneseq
          %v756 = vshrl.u32 %v755, 7
          %v757 = vsub.s32 0, %v756
          %v758 = vrot.slane %v753, %v757
          %v764 = vunpack.c.l.b16 %v749
          %v765 = vunpack.c.l.b16 %v750
          %v766 = vunpack.c.l.b16 %v751
          %v767 = vunpack.c.l.b16 %v752
          %v768 = vpack.c.b16 %v765, %v764
          %v769 = vpack.c.b16 %v767, %v766
          %v773 = vsel %vm702, %v678, 0
          %775 = vmatprep.subr.bf16.mxu0 0
          %776 = vmatpush1.bf16.msra.mxu0 0
          %777 = vmatprep.subr.bf16.mxu0 0
          %778 = vmatpush1.bf16.msra.mxu0 0
          %779 = vmatprep.subr.bf16.mxu0 0
          %780 = vmatpush1.bf16.msra.mxu0 0
          %781 = vmatprep.subr.bf16.mxu0 0
          %782 = vmatpush1.bf16.msra.mxu0 0
          %783 = vmatprep.subr.bf16.mxu0 0
          %784 = vmatpush1.bf16.msra.mxu0 0
          %785 = vmatprep.subr.bf16.mxu0 0
          %786 = vmatpush1.bf16.msra.mxu0 0
          %787 = vmatprep.subr.bf16.mxu0 0
          %788 = vmatpush1.bf16.msra.mxu0 %v769
          %789 = vmatprep.subr.bf16.mxu0 0
          %790 = vmatpush1.bf16.msra.mxu0 %v768
          %791 = vmatprep.subr.bf16.mxu0 0
          %792 = vmatpush2.bf16.msra.mxu0 0
          %793 = vmatprep.subr.bf16.mxu0 0
          %794 = vmatpush2.bf16.msra.mxu0 0
          %795 = vmatprep.subr.bf16.mxu0 0
          %796 = vmatpush2.bf16.msra.mxu0 0
          %797 = vmatprep.subr.bf16.mxu0 0
          %798 = vmatpush2.bf16.msra.mxu0 0
          %799 = vmatprep.subr.bf16.mxu0 0
          %800 = vmatpush2.bf16.msra.mxu0 0
          %801 = vmatprep.subr.bf16.mxu0 0
          %802 = vmatpush2.bf16.msra.mxu0 0
          %803 = vmatprep.subr.bf16.mxu0 0
          %804 = vmatpush2.bf16.msra.mxu0 0
          %805 = vmatprep.subr.bf16.mxu0 0
          %806 = vmatpush2.bf16.msra.mxu0 0
          %807 = vmatprep.mubr.bf16.mxu0 0
          %808 = vmatmul.mubr.bf16.gmra.mxu0 %v773
          %v809 = vpop.f32.mrf.mxu0
          %v810 = vadd.f32 %v758, %v809
          %v811 = vpop.f32.mrf.mxu0
          %v812 = vpop.f32.mrf.mxu0
          %v813 = vpop.f32.mrf.mxu0
          %814 = vdwg.mxu0
          %v815 = vpack.c.bf16 %v810, %v810
          %816 = vst.msk [vmem:[#allocation3] sm:$0xf] %vm747, %v815
        $region112: #{tpu_custom_call.1} parent=75 // pred_fallthru
          _
        %v817 = vld [vmem:[%s567] sm:$0xff]
        %v818 = vpack.c.bf16 %v817, %v817
        %v819 = vld [vmem:[#allocation12] sm:$0xf]
        %v820 = vld [vmem:[#allocation12 + $0x4] sm:$0xf]
        %v821 = vld [vmem:[#allocation12 + $0x8] sm:$0xf]
        %v822 = vld [vmem:[#allocation12 + $0xc] sm:$0xf]
        %v823 = vld [vmem:[%s5] sm:$0x1]
        %v825 = vlaneseq
        %v826 = vshrl.u32 %v825, 7
        %v827 = vsub.s32 0, %v826
        %v828 = vrot.slane %v823, %v827
        %v834 = vunpack.c.l.b16 %v819
        %v835 = vunpack.c.l.b16 %v820
        %v836 = vunpack.c.l.b16 %v821
        %v837 = vunpack.c.l.b16 %v822
        %v838 = vpack.c.b16 %v835, %v834
        %v839 = vpack.c.b16 %v837, %v836
        %vm842 = vcmask 261120
        %v844 = vsel %vm842, %v818, 0
        %846 = vmatprep.subr.bf16.mxu0 0
        %847 = vmatpush1.bf16.msra.mxu0 0
        %848 = vmatprep.subr.bf16.mxu0 0
        %849 = vmatpush1.bf16.msra.mxu0 0
        %850 = vmatprep.subr.bf16.mxu0 0
        %851 = vmatpush1.bf16.msra.mxu0 0
        %852 = vmatprep.subr.bf16.mxu0 0
        %853 = vmatpush1.bf16.msra.mxu0 0
        %854 = vmatprep.subr.bf16.mxu0 0
        %855 = vmatpush1.bf16.msra.mxu0 0
        %856 = vmatprep.subr.bf16.mxu0 0
        %857 = vmatpush1.bf16.msra.mxu0 0
        %858 = vmatprep.subr.bf16.mxu0 0
        %859 = vmatpush1.bf16.msra.mxu0 %v839
        %860 = vmatprep.subr.bf16.mxu0 0
        %861 = vmatpush1.bf16.msra.mxu0 %v838
        %862 = vmatprep.subr.bf16.mxu0 0
        %863 = vmatpush2.bf16.msra.mxu0 0
        %864 = vmatprep.subr.bf16.mxu0 0
        %865 = vmatpush2.bf16.msra.mxu0 0
        %866 = vmatprep.subr.bf16.mxu0 0
        %867 = vmatpush2.bf16.msra.mxu0 0
        %868 = vmatprep.subr.bf16.mxu0 0
        %869 = vmatpush2.bf16.msra.mxu0 0
        %870 = vmatprep.subr.bf16.mxu0 0
        %871 = vmatpush2.bf16.msra.mxu0 0
        %872 = vmatprep.subr.bf16.mxu0 0
        %873 = vmatpush2.bf16.msra.mxu0 0
        %874 = vmatprep.subr.bf16.mxu0 0
        %875 = vmatpush2.bf16.msra.mxu0 0
        %876 = vmatprep.subr.bf16.mxu0 0
        %877 = vmatpush2.bf16.msra.mxu0 0
        %878 = vmatprep.mubr.bf16.mxu0 0
        %879 = vmatmul.mubr.bf16.gmra.mxu0 %v844
        %v880 = vpop.f32.mrf.mxu0
        %v881 = vadd.f32 %v828, %v880
        %v882 = vpop.f32.mrf.mxu0
        %v883 = vpop.f32.mrf.mxu0
        %v884 = vpop.f32.mrf.mxu0
        %885 = vdwg.mxu0
        %v886 = vpack.c.bf16 %v881, %v881
        %v887 = vld [vmem:[#allocation2] sm:$0xf]
        %v888 = vld [vmem:[#allocation3] sm:$0xf]
        %vm889 = vcmask 64512
        %v891 = vsel %vm889, %v886, 0
        %v894 = vsel %vm889, %v887, 0
        %896 = vmatprep.subr.bf16.mxu0 0
        %897 = vmatpush1.bf16.xpose.msra.mxu0 0
        %898 = vmatprep.subr.bf16.mxu0 0
        %899 = vmatpush1.bf16.xpose.msra.mxu0 0
        %900 = vmatprep.subr.bf16.mxu0 0
        %901 = vmatpush1.bf16.xpose.msra.mxu0 0
        %902 = vmatprep.subr.bf16.mxu0 0
        %903 = vmatpush1.bf16.xpose.msra.mxu0 0
        %904 = vmatprep.subr.bf16.mxu0 0
        %905 = vmatpush1.bf16.xpose.msra.mxu0 0
        %906 = vmatprep.subr.bf16.mxu0 0
        %907 = vmatpush1.bf16.xpose.msra.mxu0 0
        %908 = vmatprep.subr.bf16.mxu0 0
        %909 = vmatpush1.bf16.xpose.msra.mxu0 0
        %910 = vmatprep.subr.bf16.mxu0 0
        %911 = vmatpush1.bf16.xpose.msra.mxu0 %v894
        %912 = vmatprep.subr.bf16.mxu0 0
        %913 = vmatpush2.bf16.xpose.msra.mxu0 0
        %914 = vmatprep.subr.bf16.mxu0 0
        %915 = vmatpush2.bf16.xpose.msra.mxu0 0
        %916 = vmatprep.subr.bf16.mxu0 0
        %917 = vmatpush2.bf16.xpose.msra.mxu0 0
        %918 = vmatprep.subr.bf16.mxu0 0
        %919 = vmatpush2.bf16.xpose.msra.mxu0 0
        %920 = vmatprep.subr.bf16.mxu0 0
        %921 = vmatpush2.bf16.xpose.msra.mxu0 0
        %922 = vmatprep.subr.bf16.mxu0 0
        %923 = vmatpush2.bf16.xpose.msra.mxu0 0
        %924 = vmatprep.subr.bf16.mxu0 0
        %925 = vmatpush2.bf16.xpose.msra.mxu0 0
        %926 = vmatprep.subr.bf16.mxu0 0
        %927 = vmatpush2.bf16.xpose.msra.mxu0 0
        %928 = vmatprep.mubr.bf16.mxu0 0
        %929 = vmatmul.mubr.bf16.gmra.mxu0 %v891
        %v930 = vpop.f32.mrf.mxu0
        %v931 = vadd.f32 0.0, %v930
        %v932 = vpop.f32.mrf.mxu0
        %v933 = vpop.f32.mrf.mxu0
        %v934 = vpop.f32.mrf.mxu0
        %935 = vdwg.mxu0
        %v936 = vld [vmem:[%s594] sm:$0xff]
        %v937 = vmax.f32 %v936, 1e-06
        %v938 = vlog2.pop %v937
        %v939 = vmul.f32 %v938, 0.6931472
        %v940 = vadd.f32 %v939, %v931
        %v941 = vsel %vm889, %v940, -inf
        %942 = vmax.xlane.f32.xlu0 %v941
        %v943 = vpop.xlane.xlu0 %942
        %v944 = vsub.f32 %v940, %v943
        %v945 = vmul.f32 %v944, 1.442695
        %v946 = vpow.pop %v945
        %v947 = vsel %vm889, %v946, 0.0
        %948 = vadd.xlane.f32.xlu0 %v947
        %v949 = vpop.xlane.xlu0 %948
        %v950 = vrcp.pop %v949
        %v951 = vmul.f32 %v946, %v950
        %v952 = vpack.c.bf16 %v951, %v951
        %v954 = vsel %vm889, %v952, 0
        %vm956 = vcmask 1043456
        %v958 = vsel %vm956, %v888, 0
        %960 = vmatprep.subr.bf16.mxu0 0
        %961 = vmatpush1.bf16.msra.mxu0 0
        %962 = vmatprep.subr.bf16.mxu0 0
        %963 = vmatpush1.bf16.msra.mxu0 0
        %964 = vmatprep.subr.bf16.mxu0 0
        %965 = vmatpush1.bf16.msra.mxu0 0
        %966 = vmatprep.subr.bf16.mxu0 0
        %967 = vmatpush1.bf16.msra.mxu0 0
        %968 = vmatprep.subr.bf16.mxu0 0
        %969 = vmatpush1.bf16.msra.mxu0 0
        %970 = vmatprep.subr.bf16.mxu0 0
        %971 = vmatpush1.bf16.msra.mxu0 0
        %972 = vmatprep.subr.bf16.mxu0 0
        %973 = vmatpush1.bf16.msra.mxu0 0
        %974 = vmatprep.subr.bf16.mxu0 0
        %975 = vmatpush1.bf16.msra.mxu0 %v958
        %976 = vmatprep.subr.bf16.mxu0 0
        %977 = vmatpush2.bf16.msra.mxu0 0
        %978 = vmatprep.subr.bf16.mxu0 0
        %979 = vmatpush2.bf16.msra.mxu0 0
        %980 = vmatprep.subr.bf16.mxu0 0
        %981 = vmatpush2.bf16.msra.mxu0 0
        %982 = vmatprep.subr.bf16.mxu0 0
        %983 = vmatpush2.bf16.msra.mxu0 0
        %984 = vmatprep.subr.bf16.mxu0 0
        %985 = vmatpush2.bf16.msra.mxu0 0
        %986 = vmatprep.subr.bf16.mxu0 0
        %987 = vmatpush2.bf16.msra.mxu0 0
        %988 = vmatprep.subr.bf16.mxu0 0
        %989 = vmatpush2.bf16.msra.mxu0 0
        %990 = vmatprep.subr.bf16.mxu0 0
        %991 = vmatpush2.bf16.msra.mxu0 0
        %992 = vmatprep.mubr.bf16.mxu0 0
        %993 = vmatmul.mubr.bf16.gmra.mxu0 %v954
        %v994 = vpop.f32.mrf.mxu0
        %v995 = vadd.f32 0.0, %v994
        %v996 = vpop.f32.mrf.mxu0
        %v997 = vpop.f32.mrf.mxu0
        %v998 = vpop.f32.mrf.mxu0
        %999 = vdwg.mxu0
        %1001 = vrot.lane.b32.xlu0 %v886, 120
        %v1002 = vpop.permute.xlu0 %1001
        %v1004 = vunpack.c.l.b16 %v887
        %v1005 = vpack.c.b16 %v1004, %v1004
        %1006 = vrot.lane.b32.xlu0 %v1005, 120
        %v1007 = vpop.permute.xlu0 %1006
        %v1009 = vsel %vm889, %v1002, 0
        %v1012 = vsel %vm889, %v1007, 0
        %1014 = vmatprep.subr.bf16.mxu0 0
        %1015 = vmatpush1.bf16.xpose.msra.mxu0 0
        %1016 = vmatprep.subr.bf16.mxu0 0
        %1017 = vmatpush1.bf16.xpose.msra.mxu0 0
        %1018 = vmatprep.subr.bf16.mxu0 0
        %1019 = vmatpush1.bf16.xpose.msra.mxu0 0
        %1020 = vmatprep.subr.bf16.mxu0 0
        %1021 = vmatpush1.bf16.xpose.msra.mxu0 0
        %1022 = vmatprep.subr.bf16.mxu0 0
        %1023 = vmatpush1.bf16.xpose.msra.mxu0 0
        %1024 = vmatprep.subr.bf16.mxu0 0
        %1025 = vmatpush1.bf16.xpose.msra.mxu0 0
        %1026 = vmatprep.subr.bf16.mxu0 0
        %1027 = vmatpush1.bf16.xpose.msra.mxu0 0
        %1028 = vmatprep.subr.bf16.mxu0 0
        %1029 = vmatpush1.bf16.xpose.msra.mxu0 %v1012
        %1030 = vmatprep.subr.bf16.mxu0 0
        %1031 = vmatpush2.bf16.xpose.msra.mxu0 0
        %1032 = vmatprep.subr.bf16.mxu0 0
        %1033 = vmatpush2.bf16.xpose.msra.mxu0 0
        %1034 = vmatprep.subr.bf16.mxu0 0
        %1035 = vmatpush2.bf16.xpose.msra.mxu0 0
        %1036 = vmatprep.subr.bf16.mxu0 0
        %1037 = vmatpush2.bf16.xpose.msra.mxu0 0
        %1038 = vmatprep.subr.bf16.mxu0 0
        %1039 = vmatpush2.bf16.xpose.msra.mxu0 0
        %1040 = vmatprep.subr.bf16.mxu0 0
        %1041 = vmatpush2.bf16.xpose.msra.mxu0 0
        %1042 = vmatprep.subr.bf16.mxu0 0
        %1043 = vmatpush2.bf16.xpose.msra.mxu0 0
        %1044 = vmatprep.subr.bf16.mxu0 0
        %1045 = vmatpush2.bf16.xpose.msra.mxu0 0
        %1046 = vmatprep.mubr.bf16.mxu0 0
        %1047 = vmatmul.mubr.bf16.gmra.mxu0 %v1009
        %v1048 = vpop.f32.mrf.mxu0
        %v1049 = vadd.f32 0.0, %v1048
        %v1050 = vpop.f32.mrf.mxu0
        %v1051 = vpop.f32.mrf.mxu0
        %v1052 = vpop.f32.mrf.mxu0
        %1053 = vdwg.mxu0
        %s1054 = scalar_lea.vmem %s594, 8 [#allocation10]
        %v1055 = vld [vmem:[%s1054] sm:$0xff]
        %v1056 = vmax.f32 %v1055, 1e-06
        %v1057 = vlog2.pop %v1056
        %v1058 = vmul.f32 %v1057, 0.6931472
        %v1059 = vadd.f32 %v1058, %v1049
        %v1060 = vsel %vm889, %v1059, -inf
        %1061 = vmax.xlane.f32.xlu0 %v1060
        %v1062 = vpop.xlane.xlu0 %1061
        %v1063 = vsub.f32 %v1059, %v1062
        %v1064 = vmul.f32 %v1063, 1.442695
        %v1065 = vpow.pop %v1064
        %v1066 = vsel %vm889, %v1065, 0.0
        %1067 = vadd.xlane.f32.xlu0 %v1066
        %v1068 = vpop.xlane.xlu0 %1067
        %v1069 = vrcp.pop %v1068
        %v1070 = vmul.f32 %v1065, %v1069
        %v1071 = vpack.c.bf16 %v1070, %v1070
        %v1073 = vunpack.c.l.b16 %v888
        %v1074 = vpack.c.b16 %v1073, %v1073
        %1075 = vrot.lane.b32.xlu0 %v1074, 120
        %v1076 = vpop.permute.xlu0 %1075
        %v1078 = vsel %vm889, %v1071, 0
        %v1081 = vsel %vm956, %v1076, 0
        %1083 = vmatprep.subr.bf16.mxu0 0
        %1084 = vmatpush1.bf16.msra.mxu0 0
        %1085 = vmatprep.subr.bf16.mxu0 0
        %1086 = vmatpush1.bf16.msra.mxu0 0
        %1087 = vmatprep.subr.bf16.mxu0 0
        %1088 = vmatpush1.bf16.msra.mxu0 0
        %1089 = vmatprep.subr.bf16.mxu0 0
        %1090 = vmatpush1.bf16.msra.mxu0 0
        %1091 = vmatprep.subr.bf16.mxu0 0
        %1092 = vmatpush1.bf16.msra.mxu0 0
        %1093 = vmatprep.subr.bf16.mxu0 0
        %1094 = vmatpush1.bf16.msra.mxu0 0
        %1095 = vmatprep.subr.bf16.mxu0 0
        %1096 = vmatpush1.bf16.msra.mxu0 0
        %1097 = vmatprep.subr.bf16.mxu0 0
        %1098 = vmatpush1.bf16.msra.mxu0 %v1081
        %1099 = vmatprep.subr.bf16.mxu0 0
        %1100 = vmatpush2.bf16.msra.mxu0 0
        %1101 = vmatprep.subr.bf16.mxu0 0
        %1102 = vmatpush2.bf16.msra.mxu0 0
        %1103 = vmatprep.subr.bf16.mxu0 0
        %1104 = vmatpush2.bf16.msra.mxu0 0
        %1105 = vmatprep.subr.bf16.mxu0 0
        %1106 = vmatpush2.bf16.msra.mxu0 0
        %1107 = vmatprep.subr.bf16.mxu0 0
        %1108 = vmatpush2.bf16.msra.mxu0 0
        %1109 = vmatprep.subr.bf16.mxu0 0
        %1110 = vmatpush2.bf16.msra.mxu0 0
        %1111 = vmatprep.subr.bf16.mxu0 0
        %1112 = vmatpush2.bf16.msra.mxu0 0
        %1113 = vmatprep.subr.bf16.mxu0 0
        %1114 = vmatpush2.bf16.msra.mxu0 0
        %1115 = vmatprep.mubr.bf16.mxu0 0
        %1116 = vmatmul.mubr.bf16.gmra.mxu0 %v1078
        %v1117 = vpop.f32.mrf.mxu0
        %v1118 = vadd.f32 0.0, %v1117
        %v1119 = vpop.f32.mrf.mxu0
        %v1120 = vpop.f32.mrf.mxu0
        %v1121 = vpop.f32.mrf.mxu0
        %1122 = vdwg.mxu0
        %1123 = vrot.lane.b32.xlu0 %v886, 112
        %v1124 = vpop.permute.xlu0 %1123
        %1125 = vrot.lane.b32.xlu0 %v1005, 112
        %v1126 = vpop.permute.xlu0 %1125
        %v1128 = vsel %vm889, %v1124, 0
        %v1131 = vsel %vm889, %v1126, 0
        %1133 = vmatprep.subr.bf16.mxu0 0
        %1134 = vmatpush1.bf16.xpose.msra.mxu0 0
        %1135 = vmatprep.subr.bf16.mxu0 0
        %1136 = vmatpush1.bf16.xpose.msra.mxu0 0
        %1137 = vmatprep.subr.bf16.mxu0 0
        %1138 = vmatpush1.bf16.xpose.msra.mxu0 0
        %1139 = vmatprep.subr.bf16.mxu0 0
        %1140 = vmatpush1.bf16.xpose.msra.mxu0 0
        %1141 = vmatprep.subr.bf16.mxu0 0
        %1142 = vmatpush1.bf16.xpose.msra.mxu0 0
        %1143 = vmatprep.subr.bf16.mxu0 0
        %1144 = vmatpush1.bf16.xpose.msra.mxu0 0
        %1145 = vmatprep.subr.bf16.mxu0 0
        %1146 = vmatpush1.bf16.xpose.msra.mxu0 0
        %1147 = vmatprep.subr.bf16.mxu0 0
        %1148 = vmatpush1.bf16.xpose.msra.mxu0 %v1131
        %1149 = vmatprep.subr.bf16.mxu0 0
        %1150 = vmatpush2.bf16.xpose.msra.mxu0 0
        %1151 = vmatprep.subr.bf16.mxu0 0
        %1152 = vmatpush2.bf16.xpose.msra.mxu0 0
        %1153 = vmatprep.subr.bf16.mxu0 0
        %1154 = vmatpush2.bf16.xpose.msra.mxu0 0
        %1155 = vmatprep.subr.bf16.mxu0 0
        %1156 = vmatpush2.bf16.xpose.msra.mxu0 0
        %1157 = vmatprep.subr.bf16.mxu0 0
        %1158 = vmatpush2.bf16.xpose.msra.mxu0 0
        %1159 = vmatprep.subr.bf16.mxu0 0
        %1160 = vmatpush2.bf16.xpose.msra.mxu0 0
        %1161 = vmatprep.subr.bf16.mxu0 0
        %1162 = vmatpush2.bf16.xpose.msra.mxu0 0
        %1163 = vmatprep.subr.bf16.mxu0 0
        %1164 = vmatpush2.bf16.xpose.msra.mxu0 0
        %1165 = vmatprep.mubr.bf16.mxu0 0
        %1166 = vmatmul.mubr.bf16.gmra.mxu0 %v1128
        %v1167 = vpop.f32.mrf.mxu0
        %v1168 = vadd.f32 0.0, %v1167
        %v1169 = vpop.f32.mrf.mxu0
        %v1170 = vpop.f32.mrf.mxu0
        %v1171 = vpop.f32.mrf.mxu0
        %1172 = vdwg.mxu0
        %s1173 = scalar_lea.vmem %s594, 16 [#allocation10]
        %v1174 = vld [vmem:[%s1173] sm:$0xff]
        %v1175 = vmax.f32 %v1174, 1e-06
        %v1176 = vlog2.pop %v1175
        %v1177 = vmul.f32 %v1176, 0.6931472
        %v1178 = vadd.f32 %v1177, %v1168
        %v1179 = vsel %vm889, %v1178, -inf
        %1180 = vmax.xlane.f32.xlu0 %v1179
        %v1181 = vpop.xlane.xlu0 %1180
        %v1182 = vsub.f32 %v1178, %v1181
        %v1183 = vmul.f32 %v1182, 1.442695
        %v1184 = vpow.pop %v1183
        %v1185 = vsel %vm889, %v1184, 0.0
        %1186 = vadd.xlane.f32.xlu0 %v1185
        %v1187 = vpop.xlane.xlu0 %1186
        %v1188 = vrcp.pop %v1187
        %v1189 = vmul.f32 %v1184, %v1188
        %v1190 = vpack.c.bf16 %v1189, %v1189
        %1191 = vrot.lane.b32.xlu0 %v1074, 112
        %v1192 = vpop.permute.xlu0 %1191
        %v1194 = vsel %vm889, %v1190, 0
        %v1197 = vsel %vm956, %v1192, 0
        %1199 = vmatprep.subr.bf16.mxu0 0
        %1200 = vmatpush1.bf16.msra.mxu0 0
        %1201 = vmatprep.subr.bf16.mxu0 0
        %1202 = vmatpush1.bf16.msra.mxu0 0
        %1203 = vmatprep.subr.bf16.mxu0 0
        %1204 = vmatpush1.bf16.msra.mxu0 0
        %1205 = vmatprep.subr.bf16.mxu0 0
        %1206 = vmatpush1.bf16.msra.mxu0 0
        %1207 = vmatprep.subr.bf16.mxu0 0
        %1208 = vmatpush1.bf16.msra.mxu0 0
        %1209 = vmatprep.subr.bf16.mxu0 0
        %1210 = vmatpush1.bf16.msra.mxu0 0
        %1211 = vmatprep.subr.bf16.mxu0 0
        %1212 = vmatpush1.bf16.msra.mxu0 0
        %1213 = vmatprep.subr.bf16.mxu0 0
        %1214 = vmatpush1.bf16.msra.mxu0 %v1197
        %1215 = vmatprep.subr.bf16.mxu0 0
        %1216 = vmatpush2.bf16.msra.mxu0 0
        %1217 = vmatprep.subr.bf16.mxu0 0
        %1218 = vmatpush2.bf16.msra.mxu0 0
        %1219 = vmatprep.subr.bf16.mxu0 0
        %1220 = vmatpush2.bf16.msra.mxu0 0
        %1221 = vmatprep.subr.bf16.mxu0 0
        %1222 = vmatpush2.bf16.msra.mxu0 0
        %1223 = vmatprep.subr.bf16.mxu0 0
        %1224 = vmatpush2.bf16.msra.mxu0 0
        %1225 = vmatprep.subr.bf16.mxu0 0
        %1226 = vmatpush2.bf16.msra.mxu0 0
        %1227 = vmatprep.subr.bf16.mxu0 0
        %1228 = vmatpush2.bf16.msra.mxu0 0
        %1229 = vmatprep.subr.bf16.mxu0 0
        %1230 = vmatpush2.bf16.msra.mxu0 0
        %1231 = vmatprep.mubr.bf16.mxu0 0
        %1232 = vmatmul.mubr.bf16.gmra.mxu0 %v1194
        %v1233 = vpop.f32.mrf.mxu0
        %v1234 = vadd.f32 0.0, %v1233
        %v1235 = vpop.f32.mrf.mxu0
        %v1236 = vpop.f32.mrf.mxu0
        %v1237 = vpop.f32.mrf.mxu0
        %1238 = vdwg.mxu0
        %1239 = vrot.lane.b32.xlu0 %v886, 104
        %v1240 = vpop.permute.xlu0 %1239
        %1241 = vrot.lane.b32.xlu0 %v1005, 104
        %v1242 = vpop.permute.xlu0 %1241
        %v1244 = vsel %vm889, %v1240, 0
        %v1247 = vsel %vm889, %v1242, 0
        %1249 = vmatprep.subr.bf16.mxu0 0
        %1250 = vmatpush1.bf16.xpose.msra.mxu0 0
        %1251 = vmatprep.subr.bf16.mxu0 0
        %1252 = vmatpush1.bf16.xpose.msra.mxu0 0
        %1253 = vmatprep.subr.bf16.mxu0 0
        %1254 = vmatpush1.bf16.xpose.msra.mxu0 0
        %1255 = vmatprep.subr.bf16.mxu0 0
        %1256 = vmatpush1.bf16.xpose.msra.mxu0 0
        %1257 = vmatprep.subr.bf16.mxu0 0
        %1258 = vmatpush1.bf16.xpose.msra.mxu0 0
        %1259 = vmatprep.subr.bf16.mxu0 0
        %1260 = vmatpush1.bf16.xpose.msra.mxu0 0
        %1261 = vmatprep.subr.bf16.mxu0 0
        %1262 = vmatpush1.bf16.xpose.msra.mxu0 0
        %1263 = vmatprep.subr.bf16.mxu0 0
        %1264 = vmatpush1.bf16.xpose.msra.mxu0 %v1247
        %1265 = vmatprep.subr.bf16.mxu0 0
        %1266 = vmatpush2.bf16.xpose.msra.mxu0 0
        %1267 = vmatprep.subr.bf16.mxu0 0
        %1268 = vmatpush2.bf16.xpose.msra.mxu0 0
        %1269 = vmatprep.subr.bf16.mxu0 0
        %1270 = vmatpush2.bf16.xpose.msra.mxu0 0
        %1271 = vmatprep.subr.bf16.mxu0 0
        %1272 = vmatpush2.bf16.xpose.msra.mxu0 0
        %1273 = vmatprep.subr.bf16.mxu0 0
        %1274 = vmatpush2.bf16.xpose.msra.mxu0 0
        %1275 = vmatprep.subr.bf16.mxu0 0
        %1276 = vmatpush2.bf16.xpose.msra.mxu0 0
        %1277 = vmatprep.subr.bf16.mxu0 0
        %1278 = vmatpush2.bf16.xpose.msra.mxu0 0
        %1279 = vmatprep.subr.bf16.mxu0 0
        %1280 = vmatpush2.bf16.xpose.msra.mxu0 0
        %1281 = vmatprep.mubr.bf16.mxu0 0
        %1282 = vmatmul.mubr.bf16.gmra.mxu0 %v1244
        %v1283 = vpop.f32.mrf.mxu0
        %v1284 = vadd.f32 0.0, %v1283
        %v1285 = vpop.f32.mrf.mxu0
        %v1286 = vpop.f32.mrf.mxu0
        %v1287 = vpop.f32.mrf.mxu0
        %1288 = vdwg.mxu0
        %s1289 = scalar_lea.vmem %s594, 24 [#allocation10]
        %v1290 = vld [vmem:[%s1289] sm:$0xff]
        %v1291 = vmax.f32 %v1290, 1e-06
        %v1292 = vlog2.pop %v1291
        %v1293 = vmul.f32 %v1292, 0.6931472
        %v1294 = vadd.f32 %v1293, %v1284
        %v1295 = vsel %vm889, %v1294, -inf
        %1296 = vmax.xlane.f32.xlu0 %v1295
        %v1297 = vpop.xlane.xlu0 %1296
        %v1298 = vsub.f32 %v1294, %v1297
        %v1299 = vmul.f32 %v1298, 1.442695
        %v1300 = vpow.pop %v1299
        %v1301 = vsel %vm889, %v1300, 0.0
        %1302 = vadd.xlane.f32.xlu0 %v1301
        %v1303 = vpop.xlane.xlu0 %1302
        %v1304 = vrcp.pop %v1303
        %v1305 = vmul.f32 %v1300, %v1304
        %v1306 = vpack.c.bf16 %v1305, %v1305
        %1307 = vrot.lane.b32.xlu0 %v1074, 104
        %v1308 = vpop.permute.xlu0 %1307
        %v1310 = vsel %vm889, %v1306, 0
        %v1313 = vsel %vm956, %v1308, 0
        %1315 = vmatprep.subr.bf16.mxu0 0
        %1316 = vmatpush1.bf16.msra.mxu0 0
        %1317 = vmatprep.subr.bf16.mxu0 0
        %1318 = vmatpush1.bf16.msra.mxu0 0
        %1319 = vmatprep.subr.bf16.mxu0 0
        %1320 = vmatpush1.bf16.msra.mxu0 0
        %1321 = vmatprep.subr.bf16.mxu0 0
        %1322 = vmatpush1.bf16.msra.mxu0 0
        %1323 = vmatprep.subr.bf16.mxu0 0
        %1324 = vmatpush1.bf16.msra.mxu0 0
        %1325 = vmatprep.subr.bf16.mxu0 0
        %1326 = vmatpush1.bf16.msra.mxu0 0
        %1327 = vmatprep.subr.bf16.mxu0 0
        %1328 = vmatpush1.bf16.msra.mxu0 0
        %1329 = vmatprep.subr.bf16.mxu0 0
        %1330 = vmatpush1.bf16.msra.mxu0 %v1313
        %1331 = vmatprep.subr.bf16.mxu0 0
        %1332 = vmatpush2.bf16.msra.mxu0 0
        %1333 = vmatprep.subr.bf16.mxu0 0
        %1334 = vmatpush2.bf16.msra.mxu0 0
        %1335 = vmatprep.subr.bf16.mxu0 0
        %1336 = vmatpush2.bf16.msra.mxu0 0
        %1337 = vmatprep.subr.bf16.mxu0 0
        %1338 = vmatpush2.bf16.msra.mxu0 0
        %1339 = vmatprep.subr.bf16.mxu0 0
        %1340 = vmatpush2.bf16.msra.mxu0 0
        %1341 = vmatprep.subr.bf16.mxu0 0
        %1342 = vmatpush2.bf16.msra.mxu0 0
        %1343 = vmatprep.subr.bf16.mxu0 0
        %1344 = vmatpush2.bf16.msra.mxu0 0
        %1345 = vmatprep.subr.bf16.mxu0 0
        %1346 = vmatpush2.bf16.msra.mxu0 0
        %1347 = vmatprep.mubr.bf16.mxu0 0
        %1348 = vmatmul.mubr.bf16.gmra.mxu0 %v1310
        %v1349 = vpop.f32.mrf.mxu0
        %v1350 = vadd.f32 0.0, %v1349
        %v1351 = vpop.f32.mrf.mxu0
        %v1352 = vpop.f32.mrf.mxu0
        %v1353 = vpop.f32.mrf.mxu0
        %1354 = vdwg.mxu0
        %1356 = vrot.lane.b32.xlu0 %v1118, 8
        %v1357 = vpop.permute.xlu0 %1356
        %1360 = vrot.lane.b32.xlu0 %v1234, 16
        %v1361 = vpop.permute.xlu0 %1360
        %1364 = vrot.lane.b32.xlu0 %v1350, 24
        %v1365 = vpop.permute.xlu0 %1364
        %v1367 = vsel %vm889, %v995, %v1357
        %vm1368 = vcmask 130048
        %v1369 = vsel %vm1368, %v1367, %v1361
        %vm1370 = vcmask 195584
        %v1371 = vsel %vm1370, %v1369, %v1365
        %v1372 = vpack.c.bf16 %v1371, %v1371
        %v1373 = vld [vmem:[%s10] sm:$0xf]
        %v1374 = vld [vmem:[%s10 + $0x4] sm:$0xf]
        %v1375 = vld [vmem:[%s10 + $0x8] sm:$0xf]
        %v1376 = vld [vmem:[%s10 + $0xc] sm:$0xf]
        %v1377 = vld [vmem:[%s11] sm:$0x1]
        %v1379 = vlaneseq
        %v1380 = vshrl.u32 %v1379, 7
        %v1381 = vsub.s32 0, %v1380
        %v1382 = vrot.slane %v1377, %v1381
        %v1388 = vunpack.c.l.b16 %v1373
        %v1389 = vunpack.c.l.b16 %v1374
        %v1390 = vunpack.c.l.b16 %v1375
        %v1391 = vunpack.c.l.b16 %v1376
        %v1392 = vpack.c.b16 %v1389, %v1388
        %v1393 = vpack.c.b16 %v1391, %v1390
        %v1397 = vsel %vm842, %v1372, 0
        %1399 = vmatprep.subr.bf16.mxu0 0
        %1400 = vmatpush1.bf16.msra.mxu0 0
        %1401 = vmatprep.subr.bf16.mxu0 0
        %1402 = vmatpush1.bf16.msra.mxu0 0
        %1403 = vmatprep.subr.bf16.mxu0 0
        %1404 = vmatpush1.bf16.msra.mxu0 0
        %1405 = vmatprep.subr.bf16.mxu0 0
        %1406 = vmatpush1.bf16.msra.mxu0 0
        %1407 = vmatprep.subr.bf16.mxu0 0
        %1408 = vmatpush1.bf16.msra.mxu0 0
        %1409 = vmatprep.subr.bf16.mxu0 0
        %1410 = vmatpush1.bf16.msra.mxu0 0
        %1411 = vmatprep.subr.bf16.mxu0 0
        %1412 = vmatpush1.bf16.msra.mxu0 %v1393
        %1413 = vmatprep.subr.bf16.mxu0 0
        %1414 = vmatpush1.bf16.msra.mxu0 %v1392
        %1415 = vmatprep.subr.bf16.mxu0 0
        %1416 = vmatpush2.bf16.msra.mxu0 0
        %1417 = vmatprep.subr.bf16.mxu0 0
        %1418 = vmatpush2.bf16.msra.mxu0 0
        %1419 = vmatprep.subr.bf16.mxu0 0
        %1420 = vmatpush2.bf16.msra.mxu0 0
        %1421 = vmatprep.subr.bf16.mxu0 0
        %1422 = vmatpush2.bf16.msra.mxu0 0
        %1423 = vmatprep.subr.bf16.mxu0 0
        %1424 = vmatpush2.bf16.msra.mxu0 0
        %1425 = vmatprep.subr.bf16.mxu0 0
        %1426 = vmatpush2.bf16.msra.mxu0 0
        %1427 = vmatprep.subr.bf16.mxu0 0
        %1428 = vmatpush2.bf16.msra.mxu0 0
        %1429 = vmatprep.subr.bf16.mxu0 0
        %1430 = vmatpush2.bf16.msra.mxu0 0
        %1431 = vmatprep.mubr.bf16.mxu0 0
        %1432 = vmatmul.mubr.bf16.gmra.mxu0 %v1397
        %v1433 = vpop.f32.mrf.mxu0
        %v1434 = vadd.f32 %v1382, %v1433
        %v1435 = vpop.f32.mrf.mxu0
        %v1436 = vpop.f32.mrf.mxu0
        %v1437 = vpop.f32.mrf.mxu0
        %1438 = vdwg.mxu0
        %v1439 = vadd.f32 %v817, %v1434
        %v1440 = vsel %vm842, %v1439, 0.0
        %1441 = vadd.xlane.f32.xlu0 %v1440
        %v1442 = vpop.xlane.xlu0 %1441
        %v1443 = vrcp.pop 32.0
        %v1444 = vmul.f32 %v1442, %v1443
        %v1445 = vsub.f32 %v1439, %v1444
        %v1446 = vmul.f32 %v1445, %v1445
        %v1447 = vsel %vm842, %v1446, 0.0
        %1448 = vadd.xlane.f32.xlu0 %v1447
        %v1449 = vpop.xlane.xlu0 %1448
        %v1450 = vmul.f32 %v1449, %v1443
        %v1451 = vadd.f32 %v1450, 1e-05
        %v1452 = vrsqrt.pop %v1451
        %v1453 = vmul.f32 %v1445, %v1452
        %v1454 = vld [vmem:[%s12] sm:$0x1]
        %v1456 = vlaneseq
        %v1457 = vshrl.u32 %v1456, 7
        %v1458 = vsub.s32 0, %v1457
        %v1459 = vrot.slane %v1454, %v1458
        %v1461 = vmul.f32 %v1453, %v1459
        %v1462 = vld [vmem:[%s13] sm:$0x1]
        %v1464 = vlaneseq
        %v1465 = vshrl.u32 %v1464, 7
        %v1466 = vsub.s32 0, %v1465
        %v1467 = vrot.slane %v1462, %v1466
        %v1469 = vadd.f32 %v1461, %v1467
        %1470 = vst.msk [vmem:[%s669] sm:$0xff] %vm842, %v1469
        %s1471 = sand.u32 %s379, 1
        %s1472 = scalar_lea.sflag [#allocation6], %s1471
        %s1473 = sand.u32 %s379, 1
        %s1474 = smul.addr %s1473, 8
        %s1475 = scalar_lea.vmem [#allocation18], %s1474
        // Predicated region
        $region113: #{tpu_custom_call.1} parent=75 // pred_check
          %p1476 = pneg %p389
        $region114: #{tpu_custom_call.1} parent=75 // pred_check_branch
          %1478 = sbr.rel (%p1476) target = $region116
        $region115: #{tpu_custom_call.1} parent=75 // pred_region
          %s1480 = ssub.s32 128, 128
          %1481 = vsyncadd %s1472, %s1480
          %s1482 = sadd.s32 %s44, %s43
          %s1483 = smul.addr %s1482, 128
          %s1484 = scalar_lea.hbm %s14, %s1483
          %s1486 = sshll.u32 %s1475, 4
          %s1487 = int_to_ptr.vmem [resolvable:$true] %s1486
          %1489 = dma.vmem_to_hbm [thread:$0]  %s1487, 128, %s1484, %s1472
        $region116: #{tpu_custom_call.1} parent=75 // pred_fallthru
          _
      $region76: #{tpu_custom_call.1} parent=5 // pred_fallthru
        _
      %p1490 = scmp.le.s32.totalorder 2, %s34
      // Predicated region
      $region117: #{tpu_custom_call.1} parent=5 // pred_check
        %p1491 = pneg %p1490
      $region118: #{tpu_custom_call.1} parent=5 // pred_check_branch
        %1493 = sbr.rel (%p1491) target = $region120
      $region119: #{tpu_custom_call.1} parent=5 // pred_region
        %s1494 = ssub.s32 %s34, 2
        // Predicated region
        $region121: #{tpu_custom_call.1} parent=119 // pred_check
          %p1495 = pneg %p395
        $region122: #{tpu_custom_call.1} parent=119 // pred_check_branch
          %1497 = sbr.rel (%p1495) target = $region124
        $region123: #{tpu_custom_call.1} parent=119 // pred_region
          %s1498 = sand.u32 %s380, 1
          %s1499 = scalar_lea.sflag [#allocation6], %s1498
          %s1500 = sand.u32 %s380, 1
          %s1501 = smul.addr %s1500, 8
          %s1502 = scalar_lea.vmem [#allocation18], %s1501
          %1503 = dma.done %s1499, 128
        $region124: #{tpu_custom_call.1} parent=119 // pred_fallthru
          _
      $region120: #{tpu_custom_call.1} parent=5 // pred_fallthru
        _
    $region6: #{tpu_custom_call.1} parent=1 // loop_footer
      %s38 = sadd.s32 1, %s34
    $region7: #{tpu_custom_call.1} parent=1 // loop_footer_branch
      %33 = sbr.rel target = $region3
    $region8: #{tpu_custom_call.1} parent=1 // loop_exit
      _
    %1504 = vsyncpa [#allocation5], 1
    %s1505 = scalar_lea.sflag [#allocation5], 1
    %1506 = vsyncpa %s1505, 1
    %1507 = vsyncpa [#allocation8], 1
    %s1508 = scalar_lea.sflag [#allocation8], 1
    %1509 = vsyncpa %s1508, 1
    %1510 = vsyncpa [#allocation11], 1
    %s1511 = scalar_lea.sflag [#allocation11], 1
    %1512 = vsyncpa %s1511, 1
    %1513 = vsyncpa [#allocation14], 1
    %1514 = vsyncpa [#allocation17], 1
    %1515 = vsyncpa [#allocation6], 1
    %s1516 = scalar_lea.sflag [#allocation6], 1
    %1517 = vsyncpa %s1516, 1

</llo_original>
